<compile_context>
chip_gen: v6e
topology: v6e:2x2x1
jax: 0.10.0
libtpu: 0.0.40
codegen_flags: <defaults>
</compile_context>

<pallas_src>
import functools

import jax
import jax.numpy as jnp
import numpy as np
from jax.experimental import pallas as pl
from jax.experimental.pallas import tpu as pltpu

EPS = 1e-5


def _round_up(x, d):
    return ((x + d - 1) // d) * d


# ------------------------------ fused kernel ---------------------------------

def _resblock_kernel(mask_ref, p1_ref, w1c_ref, w2_ref, bn_ref, *args,
                     cout, wp, halo, n_valid, has_sc):
    if has_sc:
        o_ref, zbuf_ref, sc_ref = args
        xid_ref = None
    else:
        xid_ref, o_ref, zbuf_ref, sc_ref = args

    p_rows = o_ref.shape[0]                    # padded-grid positions (incl. halo rows)
    inv_m = jnp.float32(1.0 / n_valid)         # BN stats use real pixels only
    msk = mask_ref[...]                        # (p_rows, 1) f32, 1.0 on real pixels

    def bn_fold(v, g, b, mask_mean):
        # Training-mode BatchNorm (biased variance) folded to per-channel scale/bias.
        # Two-pass (centered) variance avoids E[x^2]-E[x]^2 cancellation.  Halo rows
        # are excluded via `msk`; conv1 outputs are exactly zero there, so the plain
        # sum is already the valid-row sum (mask_mean=False skips one multiply pass).
        vm = v * msk if mask_mean else v
        mean = jnp.sum(vm, axis=0, keepdims=True) * inv_m
        cen = (v - mean) * msk
        var = jnp.sum(cen * cen, axis=0, keepdims=True) * inv_m
        scale = g * jax.lax.rsqrt(var + EPS)
        return scale, b - mean * scale

    # ---- conv1 (3x3, stride) with the 1x1 shortcut folded in: one MXU matmul ----
    # p1 rows at halo positions are all-zero, so y is exactly zero there too.
    y = jnp.dot(p1_ref[...], w1c_ref[...], preferred_element_type=jnp.float32)
    y1 = y[:, :cout]

    s1, t1 = bn_fold(y1, bn_ref[0:1, :], bn_ref[1:2, :], mask_mean=False)
    z1 = jnp.maximum(y1 * s1 + t1, 0.0) * msk              # halo rows forced to 0

    # ---- shortcut branch: BN now, stash to VMEM so it is not live in vregs
    #      across the conv2 matmul (review: vreg pressure) -----------------------
    if has_sc:
        ysc = y[:, cout:]
        ss, ts = bn_fold(ysc, bn_ref[4:5, :], bn_ref[5:6, :], mask_mean=False)
        sc_ref[...] = ysc * ss + ts
    else:
        sc_ref[...] = xid_ref[...]                          # exact f32 identity skip

    # ---- conv2 (3x3, stride 1, pad 1): zero-padded halo scratch, mask-free ------
    # Zero only the lead/trail halo; the interior is fully overwritten by z1.
    zeros_halo = jnp.zeros((halo, cout), jnp.float32)
    zbuf_ref[pl.ds(0, halo), :] = zeros_halo
    zbuf_ref[pl.ds(halo + p_rows, halo), :] = zeros_halo
    zbuf_ref[pl.ds(halo, p_rows), :] = z1

    # Nine shifted contiguous windows, concatenated along K -> ONE MXU matmul with
    # K = 9*cout (no per-tap boundary masks, no per-tap MXU-FIFO pop + VPU add).
    taps = []
    for kh in range(3):
        for kw in range(3):
            off = halo + (kh - 1) * wp + (kw - 1)           # static offset
            taps.append(zbuf_ref[pl.ds(off, p_rows), :])
    lhs = jnp.concatenate(taps, axis=-1).astype(jnp.bfloat16)   # (p_rows, 9*cout)
    y2 = jnp.dot(lhs, w2_ref[...], preferred_element_type=jnp.float32)

    # ---- BN2 + add shortcut + ReLU ----------------------------------------------
    # y2 halo rows hold finite garbage -> mask both BN passes.
    s2, t2 = bn_fold(y2, bn_ref[2:3, :], bn_ref[3:4, :], mask_mean=True)
    o_ref[...] = jnp.maximum(y2 * s2 + t2 + sc_ref[...], 0.0)


# ------------------------------- JAX wrapper ----------------------------------

def _im2col_3x3(x, stride):
    """x: (N, H, W, C) NHWC, 3x3 kernel, pad=1 -> ((N, Ho, Wo, 9C), (Ho, Wo))."""
    n, h, w, c = x.shape
    xp = jnp.pad(x, ((0, 0), (1, 1), (1, 1), (0, 0)))
    ho = (h + 2 - 3) // stride + 1
    wo = (w + 2 - 3) // stride + 1
    cols = []
    for kh in range(3):
        for kw in range(3):
            cols.append(xp[:, kh:kh + (ho - 1) * stride + 1:stride,
                              kw:kw + (wo - 1) * stride + 1:stride, :])
    return jnp.concatenate(cols, axis=-1), (ho, wo)         # (N, Ho, Wo, 9C)


def resblock_forward_nhwc(x, params, stride):
    n, h, w, cin = x.shape
    cout = params["w1"].shape[-1]
    has_sc = (stride != 1) or (cin != cout)

    # conv1 im2col (dense), then embedded into the zero-padded per-image grid that the
    # kernel computes over, so conv2's 3x3 needs no boundary masks.
    p1, (ho, wo) = _im2col_3x3(x, stride)                   # (n, ho, wo, 9*cin) f32
    m = n * ho * wo                                         # real output pixels
    hp = ho + 2
    wp = _round_up(wo + 2, 8)       # sublane-aligned row stride -> aligned dh taps
    p_all = n * hp * wp             # padded-grid rows the kernel computes over
    halo = _round_up(wp + 1, 8)     # lead/trail rows of the conv2 halo scratch

    p1_pad = jnp.zeros((n, hp, wp, 9 * cin), jnp.float32)
    p1_pad = p1_pad.at[:, 1:ho + 1, 1:wo + 1, :].set(p1)
    p1_pad = p1_pad.reshape(p_all, 9 * cin).astype(jnp.bfloat16)

    mask = jnp.zeros((n, hp, wp, 1), jnp.float32)
    mask = mask.at[:, 1:ho + 1, 1:wo + 1, :].set(1.0).reshape(p_all, 1)

    # conv1 weights, with the 1x1 shortcut folded in as extra output columns (its input
    # rows are exactly the centre-tap columns of conv1's im2col).  Kept because cout=8
    # is nowhere near the MXU column width; see TODO above for large cout.
    w1 = params["w1"].reshape(9 * cin, cout)
    if has_sc:
        wsc = params["wsc"].reshape(cin, cout)
        wsc_embed = jnp.zeros((9 * cin, cout), jnp.float32).at[4 * cin:5 * cin].set(wsc)
        w1c = jnp.concatenate([w1, wsc_embed], axis=1)      # (9*cin, 2*cout)
    else:
        w1c = w1                                            # identity skip stays exact f32

    w2 = params["w2"].reshape(9 * cout, cout)               # (kh,kw,ci) flattened to K

    ones = jnp.ones((cout,), jnp.float32)
    zeros = jnp.zeros((cout,), jnp.float32)
    bnp = jnp.stack([params["gamma1"], params["beta1"],
                     params["gamma2"], params["beta2"],
                     params["gamma_sc"] if has_sc else ones,
                     params["beta_sc"] if has_sc else zeros], axis=0)   # (6, cout)

    kernel = functools.partial(_resblock_kernel, cout=cout, wp=wp, halo=halo,
                               n_valid=m, has_sc=has_sc)

    in_specs = [
        pl.BlockSpec((p_all, 1), lambda i: (0, 0)),                  # valid-pixel mask
        pl.BlockSpec((p_all, 9 * cin), lambda i: (0, 0)),            # padded im2col (bf16)
        pl.BlockSpec((9 * cin, w1c.shape[1]), lambda i: (0, 0)),     # conv1(+sc) weights
        pl.BlockSpec((9 * cout, cout), lambda i: (0, 0)),            # conv2 weights
        pl.BlockSpec((6, cout), lambda i: (0, 0)),                   # BN gammas / betas
    ]
    inputs = [mask, p1_pad, w1c.astype(jnp.bfloat16), w2.astype(jnp.bfloat16), bnp]
    if not has_sc:
        xid = jnp.zeros((n, hp, wp, cout), jnp.float32)
        xid = xid.at[:, 1:ho + 1, 1:wo + 1, :].set(x).reshape(p_all, cout)
        in_specs.append(pl.BlockSpec((p_all, cout), lambda i: (0, 0)))
        inputs.append(xid)

    out_pad = pl.pallas_call(
        kernel,
        out_shape=jax.ShapeDtypeStruct((p_all, cout), jnp.float32),
        grid=(1,),     # whole-batch BN statistics -> single step; all data fits in VMEM
        in_specs=in_specs,
        out_specs=pl.BlockSpec((p_all, cout), lambda i: (0, 0)),
        scratch_shapes=[
            pltpu.VMEM((halo + p_all + halo, cout), jnp.float32),    # conv2 halo buffer
            pltpu.VMEM((p_all, cout), jnp.float32),                  # stashed shortcut
        ],
        compiler_params=pltpu.CompilerParams(dimension_semantics=("arbitrary",)),
    )(*inputs)

    out = out_pad.reshape(n, hp, wp, cout)[:, 1:ho + 1, 1:wo + 1, :]
    return out


# --------------------------- plain-JAX reference ------------------------------

def ref_forward_nhwc(x, params, stride):
    conv = lambda a, wgt, s, pad: jax.lax.conv_general_dilated(
        a, wgt, (s, s), pad, dimension_numbers=("NHWC", "HWIO", "NHWC"),
        precision=jax.lax.Precision.HIGHEST)

    def bn(y, gamma, beta):
        mean = jnp.mean(y, axis=(0, 1, 2))
        var = jnp.mean((y - mean) ** 2, axis=(0, 1, 2))
        return gamma * (y - mean) / jnp.sqrt(var + EPS) + beta

    cin = x.shape[-1]
    cout = params["w1"].shape[-1]
    h = conv(x, params["w1"], stride, [(1, 1), (1, 1)])
    h = jax.nn.relu(bn(h, params["gamma1"], params["beta1"]))
    h = conv(h, params["w2"], 1, [(1, 1), (1, 1)])
    h = bn(h, params["gamma2"], params["beta2"])
    if stride != 1 or cin != cout:
        sc = conv(x, params["wsc"], stride, [(0, 0), (0, 0)])
        sc = bn(sc, params["gamma_sc"], params["beta_sc"])
    else:
        sc = x
    return jax.nn.relu(h + sc)


# ----------------------------------- main -------------------------------------

if __name__ == "__main__":
    # ResBlock(in_channels=4, out_channels=8, stride=2) on x of shape (2, 4, 16, 16) NCHW
    N, CIN, H, W = 2, 4, 16, 16
    COUT, STRIDE = 8, 2

    key = jax.random.PRNGKey(0)
    k1, k2, k3, kx = jax.random.split(key, 4)

    params = {
        # conv weights stored HWIO (== PyTorch OIHW transposed)
        "w1": 0.1 * jax.random.normal(k1, (3, 3, CIN, COUT), jnp.float32),
        "w2": 0.1 * jax.random.normal(k2, (3, 3, COUT, COUT), jnp.float32),
        "wsc": 0.1 * jax.random.normal(k3, (1, 1, CIN, COUT), jnp.float32),
        # BatchNorm affine params (deterministic, non-trivial)
        "gamma1": 1.0 + 0.1 * jnp.arange(COUT, dtype=jnp.float32),
        "beta1": 0.05 * jnp.arange(COUT, dtype=jnp.float32),
        "gamma2": 1.0 - 0.05 * jnp.arange(COUT, dtype=jnp.float32),
        "beta2": -0.03 * jnp.arange(COUT, dtype=jnp.float32),
        "gamma_sc": 0.9 + 0.02 * jnp.arange(COUT, dtype=jnp.float32),
        "beta_sc": 0.01 * jnp.arange(COUT, dtype=jnp.float32),
    }

    x_nchw = jax.random.normal(kx, (N, CIN, H, W), jnp.float32)
    x_nhwc = jnp.transpose(x_nchw, (0, 2, 3, 1))  # NCHW -> NHWC for the kernel

    fwd = jax.jit(functools.partial(resblock_forward_nhwc, stride=STRIDE))
    out_nhwc = jax.block_until_ready(fwd(x_nhwc, params))

    ref_nhwc = jax.block_until_ready(ref_forward_nhwc(x_nhwc, params, STRIDE))
    err = float(jnp.max(jnp.abs(out_nhwc - ref_nhwc)))
    # bf16 MXU operands (f32 accumulation) -> slightly looser tolerance than pure f32.
    if not np.allclose(np.asarray(out_nhwc), np.asarray(ref_nhwc), atol=5e-2, rtol=5e-2):
        raise AssertionError(f"Pallas ResBlock mismatch, max abs err = {err}")

    # PyTorch layout if needed: jnp.transpose(out_nhwc, (0, 3, 1, 2)) -> (2, 8, 8, 8)
    print("KERNEL_OK")
</pallas_src>

<mosaic_0001>
module attributes {stable_mosaic.version = 11 : i64} {
  func.func @_resblock_kernel(%arg0: i32, %arg1: memref<320x1xf32, #tpu.memory_space<vmem>>, %arg2: memref<320x36xbf16, #tpu.memory_space<vmem>>, %arg3: memref<36x16xbf16, #tpu.memory_space<vmem>>, %arg4: memref<72x8xbf16, #tpu.memory_space<vmem>>, %arg5: memref<6x8xf32, #tpu.memory_space<vmem>>, %arg6: memref<320x8xf32, #tpu.memory_space<vmem>>, %arg7: memref<368x8xf32, #tpu.memory_space<vmem>>, %arg8: memref<320x8xf32, #tpu.memory_space<vmem>>) attributes {dimension_semantics = [#tpu.dimension_semantics<arbitrary>], iteration_bounds = array<i64: 1>, scalar_prefetch = 0 : i64, scratch_operands = 2 : i64, tpu.core_type = #tpu.core_type<tc>, window_params = [{pipeline_mode = #tpu.pipeline_mode<synchronous>, transform_indices = @transform_0, window_bounds = array<i64: 320, 1>}, {pipeline_mode = #tpu.pipeline_mode<synchronous>, transform_indices = @transform_1, window_bounds = array<i64: 320, 36>}, {pipeline_mode = #tpu.pipeline_mode<synchronous>, transform_indices = @transform_2, window_bounds = array<i64: 36, 16>}, {pipeline_mode = #tpu.pipeline_mode<synchronous>, transform_indices = @transform_3, window_bounds = array<i64: 72, 8>}, {pipeline_mode = #tpu.pipeline_mode<synchronous>, transform_indices = @transform_4, window_bounds = array<i64: 6, 8>}, {pipeline_mode = #tpu.pipeline_mode<synchronous>, transform_indices = @transform_5, window_bounds = array<i64: 320, 8>}]} {
    %c0 = arith.constant 0 : index
    %c0_0 = arith.constant 0 : index
    %0 = vector.load %arg1[%c0, %c0_0] : memref<320x1xf32, #tpu.memory_space<vmem>>, vector<320x1xf32>
    %c0_1 = arith.constant 0 : index
    %c0_2 = arith.constant 0 : index
    %1 = vector.load %arg2[%c0_1, %c0_2] : memref<320x36xbf16, #tpu.memory_space<vmem>>, vector<320x36xbf16>
    %c0_3 = arith.constant 0 : index
    %c0_4 = arith.constant 0 : index
    %2 = vector.load %arg3[%c0_3, %c0_4] : memref<36x16xbf16, #tpu.memory_space<vmem>>, vector<36x16xbf16>
    %cst = arith.constant dense<0.000000e+00> : vector<320x16xf32>
    %3 = tpu.matmul %1, %2, %cst {dimension_numbers = #tpu.dot_dimension_numbers<[1], [0], [0], [1], [0, 0, 1, 1], [], []>} : vector<320x36xbf16>, vector<36x16xbf16>, vector<320x16xf32> -> vector<320x16xf32>
    %4 = vector.extract_strided_slice %3 {offsets = [0, 0], sizes = [320, 8], strides = [1, 1]} : vector<320x16xf32> to vector<320x8xf32>
    %c0_5 = arith.constant 0 : index
    %c0_6 = arith.constant 0 : index
    %5 = vector.load %arg5[%c0_5, %c0_6] : memref<6x8xf32, #tpu.memory_space<vmem>>, vector<1x8xf32>
    %c1 = arith.constant 1 : index
    %c0_7 = arith.constant 0 : index
    %6 = vector.load %arg5[%c1, %c0_7] : memref<6x8xf32, #tpu.memory_space<vmem>>, vector<1x8xf32>
    %cst_8 = arith.constant dense<0.000000e+00> : vector<8xf32>
    %7 = vector.multi_reduction <add>, %4, %cst_8 [0] : vector<320x8xf32> to vector<8xf32>
    %8 = vector.shape_cast %7 : vector<8xf32> to vector<1x8xf32>
    %cst_9 = arith.constant 7.812500e-03 : f32
    %9 = vector.broadcast %cst_9 : f32 to vector<1x8xf32>
    %10 = arith.mulf %8, %9 : vector<1x8xf32>
    %11 = vector.broadcast %10 : vector<1x8xf32> to vector<320x8xf32>
    %12 = arith.subf %4, %11 : vector<320x8xf32>
    %13 = vector.broadcast %0 : vector<320x1xf32> to vector<320x8xf32>
    %14 = arith.mulf %12, %13 : vector<320x8xf32>
    %15 = arith.mulf %14, %14 : vector<320x8xf32>
    %cst_10 = arith.constant dense<0.000000e+00> : vector<8xf32>
    %16 = vector.multi_reduction <add>, %15, %cst_10 [0] : vector<320x8xf32> to vector<8xf32>
    %17 = vector.shape_cast %16 : vector<8xf32> to vector<1x8xf32>
    %cst_11 = arith.constant 7.812500e-03 : f32
    %18 = vector.broadcast %cst_11 : f32 to vector<1x8xf32>
    %19 = arith.mulf %17, %18 : vector<1x8xf32>
    %cst_12 = arith.constant 9.99999974E-6 : f32
    %20 = vector.broadcast %cst_12 : f32 to vector<1x8xf32>
    %21 = arith.addf %19, %20 : vector<1x8xf32>
    %22 = math.rsqrt %21 : vector<1x8xf32>
    %23 = arith.mulf %5, %22 : vector<1x8xf32>
    %24 = arith.mulf %10, %23 : vector<1x8xf32>
    %25 = arith.subf %6, %24 : vector<1x8xf32>
    %26 = vector.broadcast %23 : vector<1x8xf32> to vector<320x8xf32>
    %27 = arith.mulf %4, %26 : vector<320x8xf32>
    %28 = vector.broadcast %25 : vector<1x8xf32> to vector<320x8xf32>
    %29 = arith.addf %27, %28 : vector<320x8xf32>
    %cst_13 = arith.constant 0.000000e+00 : f32
    %30 = vector.broadcast %cst_13 : f32 to vector<320x8xf32>
    %31 = arith.maximumf %29, %30 : vector<320x8xf32>
    %32 = vector.broadcast %0 : vector<320x1xf32> to vector<320x8xf32>
    %33 = arith.mulf %31, %32 : vector<320x8xf32>
    %34 = vector.extract_strided_slice %3 {offsets = [0, 8], sizes = [320, 8], strides = [1, 1]} : vector<320x16xf32> to vector<320x8xf32>
    %c4 = arith.constant 4 : index
    %c0_14 = arith.constant 0 : index
    %35 = vector.load %arg5[%c4, %c0_14] : memref<6x8xf32, #tpu.memory_space<vmem>>, vector<1x8xf32>
    %c5 = arith.constant 5 : index
    %c0_15 = arith.constant 0 : index
    %36 = vector.load %arg5[%c5, %c0_15] : memref<6x8xf32, #tpu.memory_space<vmem>>, vector<1x8xf32>
    %cst_16 = arith.constant dense<0.000000e+00> : vector<8xf32>
    %37 = vector.multi_reduction <add>, %34, %cst_16 [0] : vector<320x8xf32> to vector<8xf32>
    %38 = vector.shape_cast %37 : vector<8xf32> to vector<1x8xf32>
    %cst_17 = arith.constant 7.812500e-03 : f32
    %39 = vector.broadcast %cst_17 : f32 to vector<1x8xf32>
    %40 = arith.mulf %38, %39 : vector<1x8xf32>
    %41 = vector.broadcast %40 : vector<1x8xf32> to vector<320x8xf32>
    %42 = arith.subf %34, %41 : vector<320x8xf32>
    %43 = vector.broadcast %0 : vector<320x1xf32> to vector<320x8xf32>
    %44 = arith.mulf %42, %43 : vector<320x8xf32>
    %45 = arith.mulf %44, %44 : vector<320x8xf32>
    %cst_18 = arith.constant dense<0.000000e+00> : vector<8xf32>
    %46 = vector.multi_reduction <add>, %45, %cst_18 [0] : vector<320x8xf32> to vector<8xf32>
    %47 = vector.shape_cast %46 : vector<8xf32> to vector<1x8xf32>
    %cst_19 = arith.constant 7.812500e-03 : f32
    %48 = vector.broadcast %cst_19 : f32 to vector<1x8xf32>
    %49 = arith.mulf %47, %48 : vector<1x8xf32>
    %cst_20 = arith.constant 9.99999974E-6 : f32
    %50 = vector.broadcast %cst_20 : f32 to vector<1x8xf32>
    %51 = arith.addf %49, %50 : vector<1x8xf32>
    %52 = math.rsqrt %51 : vector<1x8xf32>
    %53 = arith.mulf %35, %52 : vector<1x8xf32>
    %54 = arith.mulf %40, %53 : vector<1x8xf32>
    %55 = arith.subf %36, %54 : vector<1x8xf32>
    %56 = vector.broadcast %53 : vector<1x8xf32> to vector<320x8xf32>
    %57 = arith.mulf %34, %56 : vector<320x8xf32>
    %58 = vector.broadcast %55 : vector<1x8xf32> to vector<320x8xf32>
    %59 = arith.addf %57, %58 : vector<320x8xf32>
    %c0_21 = arith.constant 0 : index
    %c0_22 = arith.constant 0 : index
    %60 = vector.load %arg8[%c0_21, %c0_22] : memref<320x8xf32, #tpu.memory_space<vmem>>, vector<320x8xf32>
    tpu.vector_store %arg8[%c0_21, %c0_22], %59 {strides = array<i32>} : memref<320x8xf32, #tpu.memory_space<vmem>>, vector<320x8xf32>,
    %cst_23 = arith.constant 0.000000e+00 : f32
    %61 = vector.broadcast %cst_23 : f32 to vector<24x8xf32>
    %c0_24 = arith.constant 0 : index
    %c0_25 = arith.constant 0 : index
    %62 = vector.load %arg7[%c0_24, %c0_25] : memref<368x8xf32, #tpu.memory_space<vmem>>, vector<24x8xf32>
    tpu.vector_store %arg7[%c0_24, %c0_25], %61 {strides = array<i32>} : memref<368x8xf32, #tpu.memory_space<vmem>>, vector<24x8xf32>,
    %c344 = arith.constant 344 : index
    %c0_26 = arith.constant 0 : index
    %63 = vector.load %arg7[%c344, %c0_26] : memref<368x8xf32, #tpu.memory_space<vmem>>, vector<24x8xf32>
    tpu.vector_store %arg7[%c344, %c0_26], %61 {strides = array<i32>} : memref<368x8xf32, #tpu.memory_space<vmem>>, vector<24x8xf32>,
    %c24 = arith.constant 24 : index
    %c0_27 = arith.constant 0 : index
    %64 = vector.load %arg7[%c24, %c0_27] : memref<368x8xf32, #tpu.memory_space<vmem>>, vector<320x8xf32>
    tpu.vector_store %arg7[%c24, %c0_27], %33 {strides = array<i32>} : memref<368x8xf32, #tpu.memory_space<vmem>>, vector<320x8xf32>,
    %c7 = arith.constant 7 : index
    %c0_28 = arith.constant 0 : index
    %65 = vector.load %arg7[%c7, %c0_28] : memref<368x8xf32, #tpu.memory_space<vmem>>, vector<320x8xf32>
    %c8 = arith.constant 8 : index
    %c0_29 = arith.constant 0 : index
    %66 = vector.load %arg7[%c8, %c0_29] : memref<368x8xf32, #tpu.memory_space<vmem>>, vector<320x8xf32>
    %c9 = arith.constant 9 : index
    %c0_30 = arith.constant 0 : index
    %67 = vector.load %arg7[%c9, %c0_30] : memref<368x8xf32, #tpu.memory_space<vmem>>, vector<320x8xf32>
    %c23 = arith.constant 23 : index
    %c0_31 = arith.constant 0 : index
    %68 = vector.load %arg7[%c23, %c0_31] : memref<368x8xf32, #tpu.memory_space<vmem>>, vector<320x8xf32>
    %c24_32 = arith.constant 24 : index
    %c0_33 = arith.constant 0 : index
    %69 = vector.load %arg7[%c24_32, %c0_33] : memref<368x8xf32, #tpu.memory_space<vmem>>, vector<320x8xf32>
    %c25 = arith.constant 25 : index
    %c0_34 = arith.constant 0 : index
    %70 = vector.load %arg7[%c25, %c0_34] : memref<368x8xf32, #tpu.memory_space<vmem>>, vector<320x8xf32>
    %c39 = arith.constant 39 : index
    %c0_35 = arith.constant 0 : index
    %71 = vector.load %arg7[%c39, %c0_35] : memref<368x8xf32, #tpu.memory_space<vmem>>, vector<320x8xf32>
    %c40 = arith.constant 40 : index
    %c0_36 = arith.constant 0 : index
    %72 = vector.load %arg7[%c40, %c0_36] : memref<368x8xf32, #tpu.memory_space<vmem>>, vector<320x8xf32>
    %c41 = arith.constant 41 : index
    %c0_37 = arith.constant 0 : index
    %73 = vector.load %arg7[%c41, %c0_37] : memref<368x8xf32, #tpu.memory_space<vmem>>, vector<320x8xf32>
    %74 = tpu.concatenate %65, %66, %67, %68, %69, %70, %71, %72, %73 in 1 : vector<320x8xf32>, vector<320x8xf32>, vector<320x8xf32>, vector<320x8xf32>, vector<320x8xf32>, vector<320x8xf32>, vector<320x8xf32>, vector<320x8xf32>, vector<320x8xf32> -> vector<320x72xf32>
    %75 = arith.truncf %74 : vector<320x72xf32> to vector<320x72xbf16>
    %c0_38 = arith.constant 0 : index
    %c0_39 = arith.constant 0 : index
    %76 = vector.load %arg4[%c0_38, %c0_39] : memref<72x8xbf16, #tpu.memory_space<vmem>>, vector<72x8xbf16>
    %cst_40 = arith.constant dense<0.000000e+00> : vector<320x8xf32>
    %77 = tpu.matmul %75, %76, %cst_40 {dimension_numbers = #tpu.dot_dimension_numbers<[1], [0], [0], [1], [0, 0, 1, 1], [], []>} : vector<320x72xbf16>, vector<72x8xbf16>, vector<320x8xf32> -> vector<320x8xf32>
    %c2 = arith.constant 2 : index
    %c0_41 = arith.constant 0 : index
    %78 = vector.load %arg5[%c2, %c0_41] : memref<6x8xf32, #tpu.memory_space<vmem>>, vector<1x8xf32>
    %c3 = arith.constant 3 : index
    %c0_42 = arith.constant 0 : index
    %79 = vector.load %arg5[%c3, %c0_42] : memref<6x8xf32, #tpu.memory_space<vmem>>, vector<1x8xf32>
    %80 = vector.broadcast %0 : vector<320x1xf32> to vector<320x8xf32>
    %81 = arith.mulf %77, %80 : vector<320x8xf32>
    %cst_43 = arith.constant dense<0.000000e+00> : vector<8xf32>
    %82 = vector.multi_reduction <add>, %81, %cst_43 [0] : vector<320x8xf32> to vector<8xf32>
    %83 = vector.shape_cast %82 : vector<8xf32> to vector<1x8xf32>
    %cst_44 = arith.constant 7.812500e-03 : f32
    %84 = vector.broadcast %cst_44 : f32 to vector<1x8xf32>
    %85 = arith.mulf %83, %84 : vector<1x8xf32>
    %86 = vector.broadcast %85 : vector<1x8xf32> to vector<320x8xf32>
    %87 = arith.subf %77, %86 : vector<320x8xf32>
    %88 = vector.broadcast %0 : vector<320x1xf32> to vector<320x8xf32>
    %89 = arith.mulf %87, %88 : vector<320x8xf32>
    %90 = arith.mulf %89, %89 : vector<320x8xf32>
    %cst_45 = arith.constant dense<0.000000e+00> : vector<8xf32>
    %91 = vector.multi_reduction <add>, %90, %cst_45 [0] : vector<320x8xf32> to vector<8xf32>
    %92 = vector.shape_cast %91 : vector<8xf32> to vector<1x8xf32>
    %cst_46 = arith.constant 7.812500e-03 : f32
    %93 = vector.broadcast %cst_46 : f32 to vector<1x8xf32>
    %94 = arith.mulf %92, %93 : vector<1x8xf32>
    %cst_47 = arith.constant 9.99999974E-6 : f32
    %95 = vector.broadcast %cst_47 : f32 to vector<1x8xf32>
    %96 = arith.addf %94, %95 : vector<1x8xf32>
    %97 = math.rsqrt %96 : vector<1x8xf32>
    %98 = arith.mulf %78, %97 : vector<1x8xf32>
    %99 = arith.mulf %85, %98 : vector<1x8xf32>
    %100 = arith.subf %79, %99 : vector<1x8xf32>
    %101 = vector.broadcast %98 : vector<1x8xf32> to vector<320x8xf32>
    %102 = arith.mulf %77, %101 : vector<320x8xf32>
    %103 = vector.broadcast %100 : vector<1x8xf32> to vector<320x8xf32>
    %104 = arith.addf %102, %103 : vector<320x8xf32>
    %c0_48 = arith.constant 0 : index
    %c0_49 = arith.constant 0 : index
    %105 = vector.load %arg8[%c0_48, %c0_49] : memref<320x8xf32, #tpu.memory_space<vmem>>, vector<320x8xf32>
    %106 = arith.addf %104, %105 : vector<320x8xf32>
    %cst_50 = arith.constant 0.000000e+00 : f32
    %107 = vector.broadcast %cst_50 : f32 to vector<320x8xf32>
    %108 = arith.maximumf %106, %107 : vector<320x8xf32>
    %c0_51 = arith.constant 0 : index
    %c0_52 = arith.constant 0 : index
    %109 = vector.load %arg6[%c0_51, %c0_52] : memref<320x8xf32, #tpu.memory_space<vmem>>, vector<320x8xf32>
    tpu.vector_store %arg6[%c0_51, %c0_52], %108 {strides = array<i32>} : memref<320x8xf32, #tpu.memory_space<vmem>>, vector<320x8xf32>,
    return
  }
  func.func @transform_0(%arg0: i32) -> (i32, i32) {
    %c0_i32 = arith.constant 0 : i32
    %c0_i32_0 = arith.constant 0 : i32
    %c0_i32_1 = arith.constant 0 : i32
    return %c0_i32, %c0_i32_0 : i32, i32
  }
  func.func @transform_1(%arg0: i32) -> (i32, i32) {
    %c0_i32 = arith.constant 0 : i32
    %c0_i32_0 = arith.constant 0 : i32
    %c0_i32_1 = arith.constant 0 : i32
    return %c0_i32, %c0_i32_0 : i32, i32
  }
  func.func @transform_2(%arg0: i32) -> (i32, i32) {
    %c0_i32 = arith.constant 0 : i32
    %c0_i32_0 = arith.constant 0 : i32
    %c0_i32_1 = arith.constant 0 : i32
    return %c0_i32, %c0_i32_0 : i32, i32
  }
  func.func @transform_3(%arg0: i32) -> (i32, i32) {
    %c0_i32 = arith.constant 0 : i32
    %c0_i32_0 = arith.constant 0 : i32
    %c0_i32_1 = arith.constant 0 : i32
    return %c0_i32, %c0_i32_0 : i32, i32
  }
  func.func @transform_4(%arg0: i32) -> (i32, i32) {
    %c0_i32 = arith.constant 0 : i32
    %c0_i32_0 = arith.constant 0 : i32
    %c0_i32_1 = arith.constant 0 : i32
    return %c0_i32, %c0_i32_0 : i32, i32
  }
  func.func @transform_5(%arg0: i32) -> (i32, i32) {
    %c0_i32 = arith.constant 0 : i32
    %c0_i32_0 = arith.constant 0 : i32
    %c0_i32_1 = arith.constant 0 : i32
    return %c0_i32, %c0_i32_0 : i32, i32
  }
}

</mosaic_0001>

<llo_original>
// kernel: resblock_forward_nhwc.1
$region0: #{resblock_forward_nhwc.1}
  #allocation0 [shape = 'u32[]', space=smem, size = 0x4, offset = 0x4, fixed_abs, tag = 'smem constant byte address 0x4 - core index']
  #allocation1 [shape = 'u32[144,128]{1,0:T(1,128)}', space=vmem, size = 0x12000, scoped, tag = 'internal scratch']
  #allocation2 [shape = 'f32[368,8]{1,0:T(8,128)}', space=vmem, size = 0x2e000, scoped, tag = 'scratch operand']
  #allocation3 [shape = 'f32[320,8]{1,0:T(8,128)}', space=vmem, size = 0x28000, scoped, tag = 'scratch operand']
  %s0 = inlined_call_operand.vmem [shape: f32[320,1], index: 0, kind: input, shape index: {}]
  %s1 = inlined_call_operand.vmem [shape: bf16[320,36], index: 1, kind: input, shape index: {}]
  %s2 = inlined_call_operand.vmem [shape: bf16[36,16], index: 2, kind: input, shape index: {}]
  %s3 = inlined_call_operand.vmem [shape: bf16[72,8], index: 3, kind: input, shape index: {}]
  %s4 = inlined_call_operand.vmem [shape: f32[6,8], index: 4, kind: input, shape index: {}]
  %s5 = inlined_call_operand.vmem [shape: f32[320,8], index: 5, kind: output, shape index: {}]
  %s6 = sld [smem:[#allocation0]]
  $region30: #{resblock_forward_nhwc.1} parent=0
    _
  %s8 = ssub.s32 1, %s6
  %s9 = scalar_select 0, %s8, %s6
  // Predicated region
  $region2: #{resblock_forward_nhwc.1} parent=0 // pred_check
    _
  $region3: #{resblock_forward_nhwc.1} parent=0 // pred_check_branch
    %11 = sbr.rel (0) target = $region5
  $region4: #{resblock_forward_nhwc.1} parent=0 // pred_region
    _
  $region5: #{resblock_forward_nhwc.1} parent=0 // pred_fallthru
    _
  // Predicated region
  $region6: #{resblock_forward_nhwc.1} parent=0 // pred_check
    _
  $region7: #{resblock_forward_nhwc.1} parent=0 // pred_check_branch
    %13 = sbr.rel (0) target = $region9
  $region8: #{resblock_forward_nhwc.1} parent=0 // pred_region
    _
  $region9: #{resblock_forward_nhwc.1} parent=0 // pred_fallthru
    _
  // Predicated region
  $region10: #{resblock_forward_nhwc.1} parent=0 // pred_check
    _
  $region11: #{resblock_forward_nhwc.1} parent=0 // pred_check_branch
    %15 = sbr.rel (0) target = $region13
  $region12: #{resblock_forward_nhwc.1} parent=0 // pred_region
    _
  $region13: #{resblock_forward_nhwc.1} parent=0 // pred_fallthru
    _
  // Predicated region
  $region14: #{resblock_forward_nhwc.1} parent=0 // pred_check
    _
  $region15: #{resblock_forward_nhwc.1} parent=0 // pred_check_branch
    %17 = sbr.rel (0) target = $region17
  $region16: #{resblock_forward_nhwc.1} parent=0 // pred_region
    _
  $region17: #{resblock_forward_nhwc.1} parent=0 // pred_fallthru
    _
  // Predicated region
  $region18: #{resblock_forward_nhwc.1} parent=0 // pred_check
    _
  $region19: #{resblock_forward_nhwc.1} parent=0 // pred_check_branch
    %19 = sbr.rel (0) target = $region21
  $region20: #{resblock_forward_nhwc.1} parent=0 // pred_region
    _
  $region21: #{resblock_forward_nhwc.1} parent=0 // pred_fallthru
    _
  %v21 = vld [vmem:[%s0] sm:$0xff]
  %v22 = vld [vmem:[%s0 + $0x8] sm:$0xff]
  %v23 = vld [vmem:[%s0 + $0x10] sm:$0xff]
  %v24 = vld [vmem:[%s0 + $0x18] sm:$0xff]
  %v25 = vld [vmem:[%s0 + $0x20] sm:$0xff]
  %v26 = vld [vmem:[%s0 + $0x28] sm:$0xff]
  %v27 = vld [vmem:[%s0 + $0x30] sm:$0xff]
  %v28 = vld [vmem:[%s0 + $0x38] sm:$0xff]
  %v29 = vld [vmem:[%s0 + $0x40] sm:$0xff]
  %v30 = vld [vmem:[%s0 + $0x48] sm:$0xff]
  %v31 = vld [vmem:[%s0 + $0x50] sm:$0xff]
  %v32 = vld [vmem:[%s0 + $0x58] sm:$0xff]
  %v33 = vld [vmem:[%s0 + $0x60] sm:$0xff]
  %v34 = vld [vmem:[%s0 + $0x68] sm:$0xff]
  %v35 = vld [vmem:[%s0 + $0x70] sm:$0xff]
  %v36 = vld [vmem:[%s0 + $0x78] sm:$0xff]
  %v37 = vld [vmem:[%s0 + $0x80] sm:$0xff]
  %v38 = vld [vmem:[%s0 + $0x88] sm:$0xff]
  %v39 = vld [vmem:[%s0 + $0x90] sm:$0xff]
  %v40 = vld [vmem:[%s0 + $0x98] sm:$0xff]
  %v41 = vld [vmem:[%s0 + $0xa0] sm:$0xff]
  %v42 = vld [vmem:[%s0 + $0xa8] sm:$0xff]
  %v43 = vld [vmem:[%s0 + $0xb0] sm:$0xff]
  %v44 = vld [vmem:[%s0 + $0xb8] sm:$0xff]
  %v45 = vld [vmem:[%s0 + $0xc0] sm:$0xff]
  %v46 = vld [vmem:[%s0 + $0xc8] sm:$0xff]
  %v47 = vld [vmem:[%s0 + $0xd0] sm:$0xff]
  %v48 = vld [vmem:[%s0 + $0xd8] sm:$0xff]
  %v49 = vld [vmem:[%s0 + $0xe0] sm:$0xff]
  %v50 = vld [vmem:[%s0 + $0xe8] sm:$0xff]
  %v51 = vld [vmem:[%s0 + $0xf0] sm:$0xff]
  %v52 = vld [vmem:[%s0 + $0xf8] sm:$0xff]
  %v53 = vld [vmem:[%s0 + $0x100] sm:$0xff]
  %v54 = vld [vmem:[%s0 + $0x108] sm:$0xff]
  %v55 = vld [vmem:[%s0 + $0x110] sm:$0xff]
  %v56 = vld [vmem:[%s0 + $0x118] sm:$0xff]
  %v57 = vld [vmem:[%s0 + $0x120] sm:$0xff]
  %v58 = vld [vmem:[%s0 + $0x128] sm:$0xff]
  %v59 = vld [vmem:[%s0 + $0x130] sm:$0xff]
  %v60 = vld [vmem:[%s0 + $0x138] sm:$0xff]
  %v61 = vld [vmem:[%s1] sm:$0xf]
  %v62 = vld [vmem:[%s1 + $0x4] sm:$0xf]
  %v63 = vld [vmem:[%s1 + $0x8] sm:$0xf]
  %v64 = vld [vmem:[%s1 + $0xc] sm:$0xf]
  %v65 = vld [vmem:[%s1 + $0x10] sm:$0xf]
  %v66 = vld [vmem:[%s1 + $0x14] sm:$0xf]
  %v67 = vld [vmem:[%s1 + $0x18] sm:$0xf]
  %v68 = vld [vmem:[%s1 + $0x1c] sm:$0xf]
  %v69 = vld [vmem:[%s1 + $0x20] sm:$0xf]
  %v70 = vld [vmem:[%s1 + $0x24] sm:$0xf]
  %v71 = vld [vmem:[%s1 + $0x28] sm:$0xf]
  %v72 = vld [vmem:[%s1 + $0x2c] sm:$0xf]
  %v73 = vld [vmem:[%s1 + $0x30] sm:$0xf]
  %v74 = vld [vmem:[%s1 + $0x34] sm:$0xf]
  %v75 = vld [vmem:[%s1 + $0x38] sm:$0xf]
  %v76 = vld [vmem:[%s1 + $0x3c] sm:$0xf]
  %v77 = vld [vmem:[%s1 + $0x40] sm:$0xf]
  %v78 = vld [vmem:[%s1 + $0x44] sm:$0xf]
  %v79 = vld [vmem:[%s1 + $0x48] sm:$0xf]
  %v80 = vld [vmem:[%s1 + $0x4c] sm:$0xf]
  %v81 = vld [vmem:[%s1 + $0x50] sm:$0xf]
  %v82 = vld [vmem:[%s1 + $0x54] sm:$0xf]
  %v83 = vld [vmem:[%s1 + $0x58] sm:$0xf]
  %v84 = vld [vmem:[%s1 + $0x5c] sm:$0xf]
  %v85 = vld [vmem:[%s1 + $0x60] sm:$0xf]
  %v86 = vld [vmem:[%s1 + $0x64] sm:$0xf]
  %v87 = vld [vmem:[%s1 + $0x68] sm:$0xf]
  %v88 = vld [vmem:[%s1 + $0x6c] sm:$0xf]
  %v89 = vld [vmem:[%s1 + $0x70] sm:$0xf]
  %v90 = vld [vmem:[%s1 + $0x74] sm:$0xf]
  %v91 = vld [vmem:[%s1 + $0x78] sm:$0xf]
  %v92 = vld [vmem:[%s1 + $0x7c] sm:$0xf]
  %v93 = vld [vmem:[%s1 + $0x80] sm:$0xf]
  %v94 = vld [vmem:[%s1 + $0x84] sm:$0xf]
  %v95 = vld [vmem:[%s1 + $0x88] sm:$0xf]
  %v96 = vld [vmem:[%s1 + $0x8c] sm:$0xf]
  %v97 = vld [vmem:[%s1 + $0x90] sm:$0xf]
  %v98 = vld [vmem:[%s1 + $0x94] sm:$0xf]
  %v99 = vld [vmem:[%s1 + $0x98] sm:$0xf]
  %v100 = vld [vmem:[%s1 + $0x9c] sm:$0xf]
  %v101 = vld [vmem:[%s2] sm:$0xf]
  %v102 = vld [vmem:[%s2 + $0x4] sm:$0xf]
  %v103 = vld [vmem:[%s2 + $0x8] sm:$0xf]
  %v104 = vld [vmem:[%s2 + $0xc] sm:$0xf]
  %v105 = vld [vmem:[%s2 + $0x10] sm:$0x3]
  %v146 = vunpack.c.l.b16 %v61
  %v147 = vunpack.c.l.b16 %v62
  %v148 = vunpack.c.l.b16 %v63
  %v149 = vunpack.c.l.b16 %v64
  %v150 = vunpack.c.l.b16 %v65
  %v151 = vunpack.c.l.b16 %v66
  %v152 = vunpack.c.l.b16 %v67
  %v153 = vunpack.c.l.b16 %v68
  %v154 = vunpack.c.l.b16 %v69
  %v155 = vunpack.c.l.b16 %v70
  %v156 = vunpack.c.l.b16 %v71
  %v157 = vunpack.c.l.b16 %v72
  %v158 = vunpack.c.l.b16 %v73
  %v159 = vunpack.c.l.b16 %v74
  %v160 = vunpack.c.l.b16 %v75
  %v161 = vunpack.c.l.b16 %v76
  %v162 = vunpack.c.l.b16 %v77
  %v163 = vunpack.c.l.b16 %v78
  %v164 = vunpack.c.l.b16 %v79
  %v165 = vunpack.c.l.b16 %v80
  %v166 = vunpack.c.l.b16 %v81
  %v167 = vunpack.c.l.b16 %v82
  %v168 = vunpack.c.l.b16 %v83
  %v169 = vunpack.c.l.b16 %v84
  %v170 = vunpack.c.l.b16 %v85
  %v171 = vunpack.c.l.b16 %v86
  %v172 = vunpack.c.l.b16 %v87
  %v173 = vunpack.c.l.b16 %v88
  %v174 = vunpack.c.l.b16 %v89
  %v175 = vunpack.c.l.b16 %v90
  %v176 = vunpack.c.l.b16 %v91
  %v177 = vunpack.c.l.b16 %v92
  %v178 = vunpack.c.l.b16 %v93
  %v179 = vunpack.c.l.b16 %v94
  %v180 = vunpack.c.l.b16 %v95
  %v181 = vunpack.c.l.b16 %v96
  %v182 = vunpack.c.l.b16 %v97
  %v183 = vunpack.c.l.b16 %v98
  %v184 = vunpack.c.l.b16 %v99
  %v185 = vunpack.c.l.b16 %v100
  %v186 = vpack.c.b16 %v147, %v146
  %v187 = vpack.c.b16 %v149, %v148
  %v188 = vpack.c.b16 %v151, %v150
  %v189 = vpack.c.b16 %v153, %v152
  %v190 = vpack.c.b16 %v155, %v154
  %v191 = vpack.c.b16 %v157, %v156
  %v192 = vpack.c.b16 %v159, %v158
  %v193 = vpack.c.b16 %v161, %v160
  %v194 = vpack.c.b16 %v163, %v162
  %v195 = vpack.c.b16 %v165, %v164
  %v196 = vpack.c.b16 %v167, %v166
  %v197 = vpack.c.b16 %v169, %v168
  %v198 = vpack.c.b16 %v171, %v170
  %v199 = vpack.c.b16 %v173, %v172
  %v200 = vpack.c.b16 %v175, %v174
  %v201 = vpack.c.b16 %v177, %v176
  %v202 = vpack.c.b16 %v179, %v178
  %v203 = vpack.c.b16 %v181, %v180
  %v204 = vpack.c.b16 %v183, %v182
  %v205 = vpack.c.b16 %v185, %v184
  %v211 = vunpack.c.l.b16 %v101
  %v212 = vunpack.c.l.b16 %v102
  %v213 = vunpack.c.l.b16 %v103
  %v214 = vunpack.c.l.b16 %v104
  %v215 = vunpack.c.l.b16 %v105
  %v216 = vpack.c.b16 %v212, %v211
  %v217 = vpack.c.b16 %v214, %v213
  %v218 = vpack.c.b16 %v215, %v215
  %vm221 = vcmask 293888
  %v223 = vsel %vm221, %v186, 0
  %v226 = vsel %vm221, %v187, 0
  %v229 = vsel %vm221, %v188, 0
  %v232 = vsel %vm221, %v189, 0
  %v235 = vsel %vm221, %v190, 0
  %v238 = vsel %vm221, %v191, 0
  %v241 = vsel %vm221, %v192, 0
  %v244 = vsel %vm221, %v193, 0
  %v247 = vsel %vm221, %v194, 0
  %v250 = vsel %vm221, %v195, 0
  %v253 = vsel %vm221, %v196, 0
  %v256 = vsel %vm221, %v197, 0
  %v259 = vsel %vm221, %v198, 0
  %v262 = vsel %vm221, %v199, 0
  %v265 = vsel %vm221, %v200, 0
  %v268 = vsel %vm221, %v201, 0
  %v271 = vsel %vm221, %v202, 0
  %v274 = vsel %vm221, %v203, 0
  %v277 = vsel %vm221, %v204, 0
  %v280 = vsel %vm221, %v205, 0
  %vm282 = vcmask 1041408
  %v284 = vsel %vm282, %v218, 0
  %286 = vmatprep.subr.bf16.mxu0 0
  %287 = vmatpush1.bf16.msra.mxu0 0
  %288 = vmatprep.subr.bf16.mxu0 0
  %289 = vmatpush1.bf16.msra.mxu0 0
  %290 = vmatprep.subr.bf16.mxu0 0
  %291 = vmatpush1.bf16.msra.mxu0 0
  %292 = vmatprep.subr.bf16.mxu0 0
  %293 = vmatpush1.bf16.msra.mxu0 0
  %294 = vmatprep.subr.bf16.mxu0 0
  %295 = vmatpush1.bf16.msra.mxu0 0
  %296 = vmatprep.subr.bf16.mxu0 0
  %297 = vmatpush1.bf16.msra.mxu0 %v284
  %298 = vmatprep.subr.bf16.mxu0 0
  %299 = vmatpush1.bf16.msra.mxu0 %v217
  %300 = vmatprep.subr.bf16.mxu0 0
  %301 = vmatpush1.bf16.msra.mxu0 %v216
  %302 = vmatprep.subr.bf16.mxu0 0
  %303 = vmatpush2.bf16.msra.mxu0 0
  %304 = vmatprep.subr.bf16.mxu0 0
  %305 = vmatpush2.bf16.msra.mxu0 0
  %306 = vmatprep.subr.bf16.mxu0 0
  %307 = vmatpush2.bf16.msra.mxu0 0
  %308 = vmatprep.subr.bf16.mxu0 0
  %309 = vmatpush2.bf16.msra.mxu0 0
  %310 = vmatprep.subr.bf16.mxu0 0
  %311 = vmatpush2.bf16.msra.mxu0 0
  %312 = vmatprep.subr.bf16.mxu0 0
  %313 = vmatpush2.bf16.msra.mxu0 0
  %314 = vmatprep.subr.bf16.mxu0 0
  %315 = vmatpush2.bf16.msra.mxu0 0
  %316 = vmatprep.subr.bf16.mxu0 0
  %317 = vmatpush2.bf16.msra.mxu0 0
  %318 = vmatprep.mubr.bf16.mxu0 0
  %319 = vmatmul.mubr.bf16.gmra.mxu0 %v223
  %v320 = vpop.f32.mrf.mxu0
  %v321 = vadd.f32 0.0, %v320
  %v322 = vpop.f32.mrf.mxu0
  %v323 = vpop.f32.mrf.mxu0
  %v324 = vadd.f32 0.0, %v323
  %v325 = vpop.f32.mrf.mxu0
  %326 = vmatprep.mubr.bf16.mxu0 0
  %327 = vmatmul.mubr.bf16.gmra.mxu0 %v226
  %v328 = vpop.f32.mrf.mxu0
  %v329 = vadd.f32 0.0, %v328
  %v330 = vpop.f32.mrf.mxu0
  %v331 = vpop.f32.mrf.mxu0
  %v332 = vadd.f32 0.0, %v331
  %v333 = vpop.f32.mrf.mxu0
  %334 = vmatprep.mubr.bf16.mxu0 0
  %335 = vmatmul.mubr.bf16.gmra.mxu0 %v229
  %v336 = vpop.f32.mrf.mxu0
  %v337 = vadd.f32 0.0, %v336
  %v338 = vpop.f32.mrf.mxu0
  %v339 = vpop.f32.mrf.mxu0
  %v340 = vadd.f32 0.0, %v339
  %v341 = vpop.f32.mrf.mxu0
  %342 = vmatprep.mubr.bf16.mxu0 0
  %343 = vmatmul.mubr.bf16.gmra.mxu0 %v232
  %v344 = vpop.f32.mrf.mxu0
  %v345 = vadd.f32 0.0, %v344
  %v346 = vpop.f32.mrf.mxu0
  %v347 = vpop.f32.mrf.mxu0
  %v348 = vadd.f32 0.0, %v347
  %v349 = vpop.f32.mrf.mxu0
  %350 = vmatprep.mubr.bf16.mxu0 0
  %351 = vmatmul.mubr.bf16.gmra.mxu0 %v235
  %v352 = vpop.f32.mrf.mxu0
  %v353 = vadd.f32 0.0, %v352
  %v354 = vpop.f32.mrf.mxu0
  %v355 = vpop.f32.mrf.mxu0
  %v356 = vadd.f32 0.0, %v355
  %v357 = vpop.f32.mrf.mxu0
  %358 = vmatprep.mubr.bf16.mxu0 0
  %359 = vmatmul.mubr.bf16.gmra.mxu0 %v238
  %v360 = vpop.f32.mrf.mxu0
  %v361 = vadd.f32 0.0, %v360
  %v362 = vpop.f32.mrf.mxu0
  %v363 = vpop.f32.mrf.mxu0
  %v364 = vadd.f32 0.0, %v363
  %v365 = vpop.f32.mrf.mxu0
  %366 = vmatprep.mubr.bf16.mxu0 0
  %367 = vmatmul.mubr.bf16.gmra.mxu0 %v241
  %v368 = vpop.f32.mrf.mxu0
  %v369 = vadd.f32 0.0, %v368
  %v370 = vpop.f32.mrf.mxu0
  %v371 = vpop.f32.mrf.mxu0
  %v372 = vadd.f32 0.0, %v371
  %v373 = vpop.f32.mrf.mxu0
  %374 = vmatprep.mubr.bf16.mxu0 0
  %375 = vmatmul.mubr.bf16.gmra.mxu0 %v244
  %v376 = vpop.f32.mrf.mxu0
  %v377 = vadd.f32 0.0, %v376
  %v378 = vpop.f32.mrf.mxu0
  %v379 = vpop.f32.mrf.mxu0
  %v380 = vadd.f32 0.0, %v379
  %v381 = vpop.f32.mrf.mxu0
  %382 = vmatprep.mubr.bf16.mxu0 0
  %383 = vmatmul.mubr.bf16.gmra.mxu0 %v247
  %v384 = vpop.f32.mrf.mxu0
  %v385 = vadd.f32 0.0, %v384
  %v386 = vpop.f32.mrf.mxu0
  %v387 = vpop.f32.mrf.mxu0
  %v388 = vadd.f32 0.0, %v387
  %v389 = vpop.f32.mrf.mxu0
  %390 = vmatprep.mubr.bf16.mxu0 0
  %391 = vmatmul.mubr.bf16.gmra.mxu0 %v250
  %v392 = vpop.f32.mrf.mxu0
  %v393 = vadd.f32 0.0, %v392
  %v394 = vpop.f32.mrf.mxu0
  %v395 = vpop.f32.mrf.mxu0
  %v396 = vadd.f32 0.0, %v395
  %v397 = vpop.f32.mrf.mxu0
  %398 = vmatprep.mubr.bf16.mxu0 0
  %399 = vmatmul.mubr.bf16.gmra.mxu0 %v253
  %v400 = vpop.f32.mrf.mxu0
  %v401 = vadd.f32 0.0, %v400
  %v402 = vpop.f32.mrf.mxu0
  %v403 = vpop.f32.mrf.mxu0
  %v404 = vadd.f32 0.0, %v403
  %v405 = vpop.f32.mrf.mxu0
  %406 = vmatprep.mubr.bf16.mxu0 0
  %407 = vmatmul.mubr.bf16.gmra.mxu0 %v256
  %v408 = vpop.f32.mrf.mxu0
  %v409 = vadd.f32 0.0, %v408
  %v410 = vpop.f32.mrf.mxu0
  %v411 = vpop.f32.mrf.mxu0
  %v412 = vadd.f32 0.0, %v411
  %v413 = vpop.f32.mrf.mxu0
  %414 = vmatprep.mubr.bf16.mxu0 0
  %415 = vmatmul.mubr.bf16.gmra.mxu0 %v259
  %v416 = vpop.f32.mrf.mxu0
  %v417 = vadd.f32 0.0, %v416
  %v418 = vpop.f32.mrf.mxu0
  %v419 = vpop.f32.mrf.mxu0
  %v420 = vadd.f32 0.0, %v419
  %v421 = vpop.f32.mrf.mxu0
  %422 = vmatprep.mubr.bf16.mxu0 0
  %423 = vmatmul.mubr.bf16.gmra.mxu0 %v262
  %v424 = vpop.f32.mrf.mxu0
  %v425 = vadd.f32 0.0, %v424
  %v426 = vpop.f32.mrf.mxu0
  %v427 = vpop.f32.mrf.mxu0
  %v428 = vadd.f32 0.0, %v427
  %v429 = vpop.f32.mrf.mxu0
  %430 = vmatprep.mubr.bf16.mxu0 0
  %431 = vmatmul.mubr.bf16.gmra.mxu0 %v265
  %v432 = vpop.f32.mrf.mxu0
  %v433 = vadd.f32 0.0, %v432
  %v434 = vpop.f32.mrf.mxu0
  %v435 = vpop.f32.mrf.mxu0
  %v436 = vadd.f32 0.0, %v435
  %v437 = vpop.f32.mrf.mxu0
  %438 = vmatprep.mubr.bf16.mxu0 0
  %439 = vmatmul.mubr.bf16.gmra.mxu0 %v268
  %v440 = vpop.f32.mrf.mxu0
  %v441 = vadd.f32 0.0, %v440
  %v442 = vpop.f32.mrf.mxu0
  %v443 = vpop.f32.mrf.mxu0
  %v444 = vadd.f32 0.0, %v443
  %v445 = vpop.f32.mrf.mxu0
  %446 = vmatprep.mubr.bf16.mxu0 0
  %447 = vmatmul.mubr.bf16.gmra.mxu0 %v271
  %v448 = vpop.f32.mrf.mxu0
  %v449 = vadd.f32 0.0, %v448
  %v450 = vpop.f32.mrf.mxu0
  %v451 = vpop.f32.mrf.mxu0
  %v452 = vadd.f32 0.0, %v451
  %v453 = vpop.f32.mrf.mxu0
  %454 = vmatprep.mubr.bf16.mxu0 0
  %455 = vmatmul.mubr.bf16.gmra.mxu0 %v274
  %v456 = vpop.f32.mrf.mxu0
  %v457 = vadd.f32 0.0, %v456
  %v458 = vpop.f32.mrf.mxu0
  %v459 = vpop.f32.mrf.mxu0
  %v460 = vadd.f32 0.0, %v459
  %v461 = vpop.f32.mrf.mxu0
  %462 = vmatprep.mubr.bf16.mxu0 0
  %463 = vmatmul.mubr.bf16.gmra.mxu0 %v277
  %v464 = vpop.f32.mrf.mxu0
  %v465 = vadd.f32 0.0, %v464
  %v466 = vpop.f32.mrf.mxu0
  %v467 = vpop.f32.mrf.mxu0
  %v468 = vadd.f32 0.0, %v467
  %v469 = vpop.f32.mrf.mxu0
  %470 = vmatprep.mubr.bf16.mxu0 0
  %471 = vmatmul.mubr.bf16.gmra.mxu0 %v280
  %v472 = vpop.f32.mrf.mxu0
  %v473 = vadd.f32 0.0, %v472
  %v474 = vpop.f32.mrf.mxu0
  %v475 = vpop.f32.mrf.mxu0
  %v476 = vadd.f32 0.0, %v475
  %v477 = vpop.f32.mrf.mxu0
  %478 = vdwg.mxu0
  %v479 = vld [vmem:[%s4] sm:$0x1]
  %v480 = vld [vmem:[%s4 + $0x1] sm:$0x1]
  %vm481 = vcmask 64512
  %v482 = vsel %vm481, %v321, 0.0
  %v483 = vsel %vm481, %v324, 0.0
  %v484 = vadd.f32 %v482, %v483
  %v485 = vsel %vm481, %v329, 0.0
  %v486 = vadd.f32 %v484, %v485
  %v487 = vsel %vm481, %v332, 0.0
  %v488 = vadd.f32 %v486, %v487
  %v489 = vsel %vm481, %v337, 0.0
  %v490 = vadd.f32 %v488, %v489
  %v491 = vsel %vm481, %v340, 0.0
  %v492 = vadd.f32 %v490, %v491
  %v493 = vsel %vm481, %v345, 0.0
  %v494 = vadd.f32 %v492, %v493
  %v495 = vsel %vm481, %v348, 0.0
  %v496 = vadd.f32 %v494, %v495
  %v497 = vsel %vm481, %v353, 0.0
  %v498 = vadd.f32 %v496, %v497
  %v499 = vsel %vm481, %v356, 0.0
  %v500 = vadd.f32 %v498, %v499
  %v501 = vsel %vm481, %v361, 0.0
  %v502 = vadd.f32 %v500, %v501
  %v503 = vsel %vm481, %v364, 0.0
  %v504 = vadd.f32 %v502, %v503
  %v505 = vsel %vm481, %v369, 0.0
  %v506 = vadd.f32 %v504, %v505
  %v507 = vsel %vm481, %v372, 0.0
  %v508 = vadd.f32 %v506, %v507
  %v509 = vsel %vm481, %v377, 0.0
  %v510 = vadd.f32 %v508, %v509
  %v511 = vsel %vm481, %v380, 0.0
  %v512 = vadd.f32 %v510, %v511
  %v513 = vsel %vm481, %v385, 0.0
  %v514 = vadd.f32 %v512, %v513
  %v515 = vsel %vm481, %v388, 0.0
  %v516 = vadd.f32 %v514, %v515
  %v517 = vsel %vm481, %v393, 0.0
  %v518 = vadd.f32 %v516, %v517
  %v519 = vsel %vm481, %v396, 0.0
  %v520 = vadd.f32 %v518, %v519
  %v521 = vsel %vm481, %v401, 0.0
  %v522 = vadd.f32 %v520, %v521
  %v523 = vsel %vm481, %v404, 0.0
  %v524 = vadd.f32 %v522, %v523
  %v525 = vsel %vm481, %v409, 0.0
  %v526 = vadd.f32 %v524, %v525
  %v527 = vsel %vm481, %v412, 0.0
  %v528 = vadd.f32 %v526, %v527
  %v529 = vsel %vm481, %v417, 0.0
  %v530 = vadd.f32 %v528, %v529
  %v531 = vsel %vm481, %v420, 0.0
  %v532 = vadd.f32 %v530, %v531
  %v533 = vsel %vm481, %v425, 0.0
  %v534 = vadd.f32 %v532, %v533
  %v535 = vsel %vm481, %v428, 0.0
  %v536 = vadd.f32 %v534, %v535
  %v537 = vsel %vm481, %v433, 0.0
  %v538 = vadd.f32 %v536, %v537
  %v539 = vsel %vm481, %v436, 0.0
  %v540 = vadd.f32 %v538, %v539
  %v541 = vsel %vm481, %v441, 0.0
  %v542 = vadd.f32 %v540, %v541
  %v543 = vsel %vm481, %v444, 0.0
  %v544 = vadd.f32 %v542, %v543
  %v545 = vsel %vm481, %v449, 0.0
  %v546 = vadd.f32 %v544, %v545
  %v547 = vsel %vm481, %v452, 0.0
  %v548 = vadd.f32 %v546, %v547
  %v549 = vsel %vm481, %v457, 0.0
  %v550 = vadd.f32 %v548, %v549
  %v551 = vsel %vm481, %v460, 0.0
  %v552 = vadd.f32 %v550, %v551
  %v553 = vsel %vm481, %v465, 0.0
  %v554 = vadd.f32 %v552, %v553
  %v555 = vsel %vm481, %v468, 0.0
  %v556 = vadd.f32 %v554, %v555
  %v557 = vsel %vm481, %v473, 0.0
  %v558 = vadd.f32 %v556, %v557
  %v559 = vsel %vm481, %v476, 0.0
  %v560 = vadd.f32 %v558, %v559
  %v561 = vrot.slane %v560, 4
  %v562 = vadd.f32 %v560, %v561
  %v563 = vrot.slane %v562, 2
  %v564 = vadd.f32 %v562, %v563
  %v565 = vrot.slane %v564, 1
  %v566 = vadd.f32 %v564, %v565
  %v567 = vmul.f32 %v566, 0.0078125
  %v568 = vsub.f32 %v321, %v567
  %v569 = vsub.f32 %v324, %v567
  %v570 = vsub.f32 %v329, %v567
  %v571 = vsub.f32 %v332, %v567
  %v572 = vsub.f32 %v337, %v567
  %v573 = vsub.f32 %v340, %v567
  %v574 = vsub.f32 %v345, %v567
  %v575 = vsub.f32 %v348, %v567
  %v576 = vsub.f32 %v353, %v567
  %v577 = vsub.f32 %v356, %v567
  %v578 = vsub.f32 %v361, %v567
  %v579 = vsub.f32 %v364, %v567
  %v580 = vsub.f32 %v369, %v567
  %v581 = vsub.f32 %v372, %v567
  %v582 = vsub.f32 %v377, %v567
  %v583 = vsub.f32 %v380, %v567
  %v584 = vsub.f32 %v385, %v567
  %v585 = vsub.f32 %v388, %v567
  %v586 = vsub.f32 %v393, %v567
  %v587 = vsub.f32 %v396, %v567
  %v588 = vsub.f32 %v401, %v567
  %v589 = vsub.f32 %v404, %v567
  %v590 = vsub.f32 %v409, %v567
  %v591 = vsub.f32 %v412, %v567
  %v592 = vsub.f32 %v417, %v567
  %v593 = vsub.f32 %v420, %v567
  %v594 = vsub.f32 %v425, %v567
  %v595 = vsub.f32 %v428, %v567
  %v596 = vsub.f32 %v433, %v567
  %v597 = vsub.f32 %v436, %v567
  %v598 = vsub.f32 %v441, %v567
  %v599 = vsub.f32 %v444, %v567
  %v600 = vsub.f32 %v449, %v567
  %v601 = vsub.f32 %v452, %v567
  %v602 = vsub.f32 %v457, %v567
  %v603 = vsub.f32 %v460, %v567
  %v604 = vsub.f32 %v465, %v567
  %v605 = vsub.f32 %v468, %v567
  %v606 = vsub.f32 %v473, %v567
  %v607 = vsub.f32 %v476, %v567
  %609 = vset.pattern.permute.xlu0 0
  %610 = vperm.xlu0 %609, %v21
  %v611 = vpop.permute.xlu0 %610
  %614 = vset.pattern.permute.xlu0 0
  %615 = vperm.xlu0 %614, %v22
  %v616 = vpop.permute.xlu0 %615
  %619 = vset.pattern.permute.xlu0 0
  %620 = vperm.xlu0 %619, %v23
  %v621 = vpop.permute.xlu0 %620
  %624 = vset.pattern.permute.xlu0 0
  %625 = vperm.xlu0 %624, %v24
  %v626 = vpop.permute.xlu0 %625
  %629 = vset.pattern.permute.xlu0 0
  %630 = vperm.xlu0 %629, %v25
  %v631 = vpop.permute.xlu0 %630
  %634 = vset.pattern.permute.xlu0 0
  %635 = vperm.xlu0 %634, %v26
  %v636 = vpop.permute.xlu0 %635
  %639 = vset.pattern.permute.xlu0 0
  %640 = vperm.xlu0 %639, %v27
  %v641 = vpop.permute.xlu0 %640
  %644 = vset.pattern.permute.xlu0 0
  %645 = vperm.xlu0 %644, %v28
  %v646 = vpop.permute.xlu0 %645
  %649 = vset.pattern.permute.xlu0 0
  %650 = vperm.xlu0 %649, %v29
  %v651 = vpop.permute.xlu0 %650
  %654 = vset.pattern.permute.xlu0 0
  %655 = vperm.xlu0 %654, %v30
  %v656 = vpop.permute.xlu0 %655
  %659 = vset.pattern.permute.xlu0 0
  %660 = vperm.xlu0 %659, %v31
  %v661 = vpop.permute.xlu0 %660
  %664 = vset.pattern.permute.xlu0 0
  %665 = vperm.xlu0 %664, %v32
  %v666 = vpop.permute.xlu0 %665
  %669 = vset.pattern.permute.xlu0 0
  %670 = vperm.xlu0 %669, %v33
  %v671 = vpop.permute.xlu0 %670
  %674 = vset.pattern.permute.xlu0 0
  %675 = vperm.xlu0 %674, %v34
  %v676 = vpop.permute.xlu0 %675
  %679 = vset.pattern.permute.xlu0 0
  %680 = vperm.xlu0 %679, %v35
  %v681 = vpop.permute.xlu0 %680
  %684 = vset.pattern.permute.xlu0 0
  %685 = vperm.xlu0 %684, %v36
  %v686 = vpop.permute.xlu0 %685
  %689 = vset.pattern.permute.xlu0 0
  %690 = vperm.xlu0 %689, %v37
  %v691 = vpop.permute.xlu0 %690
  %694 = vset.pattern.permute.xlu0 0
  %695 = vperm.xlu0 %694, %v38
  %v696 = vpop.permute.xlu0 %695
  %699 = vset.pattern.permute.xlu0 0
  %700 = vperm.xlu0 %699, %v39
  %v701 = vpop.permute.xlu0 %700
  %704 = vset.pattern.permute.xlu0 0
  %705 = vperm.xlu0 %704, %v40
  %v706 = vpop.permute.xlu0 %705
  %709 = vset.pattern.permute.xlu0 0
  %710 = vperm.xlu0 %709, %v41
  %v711 = vpop.permute.xlu0 %710
  %714 = vset.pattern.permute.xlu0 0
  %715 = vperm.xlu0 %714, %v42
  %v716 = vpop.permute.xlu0 %715
  %719 = vset.pattern.permute.xlu0 0
  %720 = vperm.xlu0 %719, %v43
  %v721 = vpop.permute.xlu0 %720
  %724 = vset.pattern.permute.xlu0 0
  %725 = vperm.xlu0 %724, %v44
  %v726 = vpop.permute.xlu0 %725
  %729 = vset.pattern.permute.xlu0 0
  %730 = vperm.xlu0 %729, %v45
  %v731 = vpop.permute.xlu0 %730
  %734 = vset.pattern.permute.xlu0 0
  %735 = vperm.xlu0 %734, %v46
  %v736 = vpop.permute.xlu0 %735
  %739 = vset.pattern.permute.xlu0 0
  %740 = vperm.xlu0 %739, %v47
  %v741 = vpop.permute.xlu0 %740
  %744 = vset.pattern.permute.xlu0 0
  %745 = vperm.xlu0 %744, %v48
  %v746 = vpop.permute.xlu0 %745
  %749 = vset.pattern.permute.xlu0 0
  %750 = vperm.xlu0 %749, %v49
  %v751 = vpop.permute.xlu0 %750
  %754 = vset.pattern.permute.xlu0 0
  %755 = vperm.xlu0 %754, %v50
  %v756 = vpop.permute.xlu0 %755
  %759 = vset.pattern.permute.xlu0 0
  %760 = vperm.xlu0 %759, %v51
  %v761 = vpop.permute.xlu0 %760
  %764 = vset.pattern.permute.xlu0 0
  %765 = vperm.xlu0 %764, %v52
  %v766 = vpop.permute.xlu0 %765
  %769 = vset.pattern.permute.xlu0 0
  %770 = vperm.xlu0 %769, %v53
  %v771 = vpop.permute.xlu0 %770
  %774 = vset.pattern.permute.xlu0 0
  %775 = vperm.xlu0 %774, %v54
  %v776 = vpop.permute.xlu0 %775
  %779 = vset.pattern.permute.xlu0 0
  %780 = vperm.xlu0 %779, %v55
  %v781 = vpop.permute.xlu0 %780
  %784 = vset.pattern.permute.xlu0 0
  %785 = vperm.xlu0 %784, %v56
  %v786 = vpop.permute.xlu0 %785
  %789 = vset.pattern.permute.xlu0 0
  %790 = vperm.xlu0 %789, %v57
  %v791 = vpop.permute.xlu0 %790
  %794 = vset.pattern.permute.xlu0 0
  %795 = vperm.xlu0 %794, %v58
  %v796 = vpop.permute.xlu0 %795
  %799 = vset.pattern.permute.xlu0 0
  %800 = vperm.xlu0 %799, %v59
  %v801 = vpop.permute.xlu0 %800
  %804 = vset.pattern.permute.xlu0 0
  %805 = vperm.xlu0 %804, %v60
  %v806 = vpop.permute.xlu0 %805
  %v808 = vmul.f32 %v568, %v611
  %v809 = vmul.f32 %v569, %v616
  %v810 = vmul.f32 %v570, %v621
  %v811 = vmul.f32 %v571, %v626
  %v812 = vmul.f32 %v572, %v631
  %v813 = vmul.f32 %v573, %v636
  %v814 = vmul.f32 %v574, %v641
  %v815 = vmul.f32 %v575, %v646
  %v816 = vmul.f32 %v576, %v651
  %v817 = vmul.f32 %v577, %v656
  %v818 = vmul.f32 %v578, %v661
  %v819 = vmul.f32 %v579, %v666
  %v820 = vmul.f32 %v580, %v671
  %v821 = vmul.f32 %v581, %v676
  %v822 = vmul.f32 %v582, %v681
  %v823 = vmul.f32 %v583, %v686
  %v824 = vmul.f32 %v584, %v691
  %v825 = vmul.f32 %v585, %v696
  %v826 = vmul.f32 %v586, %v701
  %v827 = vmul.f32 %v587, %v706
  %v828 = vmul.f32 %v588, %v711
  %v829 = vmul.f32 %v589, %v716
  %v830 = vmul.f32 %v590, %v721
  %v831 = vmul.f32 %v591, %v726
  %v832 = vmul.f32 %v592, %v731
  %v833 = vmul.f32 %v593, %v736
  %v834 = vmul.f32 %v594, %v741
  %v835 = vmul.f32 %v595, %v746
  %v836 = vmul.f32 %v596, %v751
  %v837 = vmul.f32 %v597, %v756
  %v838 = vmul.f32 %v598, %v761
  %v839 = vmul.f32 %v599, %v766
  %v840 = vmul.f32 %v600, %v771
  %v841 = vmul.f32 %v601, %v776
  %v842 = vmul.f32 %v602, %v781
  %v843 = vmul.f32 %v603, %v786
  %v844 = vmul.f32 %v604, %v791
  %v845 = vmul.f32 %v605, %v796
  %v846 = vmul.f32 %v606, %v801
  %v847 = vmul.f32 %v607, %v806
  %v848 = vmul.f32 %v808, %v808
  %v849 = vmul.f32 %v809, %v809
  %v850 = vmul.f32 %v810, %v810
  %v851 = vmul.f32 %v811, %v811
  %v852 = vmul.f32 %v812, %v812
  %v853 = vmul.f32 %v813, %v813
  %v854 = vmul.f32 %v814, %v814
  %v855 = vmul.f32 %v815, %v815
  %v856 = vmul.f32 %v816, %v816
  %v857 = vmul.f32 %v817, %v817
  %v858 = vmul.f32 %v818, %v818
  %v859 = vmul.f32 %v819, %v819
  %v860 = vmul.f32 %v820, %v820
  %v861 = vmul.f32 %v821, %v821
  %v862 = vmul.f32 %v822, %v822
  %v863 = vmul.f32 %v823, %v823
  %v864 = vmul.f32 %v824, %v824
  %v865 = vmul.f32 %v825, %v825
  %v866 = vmul.f32 %v826, %v826
  %v867 = vmul.f32 %v827, %v827
  %v868 = vmul.f32 %v828, %v828
  %v869 = vmul.f32 %v829, %v829
  %v870 = vmul.f32 %v830, %v830
  %v871 = vmul.f32 %v831, %v831
  %v872 = vmul.f32 %v832, %v832
  %v873 = vmul.f32 %v833, %v833
  %v874 = vmul.f32 %v834, %v834
  %v875 = vmul.f32 %v835, %v835
  %v876 = vmul.f32 %v836, %v836
  %v877 = vmul.f32 %v837, %v837
  %v878 = vmul.f32 %v838, %v838
  %v879 = vmul.f32 %v839, %v839
  %v880 = vmul.f32 %v840, %v840
  %v881 = vmul.f32 %v841, %v841
  %v882 = vmul.f32 %v842, %v842
  %v883 = vmul.f32 %v843, %v843
  %v884 = vmul.f32 %v844, %v844
  %v885 = vmul.f32 %v845, %v845
  %v886 = vmul.f32 %v846, %v846
  %v887 = vmul.f32 %v847, %v847
  %v888 = vsel %vm481, %v848, 0.0
  %v889 = vsel %vm481, %v849, 0.0
  %v890 = vadd.f32 %v888, %v889
  %v891 = vsel %vm481, %v850, 0.0
  %v892 = vadd.f32 %v890, %v891
  %v893 = vsel %vm481, %v851, 0.0
  %v894 = vadd.f32 %v892, %v893
  %v895 = vsel %vm481, %v852, 0.0
  %v896 = vadd.f32 %v894, %v895
  %v897 = vsel %vm481, %v853, 0.0
  %v898 = vadd.f32 %v896, %v897
  %v899 = vsel %vm481, %v854, 0.0
  %v900 = vadd.f32 %v898, %v899
  %v901 = vsel %vm481, %v855, 0.0
  %v902 = vadd.f32 %v900, %v901
  %v903 = vsel %vm481, %v856, 0.0
  %v904 = vadd.f32 %v902, %v903
  %v905 = vsel %vm481, %v857, 0.0
  %v906 = vadd.f32 %v904, %v905
  %v907 = vsel %vm481, %v858, 0.0
  %v908 = vadd.f32 %v906, %v907
  %v909 = vsel %vm481, %v859, 0.0
  %v910 = vadd.f32 %v908, %v909
  %v911 = vsel %vm481, %v860, 0.0
  %v912 = vadd.f32 %v910, %v911
  %v913 = vsel %vm481, %v861, 0.0
  %v914 = vadd.f32 %v912, %v913
  %v915 = vsel %vm481, %v862, 0.0
  %v916 = vadd.f32 %v914, %v915
  %v917 = vsel %vm481, %v863, 0.0
  %v918 = vadd.f32 %v916, %v917
  %v919 = vsel %vm481, %v864, 0.0
  %v920 = vadd.f32 %v918, %v919
  %v921 = vsel %vm481, %v865, 0.0
  %v922 = vadd.f32 %v920, %v921
  %v923 = vsel %vm481, %v866, 0.0
  %v924 = vadd.f32 %v922, %v923
  %v925 = vsel %vm481, %v867, 0.0
  %v926 = vadd.f32 %v924, %v925
  %v927 = vsel %vm481, %v868, 0.0
  %v928 = vadd.f32 %v926, %v927
  %v929 = vsel %vm481, %v869, 0.0
  %v930 = vadd.f32 %v928, %v929
  %v931 = vsel %vm481, %v870, 0.0
  %v932 = vadd.f32 %v930, %v931
  %v933 = vsel %vm481, %v871, 0.0
  %v934 = vadd.f32 %v932, %v933
  %v935 = vsel %vm481, %v872, 0.0
  %v936 = vadd.f32 %v934, %v935
  %v937 = vsel %vm481, %v873, 0.0
  %v938 = vadd.f32 %v936, %v937
  %v939 = vsel %vm481, %v874, 0.0
  %v940 = vadd.f32 %v938, %v939
  %v941 = vsel %vm481, %v875, 0.0
  %v942 = vadd.f32 %v940, %v941
  %v943 = vsel %vm481, %v876, 0.0
  %v944 = vadd.f32 %v942, %v943
  %v945 = vsel %vm481, %v877, 0.0
  %v946 = vadd.f32 %v944, %v945
  %v947 = vsel %vm481, %v878, 0.0
  %v948 = vadd.f32 %v946, %v947
  %v949 = vsel %vm481, %v879, 0.0
  %v950 = vadd.f32 %v948, %v949
  %v951 = vsel %vm481, %v880, 0.0
  %v952 = vadd.f32 %v950, %v951
  %v953 = vsel %vm481, %v881, 0.0
  %v954 = vadd.f32 %v952, %v953
  %v955 = vsel %vm481, %v882, 0.0
  %v956 = vadd.f32 %v954, %v955
  %v957 = vsel %vm481, %v883, 0.0
  %v958 = vadd.f32 %v956, %v957
  %v959 = vsel %vm481, %v884, 0.0
  %v960 = vadd.f32 %v958, %v959
  %v961 = vsel %vm481, %v885, 0.0
  %v962 = vadd.f32 %v960, %v961
  %v963 = vsel %vm481, %v886, 0.0
  %v964 = vadd.f32 %v962, %v963
  %v965 = vsel %vm481, %v887, 0.0
  %v966 = vadd.f32 %v964, %v965
  %v967 = vrot.slane %v966, 4
  %v968 = vadd.f32 %v966, %v967
  %v969 = vrot.slane %v968, 2
  %v970 = vadd.f32 %v968, %v969
  %v971 = vrot.slane %v970, 1
  %v972 = vadd.f32 %v970, %v971
  %v973 = vmul.f32 %v972, 0.0078125
  %v974 = vadd.f32 %v973, 1e-05
  %v975 = vrsqrt.pop %v974
  %v976 = vmul.f32 %v479, %v975
  %v977 = vmul.f32 %v567, %v976
  %v978 = vsub.f32 %v480, %v977
  %v979 = vlaneseq
  %v980 = vshrl.u32 %v979, 7
  %v981 = vsub.s32 0, %v980
  %v982 = vrot.slane %v976, %v981
  %v983 = vmul.f32 %v321, %v982
  %v984 = vmul.f32 %v324, %v982
  %v985 = vmul.f32 %v329, %v982
  %v986 = vmul.f32 %v332, %v982
  %v987 = vmul.f32 %v337, %v982
  %v988 = vmul.f32 %v340, %v982
  %v989 = vmul.f32 %v345, %v982
  %v990 = vmul.f32 %v348, %v982
  %v991 = vmul.f32 %v353, %v982
  %v992 = vmul.f32 %v356, %v982
  %v993 = vmul.f32 %v361, %v982
  %v994 = vmul.f32 %v364, %v982
  %v995 = vmul.f32 %v369, %v982
  %v996 = vmul.f32 %v372, %v982
  %v997 = vmul.f32 %v377, %v982
  %v998 = vmul.f32 %v380, %v982
  %v999 = vmul.f32 %v385, %v982
  %v1000 = vmul.f32 %v388, %v982
  %v1001 = vmul.f32 %v393, %v982
  %v1002 = vmul.f32 %v396, %v982
  %v1003 = vmul.f32 %v401, %v982
  %v1004 = vmul.f32 %v404, %v982
  %v1005 = vmul.f32 %v409, %v982
  %v1006 = vmul.f32 %v412, %v982
  %v1007 = vmul.f32 %v417, %v982
  %v1008 = vmul.f32 %v420, %v982
  %v1009 = vmul.f32 %v425, %v982
  %v1010 = vmul.f32 %v428, %v982
  %v1011 = vmul.f32 %v433, %v982
  %v1012 = vmul.f32 %v436, %v982
  %v1013 = vmul.f32 %v441, %v982
  %v1014 = vmul.f32 %v444, %v982
  %v1015 = vmul.f32 %v449, %v982
  %v1016 = vmul.f32 %v452, %v982
  %v1017 = vmul.f32 %v457, %v982
  %v1018 = vmul.f32 %v460, %v982
  %v1019 = vmul.f32 %v465, %v982
  %v1020 = vmul.f32 %v468, %v982
  %v1021 = vmul.f32 %v473, %v982
  %v1022 = vmul.f32 %v476, %v982
  %v1023 = vlaneseq
  %v1024 = vshrl.u32 %v1023, 7
  %v1025 = vsub.s32 0, %v1024
  %v1026 = vrot.slane %v978, %v1025
  %v1027 = vadd.f32 %v983, %v1026
  %v1028 = vadd.f32 %v984, %v1026
  %v1029 = vadd.f32 %v985, %v1026
  %v1030 = vadd.f32 %v986, %v1026
  %v1031 = vadd.f32 %v987, %v1026
  %v1032 = vadd.f32 %v988, %v1026
  %v1033 = vadd.f32 %v989, %v1026
  %v1034 = vadd.f32 %v990, %v1026
  %v1035 = vadd.f32 %v991, %v1026
  %v1036 = vadd.f32 %v992, %v1026
  %v1037 = vadd.f32 %v993, %v1026
  %v1038 = vadd.f32 %v994, %v1026
  %v1039 = vadd.f32 %v995, %v1026
  %v1040 = vadd.f32 %v996, %v1026
  %v1041 = vadd.f32 %v997, %v1026
  %v1042 = vadd.f32 %v998, %v1026
  %v1043 = vadd.f32 %v999, %v1026
  %v1044 = vadd.f32 %v1000, %v1026
  %v1045 = vadd.f32 %v1001, %v1026
  %v1046 = vadd.f32 %v1002, %v1026
  %v1047 = vadd.f32 %v1003, %v1026
  %v1048 = vadd.f32 %v1004, %v1026
  %v1049 = vadd.f32 %v1005, %v1026
  %v1050 = vadd.f32 %v1006, %v1026
  %v1051 = vadd.f32 %v1007, %v1026
  %v1052 = vadd.f32 %v1008, %v1026
  %v1053 = vadd.f32 %v1009, %v1026
  %v1054 = vadd.f32 %v1010, %v1026
  %v1055 = vadd.f32 %v1011, %v1026
  %v1056 = vadd.f32 %v1012, %v1026
  %v1057 = vadd.f32 %v1013, %v1026
  %v1058 = vadd.f32 %v1014, %v1026
  %v1059 = vadd.f32 %v1015, %v1026
  %v1060 = vadd.f32 %v1016, %v1026
  %v1061 = vadd.f32 %v1017, %v1026
  %v1062 = vadd.f32 %v1018, %v1026
  %v1063 = vadd.f32 %v1019, %v1026
  %v1064 = vadd.f32 %v1020, %v1026
  %v1065 = vadd.f32 %v1021, %v1026
  %v1066 = vadd.f32 %v1022, %v1026
  %v1067 = vmax.f32 %v1027, 0.0
  %v1068 = vmax.f32 %v1028, 0.0
  %v1069 = vmax.f32 %v1029, 0.0
  %v1070 = vmax.f32 %v1030, 0.0
  %v1071 = vmax.f32 %v1031, 0.0
  %v1072 = vmax.f32 %v1032, 0.0
  %v1073 = vmax.f32 %v1033, 0.0
  %v1074 = vmax.f32 %v1034, 0.0
  %v1075 = vmax.f32 %v1035, 0.0
  %v1076 = vmax.f32 %v1036, 0.0
  %v1077 = vmax.f32 %v1037, 0.0
  %v1078 = vmax.f32 %v1038, 0.0
  %v1079 = vmax.f32 %v1039, 0.0
  %v1080 = vmax.f32 %v1040, 0.0
  %v1081 = vmax.f32 %v1041, 0.0
  %v1082 = vmax.f32 %v1042, 0.0
  %v1083 = vmax.f32 %v1043, 0.0
  %v1084 = vmax.f32 %v1044, 0.0
  %v1085 = vmax.f32 %v1045, 0.0
  %v1086 = vmax.f32 %v1046, 0.0
  %v1087 = vmax.f32 %v1047, 0.0
  %v1088 = vmax.f32 %v1048, 0.0
  %v1089 = vmax.f32 %v1049, 0.0
  %v1090 = vmax.f32 %v1050, 0.0
  %v1091 = vmax.f32 %v1051, 0.0
  %v1092 = vmax.f32 %v1052, 0.0
  %v1093 = vmax.f32 %v1053, 0.0
  %v1094 = vmax.f32 %v1054, 0.0
  %v1095 = vmax.f32 %v1055, 0.0
  %v1096 = vmax.f32 %v1056, 0.0
  %v1097 = vmax.f32 %v1057, 0.0
  %v1098 = vmax.f32 %v1058, 0.0
  %v1099 = vmax.f32 %v1059, 0.0
  %v1100 = vmax.f32 %v1060, 0.0
  %v1101 = vmax.f32 %v1061, 0.0
  %v1102 = vmax.f32 %v1062, 0.0
  %v1103 = vmax.f32 %v1063, 0.0
  %v1104 = vmax.f32 %v1064, 0.0
  %v1105 = vmax.f32 %v1065, 0.0
  %v1106 = vmax.f32 %v1066, 0.0
  %v1107 = vmul.f32 %v1067, %v611
  %v1108 = vmul.f32 %v1068, %v616
  %v1109 = vmul.f32 %v1069, %v621
  %v1110 = vmul.f32 %v1070, %v626
  %v1111 = vmul.f32 %v1071, %v631
  %v1112 = vmul.f32 %v1072, %v636
  %v1113 = vmul.f32 %v1073, %v641
  %v1114 = vmul.f32 %v1074, %v646
  %v1115 = vmul.f32 %v1075, %v651
  %v1116 = vmul.f32 %v1076, %v656
  %v1117 = vmul.f32 %v1077, %v661
  %v1118 = vmul.f32 %v1078, %v666
  %v1119 = vmul.f32 %v1079, %v671
  %v1120 = vmul.f32 %v1080, %v676
  %v1121 = vmul.f32 %v1081, %v681
  %v1122 = vmul.f32 %v1082, %v686
  %v1123 = vmul.f32 %v1083, %v691
  %v1124 = vmul.f32 %v1084, %v696
  %v1125 = vmul.f32 %v1085, %v701
  %v1126 = vmul.f32 %v1086, %v706
  %v1127 = vmul.f32 %v1087, %v711
  %v1128 = vmul.f32 %v1088, %v716
  %v1129 = vmul.f32 %v1089, %v721
  %v1130 = vmul.f32 %v1090, %v726
  %v1131 = vmul.f32 %v1091, %v731
  %v1132 = vmul.f32 %v1092, %v736
  %v1133 = vmul.f32 %v1093, %v741
  %v1134 = vmul.f32 %v1094, %v746
  %v1135 = vmul.f32 %v1095, %v751
  %v1136 = vmul.f32 %v1096, %v756
  %v1137 = vmul.f32 %v1097, %v761
  %v1138 = vmul.f32 %v1098, %v766
  %v1139 = vmul.f32 %v1099, %v771
  %v1140 = vmul.f32 %v1100, %v776
  %v1141 = vmul.f32 %v1101, %v781
  %v1142 = vmul.f32 %v1102, %v786
  %v1143 = vmul.f32 %v1103, %v791
  %v1144 = vmul.f32 %v1104, %v796
  %v1145 = vmul.f32 %v1105, %v801
  %v1146 = vmul.f32 %v1106, %v806
  %v1147 = vld [vmem:[%s4 + $0x4] sm:$0x1]
  %v1148 = vld [vmem:[%s4 + $0x5] sm:$0x1]
  %vm1149 = vcmask 130112
  %v1150 = vsel %vm1149, %v321, 0.0
  %v1151 = vsel %vm1149, %v324, 0.0
  %v1152 = vadd.f32 %v1150, %v1151
  %v1153 = vsel %vm1149, %v329, 0.0
  %v1154 = vadd.f32 %v1152, %v1153
  %v1155 = vsel %vm1149, %v332, 0.0
  %v1156 = vadd.f32 %v1154, %v1155
  %v1157 = vsel %vm1149, %v337, 0.0
  %v1158 = vadd.f32 %v1156, %v1157
  %v1159 = vsel %vm1149, %v340, 0.0
  %v1160 = vadd.f32 %v1158, %v1159
  %v1161 = vsel %vm1149, %v345, 0.0
  %v1162 = vadd.f32 %v1160, %v1161
  %v1163 = vsel %vm1149, %v348, 0.0
  %v1164 = vadd.f32 %v1162, %v1163
  %v1165 = vsel %vm1149, %v353, 0.0
  %v1166 = vadd.f32 %v1164, %v1165
  %v1167 = vsel %vm1149, %v356, 0.0
  %v1168 = vadd.f32 %v1166, %v1167
  %v1169 = vsel %vm1149, %v361, 0.0
  %v1170 = vadd.f32 %v1168, %v1169
  %v1171 = vsel %vm1149, %v364, 0.0
  %v1172 = vadd.f32 %v1170, %v1171
  %v1173 = vsel %vm1149, %v369, 0.0
  %v1174 = vadd.f32 %v1172, %v1173
  %v1175 = vsel %vm1149, %v372, 0.0
  %v1176 = vadd.f32 %v1174, %v1175
  %v1177 = vsel %vm1149, %v377, 0.0
  %v1178 = vadd.f32 %v1176, %v1177
  %v1179 = vsel %vm1149, %v380, 0.0
  %v1180 = vadd.f32 %v1178, %v1179
  %v1181 = vsel %vm1149, %v385, 0.0
  %v1182 = vadd.f32 %v1180, %v1181
  %v1183 = vsel %vm1149, %v388, 0.0
  %v1184 = vadd.f32 %v1182, %v1183
  %v1185 = vsel %vm1149, %v393, 0.0
  %v1186 = vadd.f32 %v1184, %v1185
  %v1187 = vsel %vm1149, %v396, 0.0
  %v1188 = vadd.f32 %v1186, %v1187
  %v1189 = vsel %vm1149, %v401, 0.0
  %v1190 = vadd.f32 %v1188, %v1189
  %v1191 = vsel %vm1149, %v404, 0.0
  %v1192 = vadd.f32 %v1190, %v1191
  %v1193 = vsel %vm1149, %v409, 0.0
  %v1194 = vadd.f32 %v1192, %v1193
  %v1195 = vsel %vm1149, %v412, 0.0
  %v1196 = vadd.f32 %v1194, %v1195
  %v1197 = vsel %vm1149, %v417, 0.0
  %v1198 = vadd.f32 %v1196, %v1197
  %v1199 = vsel %vm1149, %v420, 0.0
  %v1200 = vadd.f32 %v1198, %v1199
  %v1201 = vsel %vm1149, %v425, 0.0
  %v1202 = vadd.f32 %v1200, %v1201
  %v1203 = vsel %vm1149, %v428, 0.0
  %v1204 = vadd.f32 %v1202, %v1203
  %v1205 = vsel %vm1149, %v433, 0.0
  %v1206 = vadd.f32 %v1204, %v1205
  %v1207 = vsel %vm1149, %v436, 0.0
  %v1208 = vadd.f32 %v1206, %v1207
  %v1209 = vsel %vm1149, %v441, 0.0
  %v1210 = vadd.f32 %v1208, %v1209
  %v1211 = vsel %vm1149, %v444, 0.0
  %v1212 = vadd.f32 %v1210, %v1211
  %v1213 = vsel %vm1149, %v449, 0.0
  %v1214 = vadd.f32 %v1212, %v1213
  %v1215 = vsel %vm1149, %v452, 0.0
  %v1216 = vadd.f32 %v1214, %v1215
  %v1217 = vsel %vm1149, %v457, 0.0
  %v1218 = vadd.f32 %v1216, %v1217
  %v1219 = vsel %vm1149, %v460, 0.0
  %v1220 = vadd.f32 %v1218, %v1219
  %v1221 = vsel %vm1149, %v465, 0.0
  %v1222 = vadd.f32 %v1220, %v1221
  %v1223 = vsel %vm1149, %v468, 0.0
  %v1224 = vadd.f32 %v1222, %v1223
  %v1225 = vsel %vm1149, %v473, 0.0
  %v1226 = vadd.f32 %v1224, %v1225
  %v1227 = vsel %vm1149, %v476, 0.0
  %v1228 = vadd.f32 %v1226, %v1227
  %v1229 = vrot.slane %v1228, 4
  %v1230 = vadd.f32 %v1228, %v1229
  %v1231 = vrot.slane %v1230, 2
  %v1232 = vadd.f32 %v1230, %v1231
  %v1233 = vrot.slane %v1232, 1
  %v1234 = vadd.f32 %v1232, %v1233
  %v1235 = vmul.f32 %v1234, 0.0078125
  %v1236 = vsub.f32 %v321, %v1235
  %v1237 = vsub.f32 %v324, %v1235
  %v1238 = vsub.f32 %v329, %v1235
  %v1239 = vsub.f32 %v332, %v1235
  %v1240 = vsub.f32 %v337, %v1235
  %v1241 = vsub.f32 %v340, %v1235
  %v1242 = vsub.f32 %v345, %v1235
  %v1243 = vsub.f32 %v348, %v1235
  %v1244 = vsub.f32 %v353, %v1235
  %v1245 = vsub.f32 %v356, %v1235
  %v1246 = vsub.f32 %v361, %v1235
  %v1247 = vsub.f32 %v364, %v1235
  %v1248 = vsub.f32 %v369, %v1235
  %v1249 = vsub.f32 %v372, %v1235
  %v1250 = vsub.f32 %v377, %v1235
  %v1251 = vsub.f32 %v380, %v1235
  %v1252 = vsub.f32 %v385, %v1235
  %v1253 = vsub.f32 %v388, %v1235
  %v1254 = vsub.f32 %v393, %v1235
  %v1255 = vsub.f32 %v396, %v1235
  %v1256 = vsub.f32 %v401, %v1235
  %v1257 = vsub.f32 %v404, %v1235
  %v1258 = vsub.f32 %v409, %v1235
  %v1259 = vsub.f32 %v412, %v1235
  %v1260 = vsub.f32 %v417, %v1235
  %v1261 = vsub.f32 %v420, %v1235
  %v1262 = vsub.f32 %v425, %v1235
  %v1263 = vsub.f32 %v428, %v1235
  %v1264 = vsub.f32 %v433, %v1235
  %v1265 = vsub.f32 %v436, %v1235
  %v1266 = vsub.f32 %v441, %v1235
  %v1267 = vsub.f32 %v444, %v1235
  %v1268 = vsub.f32 %v449, %v1235
  %v1269 = vsub.f32 %v452, %v1235
  %v1270 = vsub.f32 %v457, %v1235
  %v1271 = vsub.f32 %v460, %v1235
  %v1272 = vsub.f32 %v465, %v1235
  %v1273 = vsub.f32 %v468, %v1235
  %v1274 = vsub.f32 %v473, %v1235
  %v1275 = vsub.f32 %v476, %v1235
  %v1276 = vmul.f32 %v1236, %v611
  %v1277 = vmul.f32 %v1237, %v616
  %v1278 = vmul.f32 %v1238, %v621
  %v1279 = vmul.f32 %v1239, %v626
  %v1280 = vmul.f32 %v1240, %v631
  %v1281 = vmul.f32 %v1241, %v636
  %v1282 = vmul.f32 %v1242, %v641
  %v1283 = vmul.f32 %v1243, %v646
  %v1284 = vmul.f32 %v1244, %v651
  %v1285 = vmul.f32 %v1245, %v656
  %v1286 = vmul.f32 %v1246, %v661
  %v1287 = vmul.f32 %v1247, %v666
  %v1288 = vmul.f32 %v1248, %v671
  %v1289 = vmul.f32 %v1249, %v676
  %v1290 = vmul.f32 %v1250, %v681
  %v1291 = vmul.f32 %v1251, %v686
  %v1292 = vmul.f32 %v1252, %v691
  %v1293 = vmul.f32 %v1253, %v696
  %v1294 = vmul.f32 %v1254, %v701
  %v1295 = vmul.f32 %v1255, %v706
  %v1296 = vmul.f32 %v1256, %v711
  %v1297 = vmul.f32 %v1257, %v716
  %v1298 = vmul.f32 %v1258, %v721
  %v1299 = vmul.f32 %v1259, %v726
  %v1300 = vmul.f32 %v1260, %v731
  %v1301 = vmul.f32 %v1261, %v736
  %v1302 = vmul.f32 %v1262, %v741
  %v1303 = vmul.f32 %v1263, %v746
  %v1304 = vmul.f32 %v1264, %v751
  %v1305 = vmul.f32 %v1265, %v756
  %v1306 = vmul.f32 %v1266, %v761
  %v1307 = vmul.f32 %v1267, %v766
  %v1308 = vmul.f32 %v1268, %v771
  %v1309 = vmul.f32 %v1269, %v776
  %v1310 = vmul.f32 %v1270, %v781
  %v1311 = vmul.f32 %v1271, %v786
  %v1312 = vmul.f32 %v1272, %v791
  %v1313 = vmul.f32 %v1273, %v796
  %v1314 = vmul.f32 %v1274, %v801
  %v1315 = vmul.f32 %v1275, %v806
  %v1316 = vmul.f32 %v1276, %v1276
  %v1317 = vmul.f32 %v1277, %v1277
  %v1318 = vmul.f32 %v1278, %v1278
  %v1319 = vmul.f32 %v1279, %v1279
  %v1320 = vmul.f32 %v1280, %v1280
  %v1321 = vmul.f32 %v1281, %v1281
  %v1322 = vmul.f32 %v1282, %v1282
  %v1323 = vmul.f32 %v1283, %v1283
  %v1324 = vmul.f32 %v1284, %v1284
  %v1325 = vmul.f32 %v1285, %v1285
  %v1326 = vmul.f32 %v1286, %v1286
  %v1327 = vmul.f32 %v1287, %v1287
  %v1328 = vmul.f32 %v1288, %v1288
  %v1329 = vmul.f32 %v1289, %v1289
  %v1330 = vmul.f32 %v1290, %v1290
  %v1331 = vmul.f32 %v1291, %v1291
  %v1332 = vmul.f32 %v1292, %v1292
  %v1333 = vmul.f32 %v1293, %v1293
  %v1334 = vmul.f32 %v1294, %v1294
  %v1335 = vmul.f32 %v1295, %v1295
  %v1336 = vmul.f32 %v1296, %v1296
  %v1337 = vmul.f32 %v1297, %v1297
  %v1338 = vmul.f32 %v1298, %v1298
  %v1339 = vmul.f32 %v1299, %v1299
  %v1340 = vmul.f32 %v1300, %v1300
  %v1341 = vmul.f32 %v1301, %v1301
  %v1342 = vmul.f32 %v1302, %v1302
  %v1343 = vmul.f32 %v1303, %v1303
  %v1344 = vmul.f32 %v1304, %v1304
  %v1345 = vmul.f32 %v1305, %v1305
  %v1346 = vmul.f32 %v1306, %v1306
  %v1347 = vmul.f32 %v1307, %v1307
  %v1348 = vmul.f32 %v1308, %v1308
  %v1349 = vmul.f32 %v1309, %v1309
  %v1350 = vmul.f32 %v1310, %v1310
  %v1351 = vmul.f32 %v1311, %v1311
  %v1352 = vmul.f32 %v1312, %v1312
  %v1353 = vmul.f32 %v1313, %v1313
  %v1354 = vmul.f32 %v1314, %v1314
  %v1355 = vmul.f32 %v1315, %v1315
  %v1356 = vsel %vm1149, %v1316, 0.0
  %v1357 = vsel %vm1149, %v1317, 0.0
  %v1358 = vadd.f32 %v1356, %v1357
  %v1359 = vsel %vm1149, %v1318, 0.0
  %v1360 = vadd.f32 %v1358, %v1359
  %v1361 = vsel %vm1149, %v1319, 0.0
  %v1362 = vadd.f32 %v1360, %v1361
  %v1363 = vsel %vm1149, %v1320, 0.0
  %v1364 = vadd.f32 %v1362, %v1363
  %v1365 = vsel %vm1149, %v1321, 0.0
  %v1366 = vadd.f32 %v1364, %v1365
  %v1367 = vsel %vm1149, %v1322, 0.0
  %v1368 = vadd.f32 %v1366, %v1367
  %v1369 = vsel %vm1149, %v1323, 0.0
  %v1370 = vadd.f32 %v1368, %v1369
  %v1371 = vsel %vm1149, %v1324, 0.0
  %v1372 = vadd.f32 %v1370, %v1371
  %v1373 = vsel %vm1149, %v1325, 0.0
  %v1374 = vadd.f32 %v1372, %v1373
  %v1375 = vsel %vm1149, %v1326, 0.0
  %v1376 = vadd.f32 %v1374, %v1375
  %v1377 = vsel %vm1149, %v1327, 0.0
  %v1378 = vadd.f32 %v1376, %v1377
  %v1379 = vsel %vm1149, %v1328, 0.0
  %v1380 = vadd.f32 %v1378, %v1379
  %v1381 = vsel %vm1149, %v1329, 0.0
  %v1382 = vadd.f32 %v1380, %v1381
  %v1383 = vsel %vm1149, %v1330, 0.0
  %v1384 = vadd.f32 %v1382, %v1383
  %v1385 = vsel %vm1149, %v1331, 0.0
  %v1386 = vadd.f32 %v1384, %v1385
  %v1387 = vsel %vm1149, %v1332, 0.0
  %v1388 = vadd.f32 %v1386, %v1387
  %v1389 = vsel %vm1149, %v1333, 0.0
  %v1390 = vadd.f32 %v1388, %v1389
  %v1391 = vsel %vm1149, %v1334, 0.0
  %v1392 = vadd.f32 %v1390, %v1391
  %v1393 = vsel %vm1149, %v1335, 0.0
  %v1394 = vadd.f32 %v1392, %v1393
  %v1395 = vsel %vm1149, %v1336, 0.0
  %v1396 = vadd.f32 %v1394, %v1395
  %v1397 = vsel %vm1149, %v1337, 0.0
  %v1398 = vadd.f32 %v1396, %v1397
  %v1399 = vsel %vm1149, %v1338, 0.0
  %v1400 = vadd.f32 %v1398, %v1399
  %v1401 = vsel %vm1149, %v1339, 0.0
  %v1402 = vadd.f32 %v1400, %v1401
  %v1403 = vsel %vm1149, %v1340, 0.0
  %v1404 = vadd.f32 %v1402, %v1403
  %v1405 = vsel %vm1149, %v1341, 0.0
  %v1406 = vadd.f32 %v1404, %v1405
  %v1407 = vsel %vm1149, %v1342, 0.0
  %v1408 = vadd.f32 %v1406, %v1407
  %v1409 = vsel %vm1149, %v1343, 0.0
  %v1410 = vadd.f32 %v1408, %v1409
  %v1411 = vsel %vm1149, %v1344, 0.0
  %v1412 = vadd.f32 %v1410, %v1411
  %v1413 = vsel %vm1149, %v1345, 0.0
  %v1414 = vadd.f32 %v1412, %v1413
  %v1415 = vsel %vm1149, %v1346, 0.0
  %v1416 = vadd.f32 %v1414, %v1415
  %v1417 = vsel %vm1149, %v1347, 0.0
  %v1418 = vadd.f32 %v1416, %v1417
  %v1419 = vsel %vm1149, %v1348, 0.0
  %v1420 = vadd.f32 %v1418, %v1419
  %v1421 = vsel %vm1149, %v1349, 0.0
  %v1422 = vadd.f32 %v1420, %v1421
  %v1423 = vsel %vm1149, %v1350, 0.0
  %v1424 = vadd.f32 %v1422, %v1423
  %v1425 = vsel %vm1149, %v1351, 0.0
  %v1426 = vadd.f32 %v1424, %v1425
  %v1427 = vsel %vm1149, %v1352, 0.0
  %v1428 = vadd.f32 %v1426, %v1427
  %v1429 = vsel %vm1149, %v1353, 0.0
  %v1430 = vadd.f32 %v1428, %v1429
  %v1431 = vsel %vm1149, %v1354, 0.0
  %v1432 = vadd.f32 %v1430, %v1431
  %v1433 = vsel %vm1149, %v1355, 0.0
  %v1434 = vadd.f32 %v1432, %v1433
  %v1435 = vrot.slane %v1434, 4
  %v1436 = vadd.f32 %v1434, %v1435
  %v1437 = vrot.slane %v1436, 2
  %v1438 = vadd.f32 %v1436, %v1437
  %v1439 = vrot.slane %v1438, 1
  %v1440 = vadd.f32 %v1438, %v1439
  %v1441 = vmul.f32 %v1440, 0.0078125
  %v1442 = vadd.f32 %v1441, 1e-05
  %v1443 = vrsqrt.pop %v1442
  %1445 = vrot.lane.b32.xlu0 %v1443, 120
  %v1446 = vpop.permute.xlu0 %1445
  %v1448 = vmul.f32 %v1147, %v1446
  %1450 = vrot.lane.b32.xlu0 %v1448, 8
  %v1451 = vpop.permute.xlu0 %1450
  %v1453 = vmul.f32 %v1235, %v1451
  %1455 = vrot.lane.b32.xlu0 %v1453, 120
  %v1456 = vpop.permute.xlu0 %1455
  %v1458 = vsub.f32 %v1148, %v1456
  %v1459 = vlaneseq
  %v1460 = vshrl.u32 %v1459, 7
  %v1461 = vsub.s32 0, %v1460
  %v1462 = vrot.slane %v1448, %v1461
  %1464 = vrot.lane.b32.xlu0 %v1462, 8
  %v1465 = vpop.permute.xlu0 %1464
  %v1467 = vmul.f32 %v321, %v1465
  %v1468 = vmul.f32 %v324, %v1465
  %v1469 = vmul.f32 %v329, %v1465
  %v1470 = vmul.f32 %v332, %v1465
  %v1471 = vmul.f32 %v337, %v1465
  %v1472 = vmul.f32 %v340, %v1465
  %v1473 = vmul.f32 %v345, %v1465
  %v1474 = vmul.f32 %v348, %v1465
  %v1475 = vmul.f32 %v353, %v1465
  %v1476 = vmul.f32 %v356, %v1465
  %v1477 = vmul.f32 %v361, %v1465
  %v1478 = vmul.f32 %v364, %v1465
  %v1479 = vmul.f32 %v369, %v1465
  %v1480 = vmul.f32 %v372, %v1465
  %v1481 = vmul.f32 %v377, %v1465
  %v1482 = vmul.f32 %v380, %v1465
  %v1483 = vmul.f32 %v385, %v1465
  %v1484 = vmul.f32 %v388, %v1465
  %v1485 = vmul.f32 %v393, %v1465
  %v1486 = vmul.f32 %v396, %v1465
  %v1487 = vmul.f32 %v401, %v1465
  %v1488 = vmul.f32 %v404, %v1465
  %v1489 = vmul.f32 %v409, %v1465
  %v1490 = vmul.f32 %v412, %v1465
  %v1491 = vmul.f32 %v417, %v1465
  %v1492 = vmul.f32 %v420, %v1465
  %v1493 = vmul.f32 %v425, %v1465
  %v1494 = vmul.f32 %v428, %v1465
  %v1495 = vmul.f32 %v433, %v1465
  %v1496 = vmul.f32 %v436, %v1465
  %v1497 = vmul.f32 %v441, %v1465
  %v1498 = vmul.f32 %v444, %v1465
  %v1499 = vmul.f32 %v449, %v1465
  %v1500 = vmul.f32 %v452, %v1465
  %v1501 = vmul.f32 %v457, %v1465
  %v1502 = vmul.f32 %v460, %v1465
  %v1503 = vmul.f32 %v465, %v1465
  %v1504 = vmul.f32 %v468, %v1465
  %v1505 = vmul.f32 %v473, %v1465
  %v1506 = vmul.f32 %v476, %v1465
  %v1507 = vlaneseq
  %v1508 = vshrl.u32 %v1507, 7
  %v1509 = vsub.s32 0, %v1508
  %v1510 = vrot.slane %v1458, %v1509
  %1512 = vrot.lane.b32.xlu0 %v1510, 8
  %v1513 = vpop.permute.xlu0 %1512
  %v1515 = vadd.f32 %v1467, %v1513
  %v1516 = vadd.f32 %v1468, %v1513
  %v1517 = vadd.f32 %v1469, %v1513
  %v1518 = vadd.f32 %v1470, %v1513
  %v1519 = vadd.f32 %v1471, %v1513
  %v1520 = vadd.f32 %v1472, %v1513
  %v1521 = vadd.f32 %v1473, %v1513
  %v1522 = vadd.f32 %v1474, %v1513
  %v1523 = vadd.f32 %v1475, %v1513
  %v1524 = vadd.f32 %v1476, %v1513
  %v1525 = vadd.f32 %v1477, %v1513
  %v1526 = vadd.f32 %v1478, %v1513
  %v1527 = vadd.f32 %v1479, %v1513
  %v1528 = vadd.f32 %v1480, %v1513
  %v1529 = vadd.f32 %v1481, %v1513
  %v1530 = vadd.f32 %v1482, %v1513
  %v1531 = vadd.f32 %v1483, %v1513
  %v1532 = vadd.f32 %v1484, %v1513
  %v1533 = vadd.f32 %v1485, %v1513
  %v1534 = vadd.f32 %v1486, %v1513
  %v1535 = vadd.f32 %v1487, %v1513
  %v1536 = vadd.f32 %v1488, %v1513
  %v1537 = vadd.f32 %v1489, %v1513
  %v1538 = vadd.f32 %v1490, %v1513
  %v1539 = vadd.f32 %v1491, %v1513
  %v1540 = vadd.f32 %v1492, %v1513
  %v1541 = vadd.f32 %v1493, %v1513
  %v1542 = vadd.f32 %v1494, %v1513
  %v1543 = vadd.f32 %v1495, %v1513
  %v1544 = vadd.f32 %v1496, %v1513
  %v1545 = vadd.f32 %v1497, %v1513
  %v1546 = vadd.f32 %v1498, %v1513
  %v1547 = vadd.f32 %v1499, %v1513
  %v1548 = vadd.f32 %v1500, %v1513
  %v1549 = vadd.f32 %v1501, %v1513
  %v1550 = vadd.f32 %v1502, %v1513
  %v1551 = vadd.f32 %v1503, %v1513
  %v1552 = vadd.f32 %v1504, %v1513
  %v1553 = vadd.f32 %v1505, %v1513
  %v1554 = vadd.f32 %v1506, %v1513
  %1595 = vrot.lane.b32.xlu0 %v1515, 120
  %v1596 = vpop.permute.xlu0 %1595
  %1597 = vrot.lane.b32.xlu0 %v1516, 120
  %v1598 = vpop.permute.xlu0 %1597
  %1599 = vrot.lane.b32.xlu0 %v1517, 120
  %v1600 = vpop.permute.xlu0 %1599
  %1601 = vrot.lane.b32.xlu0 %v1518, 120
  %v1602 = vpop.permute.xlu0 %1601
  %1603 = vrot.lane.b32.xlu0 %v1519, 120
  %v1604 = vpop.permute.xlu0 %1603
  %1605 = vrot.lane.b32.xlu0 %v1520, 120
  %v1606 = vpop.permute.xlu0 %1605
  %1607 = vrot.lane.b32.xlu0 %v1521, 120
  %v1608 = vpop.permute.xlu0 %1607
  %1609 = vrot.lane.b32.xlu0 %v1522, 120
  %v1610 = vpop.permute.xlu0 %1609
  %1611 = vrot.lane.b32.xlu0 %v1523, 120
  %v1612 = vpop.permute.xlu0 %1611
  %1613 = vrot.lane.b32.xlu0 %v1524, 120
  %v1614 = vpop.permute.xlu0 %1613
  %1615 = vrot.lane.b32.xlu0 %v1525, 120
  %v1616 = vpop.permute.xlu0 %1615
  %1617 = vrot.lane.b32.xlu0 %v1526, 120
  %v1618 = vpop.permute.xlu0 %1617
  %1619 = vrot.lane.b32.xlu0 %v1527, 120
  %v1620 = vpop.permute.xlu0 %1619
  %1621 = vrot.lane.b32.xlu0 %v1528, 120
  %v1622 = vpop.permute.xlu0 %1621
  %1623 = vrot.lane.b32.xlu0 %v1529, 120
  %v1624 = vpop.permute.xlu0 %1623
  %1625 = vrot.lane.b32.xlu0 %v1530, 120
  %v1626 = vpop.permute.xlu0 %1625
  %1627 = vrot.lane.b32.xlu0 %v1531, 120
  %v1628 = vpop.permute.xlu0 %1627
  %1629 = vrot.lane.b32.xlu0 %v1532, 120
  %v1630 = vpop.permute.xlu0 %1629
  %1631 = vrot.lane.b32.xlu0 %v1533, 120
  %v1632 = vpop.permute.xlu0 %1631
  %1633 = vrot.lane.b32.xlu0 %v1534, 120
  %v1634 = vpop.permute.xlu0 %1633
  %1635 = vrot.lane.b32.xlu0 %v1535, 120
  %v1636 = vpop.permute.xlu0 %1635
  %1637 = vrot.lane.b32.xlu0 %v1536, 120
  %v1638 = vpop.permute.xlu0 %1637
  %1639 = vrot.lane.b32.xlu0 %v1537, 120
  %v1640 = vpop.permute.xlu0 %1639
  %1641 = vrot.lane.b32.xlu0 %v1538, 120
  %v1642 = vpop.permute.xlu0 %1641
  %1643 = vrot.lane.b32.xlu0 %v1539, 120
  %v1644 = vpop.permute.xlu0 %1643
  %1645 = vrot.lane.b32.xlu0 %v1540, 120
  %v1646 = vpop.permute.xlu0 %1645
  %1647 = vrot.lane.b32.xlu0 %v1541, 120
  %v1648 = vpop.permute.xlu0 %1647
  %1649 = vrot.lane.b32.xlu0 %v1542, 120
  %v1650 = vpop.permute.xlu0 %1649
  %1651 = vrot.lane.b32.xlu0 %v1543, 120
  %v1652 = vpop.permute.xlu0 %1651
  %1653 = vrot.lane.b32.xlu0 %v1544, 120
  %v1654 = vpop.permute.xlu0 %1653
  %1655 = vrot.lane.b32.xlu0 %v1545, 120
  %v1656 = vpop.permute.xlu0 %1655
  %1657 = vrot.lane.b32.xlu0 %v1546, 120
  %v1658 = vpop.permute.xlu0 %1657
  %1659 = vrot.lane.b32.xlu0 %v1547, 120
  %v1660 = vpop.permute.xlu0 %1659
  %1661 = vrot.lane.b32.xlu0 %v1548, 120
  %v1662 = vpop.permute.xlu0 %1661
  %1663 = vrot.lane.b32.xlu0 %v1549, 120
  %v1664 = vpop.permute.xlu0 %1663
  %1665 = vrot.lane.b32.xlu0 %v1550, 120
  %v1666 = vpop.permute.xlu0 %1665
  %1667 = vrot.lane.b32.xlu0 %v1551, 120
  %v1668 = vpop.permute.xlu0 %1667
  %1669 = vrot.lane.b32.xlu0 %v1552, 120
  %v1670 = vpop.permute.xlu0 %1669
  %1671 = vrot.lane.b32.xlu0 %v1553, 120
  %v1672 = vpop.permute.xlu0 %1671
  %1673 = vrot.lane.b32.xlu0 %v1554, 120
  %v1674 = vpop.permute.xlu0 %1673
  %1715 = vst.msk [vmem:[#allocation3] sm:$0xff] %vm481, %v1596
  %1716 = vst.msk [vmem:[#allocation3 + $0x8] sm:$0xff] %vm481, %v1598
  %1717 = vst.msk [vmem:[#allocation3 + $0x10] sm:$0xff] %vm481, %v1600
  %1718 = vst.msk [vmem:[#allocation3 + $0x18] sm:$0xff] %vm481, %v1602
  %1719 = vst.msk [vmem:[#allocation3 + $0x20] sm:$0xff] %vm481, %v1604
  %1720 = vst.msk [vmem:[#allocation3 + $0x28] sm:$0xff] %vm481, %v1606
  %1721 = vst.msk [vmem:[#allocation3 + $0x30] sm:$0xff] %vm481, %v1608
  %1722 = vst.msk [vmem:[#allocation3 + $0x38] sm:$0xff] %vm481, %v1610
  %1723 = vst.msk [vmem:[#allocation3 + $0x40] sm:$0xff] %vm481, %v1612
  %1724 = vst.msk [vmem:[#allocation3 + $0x48] sm:$0xff] %vm481, %v1614
  %1725 = vst.msk [vmem:[#allocation3 + $0x50] sm:$0xff] %vm481, %v1616
  %1726 = vst.msk [vmem:[#allocation3 + $0x58] sm:$0xff] %vm481, %v1618
  %1727 = vst.msk [vmem:[#allocation3 + $0x60] sm:$0xff] %vm481, %v1620
  %1728 = vst.msk [vmem:[#allocation3 + $0x68] sm:$0xff] %vm481, %v1622
  %1729 = vst.msk [vmem:[#allocation3 + $0x70] sm:$0xff] %vm481, %v1624
  %1730 = vst.msk [vmem:[#allocation3 + $0x78] sm:$0xff] %vm481, %v1626
  %1731 = vst.msk [vmem:[#allocation3 + $0x80] sm:$0xff] %vm481, %v1628
  %1732 = vst.msk [vmem:[#allocation3 + $0x88] sm:$0xff] %vm481, %v1630
  %1733 = vst.msk [vmem:[#allocation3 + $0x90] sm:$0xff] %vm481, %v1632
  %1734 = vst.msk [vmem:[#allocation3 + $0x98] sm:$0xff] %vm481, %v1634
  %1735 = vst.msk [vmem:[#allocation3 + $0xa0] sm:$0xff] %vm481, %v1636
  %1736 = vst.msk [vmem:[#allocation3 + $0xa8] sm:$0xff] %vm481, %v1638
  %1737 = vst.msk [vmem:[#allocation3 + $0xb0] sm:$0xff] %vm481, %v1640
  %1738 = vst.msk [vmem:[#allocation3 + $0xb8] sm:$0xff] %vm481, %v1642
  %1739 = vst.msk [vmem:[#allocation3 + $0xc0] sm:$0xff] %vm481, %v1644
  %1740 = vst.msk [vmem:[#allocation3 + $0xc8] sm:$0xff] %vm481, %v1646
  %1741 = vst.msk [vmem:[#allocation3 + $0xd0] sm:$0xff] %vm481, %v1648
  %1742 = vst.msk [vmem:[#allocation3 + $0xd8] sm:$0xff] %vm481, %v1650
  %1743 = vst.msk [vmem:[#allocation3 + $0xe0] sm:$0xff] %vm481, %v1652
  %1744 = vst.msk [vmem:[#allocation3 + $0xe8] sm:$0xff] %vm481, %v1654
  %1745 = vst.msk [vmem:[#allocation3 + $0xf0] sm:$0xff] %vm481, %v1656
  %1746 = vst.msk [vmem:[#allocation3 + $0xf8] sm:$0xff] %vm481, %v1658
  %1747 = vst.msk [vmem:[#allocation3 + $0x100] sm:$0xff] %vm481, %v1660
  %1748 = vst.msk [vmem:[#allocation3 + $0x108] sm:$0xff] %vm481, %v1662
  %1749 = vst.msk [vmem:[#allocation3 + $0x110] sm:$0xff] %vm481, %v1664
  %1750 = vst.msk [vmem:[#allocation3 + $0x118] sm:$0xff] %vm481, %v1666
  %1751 = vst.msk [vmem:[#allocation3 + $0x120] sm:$0xff] %vm481, %v1668
  %1752 = vst.msk [vmem:[#allocation3 + $0x128] sm:$0xff] %vm481, %v1670
  %1753 = vst.msk [vmem:[#allocation3 + $0x130] sm:$0xff] %vm481, %v1672
  %1754 = vst.msk [vmem:[#allocation3 + $0x138] sm:$0xff] %vm481, %v1674
  %1755 = vst.msk [vmem:[#allocation2] sm:$0xff] %vm481, 0.0
  %1756 = vst.msk [vmem:[#allocation2 + $0x8] sm:$0xff] %vm481, 0.0
  %1757 = vst.msk [vmem:[#allocation2 + $0x10] sm:$0xff] %vm481, 0.0
  %1758 = vst.msk [vmem:[#allocation2 + $0x158] sm:$0xff] %vm481, 0.0
  %1759 = vst.msk [vmem:[#allocation2 + $0x160] sm:$0xff] %vm481, 0.0
  %1760 = vst.msk [vmem:[#allocation2 + $0x168] sm:$0xff] %vm481, 0.0
  %1761 = vst.msk [vmem:[#allocation2 + $0x18] sm:$0xff] %vm481, %v1107
  %1762 = vst.msk [vmem:[#allocation2 + $0x20] sm:$0xff] %vm481, %v1108
  %1763 = vst.msk [vmem:[#allocation2 + $0x28] sm:$0xff] %vm481, %v1109
  %1764 = vst.msk [vmem:[#allocation2 + $0x30] sm:$0xff] %vm481, %v1110
  %1765 = vst.msk [vmem:[#allocation2 + $0x38] sm:$0xff] %vm481, %v1111
  %1766 = vst.msk [vmem:[#allocation2 + $0x40] sm:$0xff] %vm481, %v1112
  %1767 = vst.msk [vmem:[#allocation2 + $0x48] sm:$0xff] %vm481, %v1113
  %1768 = vst.msk [vmem:[#allocation2 + $0x50] sm:$0xff] %vm481, %v1114
  %1769 = vst.msk [vmem:[#allocation2 + $0x58] sm:$0xff] %vm481, %v1115
  %1770 = vst.msk [vmem:[#allocation2 + $0x60] sm:$0xff] %vm481, %v1116
  %1771 = vst.msk [vmem:[#allocation2 + $0x68] sm:$0xff] %vm481, %v1117
  %1772 = vst.msk [vmem:[#allocation2 + $0x70] sm:$0xff] %vm481, %v1118
  %1773 = vst.msk [vmem:[#allocation2 + $0x78] sm:$0xff] %vm481, %v1119
  %1774 = vst.msk [vmem:[#allocation2 + $0x80] sm:$0xff] %vm481, %v1120
  %1775 = vst.msk [vmem:[#allocation2 + $0x88] sm:$0xff] %vm481, %v1121
  %1776 = vst.msk [vmem:[#allocation2 + $0x90] sm:$0xff] %vm481, %v1122
  %1777 = vst.msk [vmem:[#allocation2 + $0x98] sm:$0xff] %vm481, %v1123
  %1778 = vst.msk [vmem:[#allocation2 + $0xa0] sm:$0xff] %vm481, %v1124
  %1779 = vst.msk [vmem:[#allocation2 + $0xa8] sm:$0xff] %vm481, %v1125
  %1780 = vst.msk [vmem:[#allocation2 + $0xb0] sm:$0xff] %vm481, %v1126
  %1781 = vst.msk [vmem:[#allocation2 + $0xb8] sm:$0xff] %vm481, %v1127
  %1782 = vst.msk [vmem:[#allocation2 + $0xc0] sm:$0xff] %vm481, %v1128
  %1783 = vst.msk [vmem:[#allocation2 + $0xc8] sm:$0xff] %vm481, %v1129
  %1784 = vst.msk [vmem:[#allocation2 + $0xd0] sm:$0xff] %vm481, %v1130
  %1785 = vst.msk [vmem:[#allocation2 + $0xd8] sm:$0xff] %vm481, %v1131
  %1786 = vst.msk [vmem:[#allocation2 + $0xe0] sm:$0xff] %vm481, %v1132
  %1787 = vst.msk [vmem:[#allocation2 + $0xe8] sm:$0xff] %vm481, %v1133
  %1788 = vst.msk [vmem:[#allocation2 + $0xf0] sm:$0xff] %vm481, %v1134
  %1789 = vst.msk [vmem:[#allocation2 + $0xf8] sm:$0xff] %vm481, %v1135
  %1790 = vst.msk [vmem:[#allocation2 + $0x100] sm:$0xff] %vm481, %v1136
  %1791 = vst.msk [vmem:[#allocation2 + $0x108] sm:$0xff] %vm481, %v1137
  %1792 = vst.msk [vmem:[#allocation2 + $0x110] sm:$0xff] %vm481, %v1138
  %1793 = vst.msk [vmem:[#allocation2 + $0x118] sm:$0xff] %vm481, %v1139
  %1794 = vst.msk [vmem:[#allocation2 + $0x120] sm:$0xff] %vm481, %v1140
  %1795 = vst.msk [vmem:[#allocation2 + $0x128] sm:$0xff] %vm481, %v1141
  %1796 = vst.msk [vmem:[#allocation2 + $0x130] sm:$0xff] %vm481, %v1142
  %1797 = vst.msk [vmem:[#allocation2 + $0x138] sm:$0xff] %vm481, %v1143
  %1798 = vst.msk [vmem:[#allocation2 + $0x140] sm:$0xff] %vm481, %v1144
  %1799 = vst.msk [vmem:[#allocation2 + $0x148] sm:$0xff] %vm481, %v1145
  %1800 = vst.msk [vmem:[#allocation2 + $0x150] sm:$0xff] %vm481, %v1146
  %v1801 = vld [vmem:[#allocation2 + $0x7] sm:$0xff]
  %v1802 = vld [vmem:[#allocation2 + $0xf] sm:$0xff]
  %v1803 = vld [vmem:[#allocation2 + $0x17] sm:$0xff]
  %v1804 = vld [vmem:[#allocation2 + $0x1f] sm:$0xff]
  %v1805 = vld [vmem:[#allocation2 + $0x27] sm:$0xff]
  %v1806 = vld [vmem:[#allocation2 + $0x2f] sm:$0xff]
  %v1807 = vld [vmem:[#allocation2 + $0x37] sm:$0xff]
  %v1808 = vld [vmem:[#allocation2 + $0x3f] sm:$0xff]
  %v1809 = vld [vmem:[#allocation2 + $0x47] sm:$0xff]
  %v1810 = vld [vmem:[#allocation2 + $0x4f] sm:$0xff]
  %v1811 = vld [vmem:[#allocation2 + $0x57] sm:$0xff]
  %v1812 = vld [vmem:[#allocation2 + $0x5f] sm:$0xff]
  %v1813 = vld [vmem:[#allocation2 + $0x67] sm:$0xff]
  %v1814 = vld [vmem:[#allocation2 + $0x6f] sm:$0xff]
  %v1815 = vld [vmem:[#allocation2 + $0x77] sm:$0xff]
  %v1816 = vld [vmem:[#allocation2 + $0x7f] sm:$0xff]
  %v1817 = vld [vmem:[#allocation2 + $0x87] sm:$0xff]
  %v1818 = vld [vmem:[#allocation2 + $0x8f] sm:$0xff]
  %v1819 = vld [vmem:[#allocation2 + $0x97] sm:$0xff]
  %v1820 = vld [vmem:[#allocation2 + $0x9f] sm:$0xff]
  %v1821 = vld [vmem:[#allocation2 + $0xa7] sm:$0xff]
  %v1822 = vld [vmem:[#allocation2 + $0xaf] sm:$0xff]
  %v1823 = vld [vmem:[#allocation2 + $0xb7] sm:$0xff]
  %v1824 = vld [vmem:[#allocation2 + $0xbf] sm:$0xff]
  %v1825 = vld [vmem:[#allocation2 + $0xc7] sm:$0xff]
  %v1826 = vld [vmem:[#allocation2 + $0xcf] sm:$0xff]
  %v1827 = vld [vmem:[#allocation2 + $0xd7] sm:$0xff]
  %v1828 = vld [vmem:[#allocation2 + $0xdf] sm:$0xff]
  %v1829 = vld [vmem:[#allocation2 + $0xe7] sm:$0xff]
  %v1830 = vld [vmem:[#allocation2 + $0xef] sm:$0xff]
  %v1831 = vld [vmem:[#allocation2 + $0xf7] sm:$0xff]
  %v1832 = vld [vmem:[#allocation2 + $0xff] sm:$0xff]
  %v1833 = vld [vmem:[#allocation2 + $0x107] sm:$0xff]
  %v1834 = vld [vmem:[#allocation2 + $0x10f] sm:$0xff]
  %v1835 = vld [vmem:[#allocation2 + $0x117] sm:$0xff]
  %v1836 = vld [vmem:[#allocation2 + $0x11f] sm:$0xff]
  %v1837 = vld [vmem:[#allocation2 + $0x127] sm:$0xff]
  %v1838 = vld [vmem:[#allocation2 + $0x12f] sm:$0xff]
  %v1839 = vld [vmem:[#allocation2 + $0x137] sm:$0xff]
  %v1840 = vld [vmem:[#allocation2 + $0x13f] sm:$0xff]
  %v1841 = vld [vmem:[#allocation2 + $0x8] sm:$0xff]
  %v1842 = vld [vmem:[#allocation2 + $0x10] sm:$0xff]
  %v1843 = vld [vmem:[#allocation2 + $0x18] sm:$0xff]
  %v1844 = vld [vmem:[#allocation2 + $0x20] sm:$0xff]
  %v1845 = vld [vmem:[#allocation2 + $0x28] sm:$0xff]
  %v1846 = vld [vmem:[#allocation2 + $0x30] sm:$0xff]
  %v1847 = vld [vmem:[#allocation2 + $0x38] sm:$0xff]
  %v1848 = vld [vmem:[#allocation2 + $0x40] sm:$0xff]
  %v1849 = vld [vmem:[#allocation2 + $0x48] sm:$0xff]
  %v1850 = vld [vmem:[#allocation2 + $0x50] sm:$0xff]
  %v1851 = vld [vmem:[#allocation2 + $0x58] sm:$0xff]
  %v1852 = vld [vmem:[#allocation2 + $0x60] sm:$0xff]
  %v1853 = vld [vmem:[#allocation2 + $0x68] sm:$0xff]
  %v1854 = vld [vmem:[#allocation2 + $0x70] sm:$0xff]
  %v1855 = vld [vmem:[#allocation2 + $0x78] sm:$0xff]
  %v1856 = vld [vmem:[#allocation2 + $0x80] sm:$0xff]
  %v1857 = vld [vmem:[#allocation2 + $0x88] sm:$0xff]
  %v1858 = vld [vmem:[#allocation2 + $0x90] sm:$0xff]
  %v1859 = vld [vmem:[#allocation2 + $0x98] sm:$0xff]
  %v1860 = vld [vmem:[#allocation2 + $0xa0] sm:$0xff]
  %v1861 = vld [vmem:[#allocation2 + $0xa8] sm:$0xff]
  %v1862 = vld [vmem:[#allocation2 + $0xb0] sm:$0xff]
  %v1863 = vld [vmem:[#allocation2 + $0xb8] sm:$0xff]
  %v1864 = vld [vmem:[#allocation2 + $0xc0] sm:$0xff]
  %v1865 = vld [vmem:[#allocation2 + $0xc8] sm:$0xff]
  %v1866 = vld [vmem:[#allocation2 + $0xd0] sm:$0xff]
  %v1867 = vld [vmem:[#allocation2 + $0xd8] sm:$0xff]
  %v1868 = vld [vmem:[#allocation2 + $0xe0] sm:$0xff]
  %v1869 = vld [vmem:[#allocation2 + $0xe8] sm:$0xff]
  %v1870 = vld [vmem:[#allocation2 + $0xf0] sm:$0xff]
  %v1871 = vld [vmem:[#allocation2 + $0xf8] sm:$0xff]
  %v1872 = vld [vmem:[#allocation2 + $0x100] sm:$0xff]
  %v1873 = vld [vmem:[#allocation2 + $0x108] sm:$0xff]
  %v1874 = vld [vmem:[#allocation2 + $0x110] sm:$0xff]
  %v1875 = vld [vmem:[#allocation2 + $0x118] sm:$0xff]
  %v1876 = vld [vmem:[#allocation2 + $0x120] sm:$0xff]
  %v1877 = vld [vmem:[#allocation2 + $0x128] sm:$0xff]
  %v1878 = vld [vmem:[#allocation2 + $0x130] sm:$0xff]
  %v1879 = vld [vmem:[#allocation2 + $0x138] sm:$0xff]
  %v1880 = vld [vmem:[#allocation2 + $0x140] sm:$0xff]
  %v1881 = vld [vmem:[#allocation2 + $0x9] sm:$0xff]
  %v1882 = vld [vmem:[#allocation2 + $0x11] sm:$0xff]
  %v1883 = vld [vmem:[#allocation2 + $0x19] sm:$0xff]
  %v1884 = vld [vmem:[#allocation2 + $0x21] sm:$0xff]
  %v1885 = vld [vmem:[#allocation2 + $0x29] sm:$0xff]
  %v1886 = vld [vmem:[#allocation2 + $0x31] sm:$0xff]
  %v1887 = vld [vmem:[#allocation2 + $0x39] sm:$0xff]
  %v1888 = vld [vmem:[#allocation2 + $0x41] sm:$0xff]
  %v1889 = vld [vmem:[#allocation2 + $0x49] sm:$0xff]
  %v1890 = vld [vmem:[#allocation2 + $0x51] sm:$0xff]
  %v1891 = vld [vmem:[#allocation2 + $0x59] sm:$0xff]
  %v1892 = vld [vmem:[#allocation2 + $0x61] sm:$0xff]
  %v1893 = vld [vmem:[#allocation2 + $0x69] sm:$0xff]
  %v1894 = vld [vmem:[#allocation2 + $0x71] sm:$0xff]
  %v1895 = vld [vmem:[#allocation2 + $0x79] sm:$0xff]
  %v1896 = vld [vmem:[#allocation2 + $0x81] sm:$0xff]
  %v1897 = vld [vmem:[#allocation2 + $0x89] sm:$0xff]
  %v1898 = vld [vmem:[#allocation2 + $0x91] sm:$0xff]
  %v1899 = vld [vmem:[#allocation2 + $0x99] sm:$0xff]
  %v1900 = vld [vmem:[#allocation2 + $0xa1] sm:$0xff]
  %v1901 = vld [vmem:[#allocation2 + $0xa9] sm:$0xff]
  %v1902 = vld [vmem:[#allocation2 + $0xb1] sm:$0xff]
  %v1903 = vld [vmem:[#allocation2 + $0xb9] sm:$0xff]
  %v1904 = vld [vmem:[#allocation2 + $0xc1] sm:$0xff]
  %v1905 = vld [vmem:[#allocation2 + $0xc9] sm:$0xff]
  %v1906 = vld [vmem:[#allocation2 + $0xd1] sm:$0xff]
  %v1907 = vld [vmem:[#allocation2 + $0xd9] sm:$0xff]
  %v1908 = vld [vmem:[#allocation2 + $0xe1] sm:$0xff]
  %v1909 = vld [vmem:[#allocation2 + $0xe9] sm:$0xff]
  %v1910 = vld [vmem:[#allocation2 + $0xf1] sm:$0xff]
  %v1911 = vld [vmem:[#allocation2 + $0xf9] sm:$0xff]
  %v1912 = vld [vmem:[#allocation2 + $0x101] sm:$0xff]
  %v1913 = vld [vmem:[#allocation2 + $0x109] sm:$0xff]
  %v1914 = vld [vmem:[#allocation2 + $0x111] sm:$0xff]
  %v1915 = vld [vmem:[#allocation2 + $0x119] sm:$0xff]
  %v1916 = vld [vmem:[#allocation2 + $0x121] sm:$0xff]
  %v1917 = vld [vmem:[#allocation2 + $0x129] sm:$0xff]
  %v1918 = vld [vmem:[#allocation2 + $0x131] sm:$0xff]
  %v1919 = vld [vmem:[#allocation2 + $0x139] sm:$0xff]
  %v1920 = vld [vmem:[#allocation2 + $0x141] sm:$0xff]
  %v1921 = vld [vmem:[#allocation2 + $0x147] sm:$0xff]
  %v1922 = vld [vmem:[#allocation2 + $0x14f] sm:$0xff]
  %v1923 = vld [vmem:[#allocation2 + $0x148] sm:$0xff]
  %v1924 = vld [vmem:[#allocation2 + $0x150] sm:$0xff]
  %v1925 = vld [vmem:[#allocation2 + $0x149] sm:$0xff]
  %v1926 = vld [vmem:[#allocation2 + $0x151] sm:$0xff]
  %v1927 = vld [vmem:[#allocation2 + $0x157] sm:$0xff]
  %v1928 = vld [vmem:[#allocation2 + $0x15f] sm:$0xff]
  %v1929 = vld [vmem:[#allocation2 + $0x158] sm:$0xff]
  %v1930 = vld [vmem:[#allocation2 + $0x160] sm:$0xff]
  %v1931 = vld [vmem:[#allocation2 + $0x159] sm:$0xff]
  %v1932 = vld [vmem:[#allocation2 + $0x161] sm:$0xff]
  %1973 = vrot.lane.b32.xlu0 %v1841, 8
  %v1974 = vpop.permute.xlu0 %1973
  %1975 = vrot.lane.b32.xlu0 %v1842, 8
  %v1976 = vpop.permute.xlu0 %1975
  %1977 = vrot.lane.b32.xlu0 %v1843, 8
  %v1978 = vpop.permute.xlu0 %1977
  %1979 = vrot.lane.b32.xlu0 %v1844, 8
  %v1980 = vpop.permute.xlu0 %1979
  %1981 = vrot.lane.b32.xlu0 %v1845, 8
  %v1982 = vpop.permute.xlu0 %1981
  %1983 = vrot.lane.b32.xlu0 %v1846, 8
  %v1984 = vpop.permute.xlu0 %1983
  %1985 = vrot.lane.b32.xlu0 %v1847, 8
  %v1986 = vpop.permute.xlu0 %1985
  %1987 = vrot.lane.b32.xlu0 %v1848, 8
  %v1988 = vpop.permute.xlu0 %1987
  %1989 = vrot.lane.b32.xlu0 %v1849, 8
  %v1990 = vpop.permute.xlu0 %1989
  %1991 = vrot.lane.b32.xlu0 %v1850, 8
  %v1992 = vpop.permute.xlu0 %1991
  %1993 = vrot.lane.b32.xlu0 %v1851, 8
  %v1994 = vpop.permute.xlu0 %1993
  %1995 = vrot.lane.b32.xlu0 %v1852, 8
  %v1996 = vpop.permute.xlu0 %1995
  %1997 = vrot.lane.b32.xlu0 %v1853, 8
  %v1998 = vpop.permute.xlu0 %1997
  %1999 = vrot.lane.b32.xlu0 %v1854, 8
  %v2000 = vpop.permute.xlu0 %1999
  %2001 = vrot.lane.b32.xlu0 %v1855, 8
  %v2002 = vpop.permute.xlu0 %2001
  %2003 = vrot.lane.b32.xlu0 %v1856, 8
  %v2004 = vpop.permute.xlu0 %2003
  %2005 = vrot.lane.b32.xlu0 %v1857, 8
  %v2006 = vpop.permute.xlu0 %2005
  %2007 = vrot.lane.b32.xlu0 %v1858, 8
  %v2008 = vpop.permute.xlu0 %2007
  %2009 = vrot.lane.b32.xlu0 %v1859, 8
  %v2010 = vpop.permute.xlu0 %2009
  %2011 = vrot.lane.b32.xlu0 %v1860, 8
  %v2012 = vpop.permute.xlu0 %2011
  %2013 = vrot.lane.b32.xlu0 %v1861, 8
  %v2014 = vpop.permute.xlu0 %2013
  %2015 = vrot.lane.b32.xlu0 %v1862, 8
  %v2016 = vpop.permute.xlu0 %2015
  %2017 = vrot.lane.b32.xlu0 %v1863, 8
  %v2018 = vpop.permute.xlu0 %2017
  %2019 = vrot.lane.b32.xlu0 %v1864, 8
  %v2020 = vpop.permute.xlu0 %2019
  %2021 = vrot.lane.b32.xlu0 %v1865, 8
  %v2022 = vpop.permute.xlu0 %2021
  %2023 = vrot.lane.b32.xlu0 %v1866, 8
  %v2024 = vpop.permute.xlu0 %2023
  %2025 = vrot.lane.b32.xlu0 %v1867, 8
  %v2026 = vpop.permute.xlu0 %2025
  %2027 = vrot.lane.b32.xlu0 %v1868, 8
  %v2028 = vpop.permute.xlu0 %2027
  %2029 = vrot.lane.b32.xlu0 %v1869, 8
  %v2030 = vpop.permute.xlu0 %2029
  %2031 = vrot.lane.b32.xlu0 %v1870, 8
  %v2032 = vpop.permute.xlu0 %2031
  %2033 = vrot.lane.b32.xlu0 %v1871, 8
  %v2034 = vpop.permute.xlu0 %2033
  %2035 = vrot.lane.b32.xlu0 %v1872, 8
  %v2036 = vpop.permute.xlu0 %2035
  %2037 = vrot.lane.b32.xlu0 %v1873, 8
  %v2038 = vpop.permute.xlu0 %2037
  %2039 = vrot.lane.b32.xlu0 %v1874, 8
  %v2040 = vpop.permute.xlu0 %2039
  %2041 = vrot.lane.b32.xlu0 %v1875, 8
  %v2042 = vpop.permute.xlu0 %2041
  %2043 = vrot.lane.b32.xlu0 %v1876, 8
  %v2044 = vpop.permute.xlu0 %2043
  %2045 = vrot.lane.b32.xlu0 %v1877, 8
  %v2046 = vpop.permute.xlu0 %2045
  %2047 = vrot.lane.b32.xlu0 %v1878, 8
  %v2048 = vpop.permute.xlu0 %2047
  %2049 = vrot.lane.b32.xlu0 %v1879, 8
  %v2050 = vpop.permute.xlu0 %2049
  %2051 = vrot.lane.b32.xlu0 %v1880, 8
  %v2052 = vpop.permute.xlu0 %2051
  %2133 = vrot.lane.b32.xlu0 %v1881, 16
  %v2134 = vpop.permute.xlu0 %2133
  %2135 = vrot.lane.b32.xlu0 %v1882, 16
  %v2136 = vpop.permute.xlu0 %2135
  %2137 = vrot.lane.b32.xlu0 %v1883, 16
  %v2138 = vpop.permute.xlu0 %2137
  %2139 = vrot.lane.b32.xlu0 %v1884, 16
  %v2140 = vpop.permute.xlu0 %2139
  %2141 = vrot.lane.b32.xlu0 %v1885, 16
  %v2142 = vpop.permute.xlu0 %2141
  %2143 = vrot.lane.b32.xlu0 %v1886, 16
  %v2144 = vpop.permute.xlu0 %2143
  %2145 = vrot.lane.b32.xlu0 %v1887, 16
  %v2146 = vpop.permute.xlu0 %2145
  %2147 = vrot.lane.b32.xlu0 %v1888, 16
  %v2148 = vpop.permute.xlu0 %2147
  %2149 = vrot.lane.b32.xlu0 %v1889, 16
  %v2150 = vpop.permute.xlu0 %2149
  %2151 = vrot.lane.b32.xlu0 %v1890, 16
  %v2152 = vpop.permute.xlu0 %2151
  %2153 = vrot.lane.b32.xlu0 %v1891, 16
  %v2154 = vpop.permute.xlu0 %2153
  %2155 = vrot.lane.b32.xlu0 %v1892, 16
  %v2156 = vpop.permute.xlu0 %2155
  %2157 = vrot.lane.b32.xlu0 %v1893, 16
  %v2158 = vpop.permute.xlu0 %2157
  %2159 = vrot.lane.b32.xlu0 %v1894, 16
  %v2160 = vpop.permute.xlu0 %2159
  %2161 = vrot.lane.b32.xlu0 %v1895, 16
  %v2162 = vpop.permute.xlu0 %2161
  %2163 = vrot.lane.b32.xlu0 %v1896, 16
  %v2164 = vpop.permute.xlu0 %2163
  %2165 = vrot.lane.b32.xlu0 %v1897, 16
  %v2166 = vpop.permute.xlu0 %2165
  %2167 = vrot.lane.b32.xlu0 %v1898, 16
  %v2168 = vpop.permute.xlu0 %2167
  %2169 = vrot.lane.b32.xlu0 %v1899, 16
  %v2170 = vpop.permute.xlu0 %2169
  %2171 = vrot.lane.b32.xlu0 %v1900, 16
  %v2172 = vpop.permute.xlu0 %2171
  %2173 = vrot.lane.b32.xlu0 %v1901, 16
  %v2174 = vpop.permute.xlu0 %2173
  %2175 = vrot.lane.b32.xlu0 %v1902, 16
  %v2176 = vpop.permute.xlu0 %2175
  %2177 = vrot.lane.b32.xlu0 %v1903, 16
  %v2178 = vpop.permute.xlu0 %2177
  %2179 = vrot.lane.b32.xlu0 %v1904, 16
  %v2180 = vpop.permute.xlu0 %2179
  %2181 = vrot.lane.b32.xlu0 %v1905, 16
  %v2182 = vpop.permute.xlu0 %2181
  %2183 = vrot.lane.b32.xlu0 %v1906, 16
  %v2184 = vpop.permute.xlu0 %2183
  %2185 = vrot.lane.b32.xlu0 %v1907, 16
  %v2186 = vpop.permute.xlu0 %2185
  %2187 = vrot.lane.b32.xlu0 %v1908, 16
  %v2188 = vpop.permute.xlu0 %2187
  %2189 = vrot.lane.b32.xlu0 %v1909, 16
  %v2190 = vpop.permute.xlu0 %2189
  %2191 = vrot.lane.b32.xlu0 %v1910, 16
  %v2192 = vpop.permute.xlu0 %2191
  %2193 = vrot.lane.b32.xlu0 %v1911, 16
  %v2194 = vpop.permute.xlu0 %2193
  %2195 = vrot.lane.b32.xlu0 %v1912, 16
  %v2196 = vpop.permute.xlu0 %2195
  %2197 = vrot.lane.b32.xlu0 %v1913, 16
  %v2198 = vpop.permute.xlu0 %2197
  %2199 = vrot.lane.b32.xlu0 %v1914, 16
  %v2200 = vpop.permute.xlu0 %2199
  %2201 = vrot.lane.b32.xlu0 %v1915, 16
  %v2202 = vpop.permute.xlu0 %2201
  %2203 = vrot.lane.b32.xlu0 %v1916, 16
  %v2204 = vpop.permute.xlu0 %2203
  %2205 = vrot.lane.b32.xlu0 %v1917, 16
  %v2206 = vpop.permute.xlu0 %2205
  %2207 = vrot.lane.b32.xlu0 %v1918, 16
  %v2208 = vpop.permute.xlu0 %2207
  %2209 = vrot.lane.b32.xlu0 %v1919, 16
  %v2210 = vpop.permute.xlu0 %2209
  %2211 = vrot.lane.b32.xlu0 %v1920, 16
  %v2212 = vpop.permute.xlu0 %2211
  %2293 = vrot.lane.b32.xlu0 %v1803, 24
  %v2294 = vpop.permute.xlu0 %2293
  %2295 = vrot.lane.b32.xlu0 %v1804, 24
  %v2296 = vpop.permute.xlu0 %2295
  %2297 = vrot.lane.b32.xlu0 %v1805, 24
  %v2298 = vpop.permute.xlu0 %2297
  %2299 = vrot.lane.b32.xlu0 %v1806, 24
  %v2300 = vpop.permute.xlu0 %2299
  %2301 = vrot.lane.b32.xlu0 %v1807, 24
  %v2302 = vpop.permute.xlu0 %2301
  %2303 = vrot.lane.b32.xlu0 %v1808, 24
  %v2304 = vpop.permute.xlu0 %2303
  %2305 = vrot.lane.b32.xlu0 %v1809, 24
  %v2306 = vpop.permute.xlu0 %2305
  %2307 = vrot.lane.b32.xlu0 %v1810, 24
  %v2308 = vpop.permute.xlu0 %2307
  %2309 = vrot.lane.b32.xlu0 %v1811, 24
  %v2310 = vpop.permute.xlu0 %2309
  %2311 = vrot.lane.b32.xlu0 %v1812, 24
  %v2312 = vpop.permute.xlu0 %2311
  %2313 = vrot.lane.b32.xlu0 %v1813, 24
  %v2314 = vpop.permute.xlu0 %2313
  %2315 = vrot.lane.b32.xlu0 %v1814, 24
  %v2316 = vpop.permute.xlu0 %2315
  %2317 = vrot.lane.b32.xlu0 %v1815, 24
  %v2318 = vpop.permute.xlu0 %2317
  %2319 = vrot.lane.b32.xlu0 %v1816, 24
  %v2320 = vpop.permute.xlu0 %2319
  %2321 = vrot.lane.b32.xlu0 %v1817, 24
  %v2322 = vpop.permute.xlu0 %2321
  %2323 = vrot.lane.b32.xlu0 %v1818, 24
  %v2324 = vpop.permute.xlu0 %2323
  %2325 = vrot.lane.b32.xlu0 %v1819, 24
  %v2326 = vpop.permute.xlu0 %2325
  %2327 = vrot.lane.b32.xlu0 %v1820, 24
  %v2328 = vpop.permute.xlu0 %2327
  %2329 = vrot.lane.b32.xlu0 %v1821, 24
  %v2330 = vpop.permute.xlu0 %2329
  %2331 = vrot.lane.b32.xlu0 %v1822, 24
  %v2332 = vpop.permute.xlu0 %2331
  %2333 = vrot.lane.b32.xlu0 %v1823, 24
  %v2334 = vpop.permute.xlu0 %2333
  %2335 = vrot.lane.b32.xlu0 %v1824, 24
  %v2336 = vpop.permute.xlu0 %2335
  %2337 = vrot.lane.b32.xlu0 %v1825, 24
  %v2338 = vpop.permute.xlu0 %2337
  %2339 = vrot.lane.b32.xlu0 %v1826, 24
  %v2340 = vpop.permute.xlu0 %2339
  %2341 = vrot.lane.b32.xlu0 %v1827, 24
  %v2342 = vpop.permute.xlu0 %2341
  %2343 = vrot.lane.b32.xlu0 %v1828, 24
  %v2344 = vpop.permute.xlu0 %2343
  %2345 = vrot.lane.b32.xlu0 %v1829, 24
  %v2346 = vpop.permute.xlu0 %2345
  %2347 = vrot.lane.b32.xlu0 %v1830, 24
  %v2348 = vpop.permute.xlu0 %2347
  %2349 = vrot.lane.b32.xlu0 %v1831, 24
  %v2350 = vpop.permute.xlu0 %2349
  %2351 = vrot.lane.b32.xlu0 %v1832, 24
  %v2352 = vpop.permute.xlu0 %2351
  %2353 = vrot.lane.b32.xlu0 %v1833, 24
  %v2354 = vpop.permute.xlu0 %2353
  %2355 = vrot.lane.b32.xlu0 %v1834, 24
  %v2356 = vpop.permute.xlu0 %2355
  %2357 = vrot.lane.b32.xlu0 %v1835, 24
  %v2358 = vpop.permute.xlu0 %2357
  %2359 = vrot.lane.b32.xlu0 %v1836, 24
  %v2360 = vpop.permute.xlu0 %2359
  %2361 = vrot.lane.b32.xlu0 %v1837, 24
  %v2362 = vpop.permute.xlu0 %2361
  %2363 = vrot.lane.b32.xlu0 %v1838, 24
  %v2364 = vpop.permute.xlu0 %2363
  %2365 = vrot.lane.b32.xlu0 %v1839, 24
  %v2366 = vpop.permute.xlu0 %2365
  %2367 = vrot.lane.b32.xlu0 %v1840, 24
  %v2368 = vpop.permute.xlu0 %2367
  %2369 = vrot.lane.b32.xlu0 %v1921, 24
  %v2370 = vpop.permute.xlu0 %2369
  %2371 = vrot.lane.b32.xlu0 %v1922, 24
  %v2372 = vpop.permute.xlu0 %2371
  %2415 = vrot.lane.b32.xlu0 %v1843, 32
  %v2416 = vpop.permute.xlu0 %2415
  %2417 = vrot.lane.b32.xlu0 %v1844, 32
  %v2418 = vpop.permute.xlu0 %2417
  %2419 = vrot.lane.b32.xlu0 %v1845, 32
  %v2420 = vpop.permute.xlu0 %2419
  %2421 = vrot.lane.b32.xlu0 %v1846, 32
  %v2422 = vpop.permute.xlu0 %2421
  %2423 = vrot.lane.b32.xlu0 %v1847, 32
  %v2424 = vpop.permute.xlu0 %2423
  %2425 = vrot.lane.b32.xlu0 %v1848, 32
  %v2426 = vpop.permute.xlu0 %2425
  %2427 = vrot.lane.b32.xlu0 %v1849, 32
  %v2428 = vpop.permute.xlu0 %2427
  %2429 = vrot.lane.b32.xlu0 %v1850, 32
  %v2430 = vpop.permute.xlu0 %2429
  %2431 = vrot.lane.b32.xlu0 %v1851, 32
  %v2432 = vpop.permute.xlu0 %2431
  %2433 = vrot.lane.b32.xlu0 %v1852, 32
  %v2434 = vpop.permute.xlu0 %2433
  %2435 = vrot.lane.b32.xlu0 %v1853, 32
  %v2436 = vpop.permute.xlu0 %2435
  %2437 = vrot.lane.b32.xlu0 %v1854, 32
  %v2438 = vpop.permute.xlu0 %2437
  %2439 = vrot.lane.b32.xlu0 %v1855, 32
  %v2440 = vpop.permute.xlu0 %2439
  %2441 = vrot.lane.b32.xlu0 %v1856, 32
  %v2442 = vpop.permute.xlu0 %2441
  %2443 = vrot.lane.b32.xlu0 %v1857, 32
  %v2444 = vpop.permute.xlu0 %2443
  %2445 = vrot.lane.b32.xlu0 %v1858, 32
  %v2446 = vpop.permute.xlu0 %2445
  %2447 = vrot.lane.b32.xlu0 %v1859, 32
  %v2448 = vpop.permute.xlu0 %2447
  %2449 = vrot.lane.b32.xlu0 %v1860, 32
  %v2450 = vpop.permute.xlu0 %2449
  %2451 = vrot.lane.b32.xlu0 %v1861, 32
  %v2452 = vpop.permute.xlu0 %2451
  %2453 = vrot.lane.b32.xlu0 %v1862, 32
  %v2454 = vpop.permute.xlu0 %2453
  %2455 = vrot.lane.b32.xlu0 %v1863, 32
  %v2456 = vpop.permute.xlu0 %2455
  %2457 = vrot.lane.b32.xlu0 %v1864, 32
  %v2458 = vpop.permute.xlu0 %2457
  %2459 = vrot.lane.b32.xlu0 %v1865, 32
  %v2460 = vpop.permute.xlu0 %2459
  %2461 = vrot.lane.b32.xlu0 %v1866, 32
  %v2462 = vpop.permute.xlu0 %2461
  %2463 = vrot.lane.b32.xlu0 %v1867, 32
  %v2464 = vpop.permute.xlu0 %2463
  %2465 = vrot.lane.b32.xlu0 %v1868, 32
  %v2466 = vpop.permute.xlu0 %2465
  %2467 = vrot.lane.b32.xlu0 %v1869, 32
  %v2468 = vpop.permute.xlu0 %2467
  %2469 = vrot.lane.b32.xlu0 %v1870, 32
  %v2470 = vpop.permute.xlu0 %2469
  %2471 = vrot.lane.b32.xlu0 %v1871, 32
  %v2472 = vpop.permute.xlu0 %2471
  %2473 = vrot.lane.b32.xlu0 %v1872, 32
  %v2474 = vpop.permute.xlu0 %2473
  %2475 = vrot.lane.b32.xlu0 %v1873, 32
  %v2476 = vpop.permute.xlu0 %2475
  %2477 = vrot.lane.b32.xlu0 %v1874, 32
  %v2478 = vpop.permute.xlu0 %2477
  %2479 = vrot.lane.b32.xlu0 %v1875, 32
  %v2480 = vpop.permute.xlu0 %2479
  %2481 = vrot.lane.b32.xlu0 %v1876, 32
  %v2482 = vpop.permute.xlu0 %2481
  %2483 = vrot.lane.b32.xlu0 %v1877, 32
  %v2484 = vpop.permute.xlu0 %2483
  %2485 = vrot.lane.b32.xlu0 %v1878, 32
  %v2486 = vpop.permute.xlu0 %2485
  %2487 = vrot.lane.b32.xlu0 %v1879, 32
  %v2488 = vpop.permute.xlu0 %2487
  %2489 = vrot.lane.b32.xlu0 %v1880, 32
  %v2490 = vpop.permute.xlu0 %2489
  %2491 = vrot.lane.b32.xlu0 %v1923, 32
  %v2492 = vpop.permute.xlu0 %2491
  %2493 = vrot.lane.b32.xlu0 %v1924, 32
  %v2494 = vpop.permute.xlu0 %2493
  %2537 = vrot.lane.b32.xlu0 %v1883, 40
  %v2538 = vpop.permute.xlu0 %2537
  %2539 = vrot.lane.b32.xlu0 %v1884, 40
  %v2540 = vpop.permute.xlu0 %2539
  %2541 = vrot.lane.b32.xlu0 %v1885, 40
  %v2542 = vpop.permute.xlu0 %2541
  %2543 = vrot.lane.b32.xlu0 %v1886, 40
  %v2544 = vpop.permute.xlu0 %2543
  %2545 = vrot.lane.b32.xlu0 %v1887, 40
  %v2546 = vpop.permute.xlu0 %2545
  %2547 = vrot.lane.b32.xlu0 %v1888, 40
  %v2548 = vpop.permute.xlu0 %2547
  %2549 = vrot.lane.b32.xlu0 %v1889, 40
  %v2550 = vpop.permute.xlu0 %2549
  %2551 = vrot.lane.b32.xlu0 %v1890, 40
  %v2552 = vpop.permute.xlu0 %2551
  %2553 = vrot.lane.b32.xlu0 %v1891, 40
  %v2554 = vpop.permute.xlu0 %2553
  %2555 = vrot.lane.b32.xlu0 %v1892, 40
  %v2556 = vpop.permute.xlu0 %2555
  %2557 = vrot.lane.b32.xlu0 %v1893, 40
  %v2558 = vpop.permute.xlu0 %2557
  %2559 = vrot.lane.b32.xlu0 %v1894, 40
  %v2560 = vpop.permute.xlu0 %2559
  %2561 = vrot.lane.b32.xlu0 %v1895, 40
  %v2562 = vpop.permute.xlu0 %2561
  %2563 = vrot.lane.b32.xlu0 %v1896, 40
  %v2564 = vpop.permute.xlu0 %2563
  %2565 = vrot.lane.b32.xlu0 %v1897, 40
  %v2566 = vpop.permute.xlu0 %2565
  %2567 = vrot.lane.b32.xlu0 %v1898, 40
  %v2568 = vpop.permute.xlu0 %2567
  %2569 = vrot.lane.b32.xlu0 %v1899, 40
  %v2570 = vpop.permute.xlu0 %2569
  %2571 = vrot.lane.b32.xlu0 %v1900, 40
  %v2572 = vpop.permute.xlu0 %2571
  %2573 = vrot.lane.b32.xlu0 %v1901, 40
  %v2574 = vpop.permute.xlu0 %2573
  %2575 = vrot.lane.b32.xlu0 %v1902, 40
  %v2576 = vpop.permute.xlu0 %2575
  %2577 = vrot.lane.b32.xlu0 %v1903, 40
  %v2578 = vpop.permute.xlu0 %2577
  %2579 = vrot.lane.b32.xlu0 %v1904, 40
  %v2580 = vpop.permute.xlu0 %2579
  %2581 = vrot.lane.b32.xlu0 %v1905, 40
  %v2582 = vpop.permute.xlu0 %2581
  %2583 = vrot.lane.b32.xlu0 %v1906, 40
  %v2584 = vpop.permute.xlu0 %2583
  %2585 = vrot.lane.b32.xlu0 %v1907, 40
  %v2586 = vpop.permute.xlu0 %2585
  %2587 = vrot.lane.b32.xlu0 %v1908, 40
  %v2588 = vpop.permute.xlu0 %2587
  %2589 = vrot.lane.b32.xlu0 %v1909, 40
  %v2590 = vpop.permute.xlu0 %2589
  %2591 = vrot.lane.b32.xlu0 %v1910, 40
  %v2592 = vpop.permute.xlu0 %2591
  %2593 = vrot.lane.b32.xlu0 %v1911, 40
  %v2594 = vpop.permute.xlu0 %2593
  %2595 = vrot.lane.b32.xlu0 %v1912, 40
  %v2596 = vpop.permute.xlu0 %2595
  %2597 = vrot.lane.b32.xlu0 %v1913, 40
  %v2598 = vpop.permute.xlu0 %2597
  %2599 = vrot.lane.b32.xlu0 %v1914, 40
  %v2600 = vpop.permute.xlu0 %2599
  %2601 = vrot.lane.b32.xlu0 %v1915, 40
  %v2602 = vpop.permute.xlu0 %2601
  %2603 = vrot.lane.b32.xlu0 %v1916, 40
  %v2604 = vpop.permute.xlu0 %2603
  %2605 = vrot.lane.b32.xlu0 %v1917, 40
  %v2606 = vpop.permute.xlu0 %2605
  %2607 = vrot.lane.b32.xlu0 %v1918, 40
  %v2608 = vpop.permute.xlu0 %2607
  %2609 = vrot.lane.b32.xlu0 %v1919, 40
  %v2610 = vpop.permute.xlu0 %2609
  %2611 = vrot.lane.b32.xlu0 %v1920, 40
  %v2612 = vpop.permute.xlu0 %2611
  %2613 = vrot.lane.b32.xlu0 %v1925, 40
  %v2614 = vpop.permute.xlu0 %2613
  %2615 = vrot.lane.b32.xlu0 %v1926, 40
  %v2616 = vpop.permute.xlu0 %2615
  %2659 = vrot.lane.b32.xlu0 %v1805, 48
  %v2660 = vpop.permute.xlu0 %2659
  %2661 = vrot.lane.b32.xlu0 %v1806, 48
  %v2662 = vpop.permute.xlu0 %2661
  %2663 = vrot.lane.b32.xlu0 %v1807, 48
  %v2664 = vpop.permute.xlu0 %2663
  %2665 = vrot.lane.b32.xlu0 %v1808, 48
  %v2666 = vpop.permute.xlu0 %2665
  %2667 = vrot.lane.b32.xlu0 %v1809, 48
  %v2668 = vpop.permute.xlu0 %2667
  %2669 = vrot.lane.b32.xlu0 %v1810, 48
  %v2670 = vpop.permute.xlu0 %2669
  %2671 = vrot.lane.b32.xlu0 %v1811, 48
  %v2672 = vpop.permute.xlu0 %2671
  %2673 = vrot.lane.b32.xlu0 %v1812, 48
  %v2674 = vpop.permute.xlu0 %2673
  %2675 = vrot.lane.b32.xlu0 %v1813, 48
  %v2676 = vpop.permute.xlu0 %2675
  %2677 = vrot.lane.b32.xlu0 %v1814, 48
  %v2678 = vpop.permute.xlu0 %2677
  %2679 = vrot.lane.b32.xlu0 %v1815, 48
  %v2680 = vpop.permute.xlu0 %2679
  %2681 = vrot.lane.b32.xlu0 %v1816, 48
  %v2682 = vpop.permute.xlu0 %2681
  %2683 = vrot.lane.b32.xlu0 %v1817, 48
  %v2684 = vpop.permute.xlu0 %2683
  %2685 = vrot.lane.b32.xlu0 %v1818, 48
  %v2686 = vpop.permute.xlu0 %2685
  %2687 = vrot.lane.b32.xlu0 %v1819, 48
  %v2688 = vpop.permute.xlu0 %2687
  %2689 = vrot.lane.b32.xlu0 %v1820, 48
  %v2690 = vpop.permute.xlu0 %2689
  %2691 = vrot.lane.b32.xlu0 %v1821, 48
  %v2692 = vpop.permute.xlu0 %2691
  %2693 = vrot.lane.b32.xlu0 %v1822, 48
  %v2694 = vpop.permute.xlu0 %2693
  %2695 = vrot.lane.b32.xlu0 %v1823, 48
  %v2696 = vpop.permute.xlu0 %2695
  %2697 = vrot.lane.b32.xlu0 %v1824, 48
  %v2698 = vpop.permute.xlu0 %2697
  %2699 = vrot.lane.b32.xlu0 %v1825, 48
  %v2700 = vpop.permute.xlu0 %2699
  %2701 = vrot.lane.b32.xlu0 %v1826, 48
  %v2702 = vpop.permute.xlu0 %2701
  %2703 = vrot.lane.b32.xlu0 %v1827, 48
  %v2704 = vpop.permute.xlu0 %2703
  %2705 = vrot.lane.b32.xlu0 %v1828, 48
  %v2706 = vpop.permute.xlu0 %2705
  %2707 = vrot.lane.b32.xlu0 %v1829, 48
  %v2708 = vpop.permute.xlu0 %2707
  %2709 = vrot.lane.b32.xlu0 %v1830, 48
  %v2710 = vpop.permute.xlu0 %2709
  %2711 = vrot.lane.b32.xlu0 %v1831, 48
  %v2712 = vpop.permute.xlu0 %2711
  %2713 = vrot.lane.b32.xlu0 %v1832, 48
  %v2714 = vpop.permute.xlu0 %2713
  %2715 = vrot.lane.b32.xlu0 %v1833, 48
  %v2716 = vpop.permute.xlu0 %2715
  %2717 = vrot.lane.b32.xlu0 %v1834, 48
  %v2718 = vpop.permute.xlu0 %2717
  %2719 = vrot.lane.b32.xlu0 %v1835, 48
  %v2720 = vpop.permute.xlu0 %2719
  %2721 = vrot.lane.b32.xlu0 %v1836, 48
  %v2722 = vpop.permute.xlu0 %2721
  %2723 = vrot.lane.b32.xlu0 %v1837, 48
  %v2724 = vpop.permute.xlu0 %2723
  %2725 = vrot.lane.b32.xlu0 %v1838, 48
  %v2726 = vpop.permute.xlu0 %2725
  %2727 = vrot.lane.b32.xlu0 %v1839, 48
  %v2728 = vpop.permute.xlu0 %2727
  %2729 = vrot.lane.b32.xlu0 %v1840, 48
  %v2730 = vpop.permute.xlu0 %2729
  %2731 = vrot.lane.b32.xlu0 %v1921, 48
  %v2732 = vpop.permute.xlu0 %2731
  %2733 = vrot.lane.b32.xlu0 %v1922, 48
  %v2734 = vpop.permute.xlu0 %2733
  %2735 = vrot.lane.b32.xlu0 %v1927, 48
  %v2736 = vpop.permute.xlu0 %2735
  %2737 = vrot.lane.b32.xlu0 %v1928, 48
  %v2738 = vpop.permute.xlu0 %2737
  %2781 = vrot.lane.b32.xlu0 %v1845, 56
  %v2782 = vpop.permute.xlu0 %2781
  %2783 = vrot.lane.b32.xlu0 %v1846, 56
  %v2784 = vpop.permute.xlu0 %2783
  %2785 = vrot.lane.b32.xlu0 %v1847, 56
  %v2786 = vpop.permute.xlu0 %2785
  %2787 = vrot.lane.b32.xlu0 %v1848, 56
  %v2788 = vpop.permute.xlu0 %2787
  %2789 = vrot.lane.b32.xlu0 %v1849, 56
  %v2790 = vpop.permute.xlu0 %2789
  %2791 = vrot.lane.b32.xlu0 %v1850, 56
  %v2792 = vpop.permute.xlu0 %2791
  %2793 = vrot.lane.b32.xlu0 %v1851, 56
  %v2794 = vpop.permute.xlu0 %2793
  %2795 = vrot.lane.b32.xlu0 %v1852, 56
  %v2796 = vpop.permute.xlu0 %2795
  %2797 = vrot.lane.b32.xlu0 %v1853, 56
  %v2798 = vpop.permute.xlu0 %2797
  %2799 = vrot.lane.b32.xlu0 %v1854, 56
  %v2800 = vpop.permute.xlu0 %2799
  %2801 = vrot.lane.b32.xlu0 %v1855, 56
  %v2802 = vpop.permute.xlu0 %2801
  %2803 = vrot.lane.b32.xlu0 %v1856, 56
  %v2804 = vpop.permute.xlu0 %2803
  %2805 = vrot.lane.b32.xlu0 %v1857, 56
  %v2806 = vpop.permute.xlu0 %2805
  %2807 = vrot.lane.b32.xlu0 %v1858, 56
  %v2808 = vpop.permute.xlu0 %2807
  %2809 = vrot.lane.b32.xlu0 %v1859, 56
  %v2810 = vpop.permute.xlu0 %2809
  %2811 = vrot.lane.b32.xlu0 %v1860, 56
  %v2812 = vpop.permute.xlu0 %2811
  %2813 = vrot.lane.b32.xlu0 %v1861, 56
  %v2814 = vpop.permute.xlu0 %2813
  %2815 = vrot.lane.b32.xlu0 %v1862, 56
  %v2816 = vpop.permute.xlu0 %2815
  %2817 = vrot.lane.b32.xlu0 %v1863, 56
  %v2818 = vpop.permute.xlu0 %2817
  %2819 = vrot.lane.b32.xlu0 %v1864, 56
  %v2820 = vpop.permute.xlu0 %2819
  %2821 = vrot.lane.b32.xlu0 %v1865, 56
  %v2822 = vpop.permute.xlu0 %2821
  %2823 = vrot.lane.b32.xlu0 %v1866, 56
  %v2824 = vpop.permute.xlu0 %2823
  %2825 = vrot.lane.b32.xlu0 %v1867, 56
  %v2826 = vpop.permute.xlu0 %2825
  %2827 = vrot.lane.b32.xlu0 %v1868, 56
  %v2828 = vpop.permute.xlu0 %2827
  %2829 = vrot.lane.b32.xlu0 %v1869, 56
  %v2830 = vpop.permute.xlu0 %2829
  %2831 = vrot.lane.b32.xlu0 %v1870, 56
  %v2832 = vpop.permute.xlu0 %2831
  %2833 = vrot.lane.b32.xlu0 %v1871, 56
  %v2834 = vpop.permute.xlu0 %2833
  %2835 = vrot.lane.b32.xlu0 %v1872, 56
  %v2836 = vpop.permute.xlu0 %2835
  %2837 = vrot.lane.b32.xlu0 %v1873, 56
  %v2838 = vpop.permute.xlu0 %2837
  %2839 = vrot.lane.b32.xlu0 %v1874, 56
  %v2840 = vpop.permute.xlu0 %2839
  %2841 = vrot.lane.b32.xlu0 %v1875, 56
  %v2842 = vpop.permute.xlu0 %2841
  %2843 = vrot.lane.b32.xlu0 %v1876, 56
  %v2844 = vpop.permute.xlu0 %2843
  %2845 = vrot.lane.b32.xlu0 %v1877, 56
  %v2846 = vpop.permute.xlu0 %2845
  %2847 = vrot.lane.b32.xlu0 %v1878, 56
  %v2848 = vpop.permute.xlu0 %2847
  %2849 = vrot.lane.b32.xlu0 %v1879, 56
  %v2850 = vpop.permute.xlu0 %2849
  %2851 = vrot.lane.b32.xlu0 %v1880, 56
  %v2852 = vpop.permute.xlu0 %2851
  %2853 = vrot.lane.b32.xlu0 %v1923, 56
  %v2854 = vpop.permute.xlu0 %2853
  %2855 = vrot.lane.b32.xlu0 %v1924, 56
  %v2856 = vpop.permute.xlu0 %2855
  %2857 = vrot.lane.b32.xlu0 %v1929, 56
  %v2858 = vpop.permute.xlu0 %2857
  %2859 = vrot.lane.b32.xlu0 %v1930, 56
  %v2860 = vpop.permute.xlu0 %2859
  %2903 = vrot.lane.b32.xlu0 %v1885, 64
  %v2904 = vpop.permute.xlu0 %2903
  %2905 = vrot.lane.b32.xlu0 %v1886, 64
  %v2906 = vpop.permute.xlu0 %2905
  %2907 = vrot.lane.b32.xlu0 %v1887, 64
  %v2908 = vpop.permute.xlu0 %2907
  %2909 = vrot.lane.b32.xlu0 %v1888, 64
  %v2910 = vpop.permute.xlu0 %2909
  %2911 = vrot.lane.b32.xlu0 %v1889, 64
  %v2912 = vpop.permute.xlu0 %2911
  %2913 = vrot.lane.b32.xlu0 %v1890, 64
  %v2914 = vpop.permute.xlu0 %2913
  %2915 = vrot.lane.b32.xlu0 %v1891, 64
  %v2916 = vpop.permute.xlu0 %2915
  %2917 = vrot.lane.b32.xlu0 %v1892, 64
  %v2918 = vpop.permute.xlu0 %2917
  %2919 = vrot.lane.b32.xlu0 %v1893, 64
  %v2920 = vpop.permute.xlu0 %2919
  %2921 = vrot.lane.b32.xlu0 %v1894, 64
  %v2922 = vpop.permute.xlu0 %2921
  %2923 = vrot.lane.b32.xlu0 %v1895, 64
  %v2924 = vpop.permute.xlu0 %2923
  %2925 = vrot.lane.b32.xlu0 %v1896, 64
  %v2926 = vpop.permute.xlu0 %2925
  %2927 = vrot.lane.b32.xlu0 %v1897, 64
  %v2928 = vpop.permute.xlu0 %2927
  %2929 = vrot.lane.b32.xlu0 %v1898, 64
  %v2930 = vpop.permute.xlu0 %2929
  %2931 = vrot.lane.b32.xlu0 %v1899, 64
  %v2932 = vpop.permute.xlu0 %2931
  %2933 = vrot.lane.b32.xlu0 %v1900, 64
  %v2934 = vpop.permute.xlu0 %2933
  %2935 = vrot.lane.b32.xlu0 %v1901, 64
  %v2936 = vpop.permute.xlu0 %2935
  %2937 = vrot.lane.b32.xlu0 %v1902, 64
  %v2938 = vpop.permute.xlu0 %2937
  %2939 = vrot.lane.b32.xlu0 %v1903, 64
  %v2940 = vpop.permute.xlu0 %2939
  %2941 = vrot.lane.b32.xlu0 %v1904, 64
  %v2942 = vpop.permute.xlu0 %2941
  %2943 = vrot.lane.b32.xlu0 %v1905, 64
  %v2944 = vpop.permute.xlu0 %2943
  %2945 = vrot.lane.b32.xlu0 %v1906, 64
  %v2946 = vpop.permute.xlu0 %2945
  %2947 = vrot.lane.b32.xlu0 %v1907, 64
  %v2948 = vpop.permute.xlu0 %2947
  %2949 = vrot.lane.b32.xlu0 %v1908, 64
  %v2950 = vpop.permute.xlu0 %2949
  %2951 = vrot.lane.b32.xlu0 %v1909, 64
  %v2952 = vpop.permute.xlu0 %2951
  %2953 = vrot.lane.b32.xlu0 %v1910, 64
  %v2954 = vpop.permute.xlu0 %2953
  %2955 = vrot.lane.b32.xlu0 %v1911, 64
  %v2956 = vpop.permute.xlu0 %2955
  %2957 = vrot.lane.b32.xlu0 %v1912, 64
  %v2958 = vpop.permute.xlu0 %2957
  %2959 = vrot.lane.b32.xlu0 %v1913, 64
  %v2960 = vpop.permute.xlu0 %2959
  %2961 = vrot.lane.b32.xlu0 %v1914, 64
  %v2962 = vpop.permute.xlu0 %2961
  %2963 = vrot.lane.b32.xlu0 %v1915, 64
  %v2964 = vpop.permute.xlu0 %2963
  %2965 = vrot.lane.b32.xlu0 %v1916, 64
  %v2966 = vpop.permute.xlu0 %2965
  %2967 = vrot.lane.b32.xlu0 %v1917, 64
  %v2968 = vpop.permute.xlu0 %2967
  %2969 = vrot.lane.b32.xlu0 %v1918, 64
  %v2970 = vpop.permute.xlu0 %2969
  %2971 = vrot.lane.b32.xlu0 %v1919, 64
  %v2972 = vpop.permute.xlu0 %2971
  %2973 = vrot.lane.b32.xlu0 %v1920, 64
  %v2974 = vpop.permute.xlu0 %2973
  %2975 = vrot.lane.b32.xlu0 %v1925, 64
  %v2976 = vpop.permute.xlu0 %2975
  %2977 = vrot.lane.b32.xlu0 %v1926, 64
  %v2978 = vpop.permute.xlu0 %2977
  %2979 = vrot.lane.b32.xlu0 %v1931, 64
  %v2980 = vpop.permute.xlu0 %2979
  %2981 = vrot.lane.b32.xlu0 %v1932, 64
  %v2982 = vpop.permute.xlu0 %2981
  %v3023 = vsel %vm481, %v1801, %v1974
  %v3024 = vsel %vm481, %v1802, %v1976
  %v3025 = vsel %vm481, %v1803, %v1978
  %v3026 = vsel %vm481, %v1804, %v1980
  %v3027 = vsel %vm481, %v1805, %v1982
  %v3028 = vsel %vm481, %v1806, %v1984
  %v3029 = vsel %vm481, %v1807, %v1986
  %v3030 = vsel %vm481, %v1808, %v1988
  %v3031 = vsel %vm481, %v1809, %v1990
  %v3032 = vsel %vm481, %v1810, %v1992
  %v3033 = vsel %vm481, %v1811, %v1994
  %v3034 = vsel %vm481, %v1812, %v1996
  %v3035 = vsel %vm481, %v1813, %v1998
  %v3036 = vsel %vm481, %v1814, %v2000
  %v3037 = vsel %vm481, %v1815, %v2002
  %v3038 = vsel %vm481, %v1816, %v2004
  %v3039 = vsel %vm481, %v1817, %v2006
  %v3040 = vsel %vm481, %v1818, %v2008
  %v3041 = vsel %vm481, %v1819, %v2010
  %v3042 = vsel %vm481, %v1820, %v2012
  %v3043 = vsel %vm481, %v1821, %v2014
  %v3044 = vsel %vm481, %v1822, %v2016
  %v3045 = vsel %vm481, %v1823, %v2018
  %v3046 = vsel %vm481, %v1824, %v2020
  %v3047 = vsel %vm481, %v1825, %v2022
  %v3048 = vsel %vm481, %v1826, %v2024
  %v3049 = vsel %vm481, %v1827, %v2026
  %v3050 = vsel %vm481, %v1828, %v2028
  %v3051 = vsel %vm481, %v1829, %v2030
  %v3052 = vsel %vm481, %v1830, %v2032
  %v3053 = vsel %vm481, %v1831, %v2034
  %v3054 = vsel %vm481, %v1832, %v2036
  %v3055 = vsel %vm481, %v1833, %v2038
  %v3056 = vsel %vm481, %v1834, %v2040
  %v3057 = vsel %vm481, %v1835, %v2042
  %v3058 = vsel %vm481, %v1836, %v2044
  %v3059 = vsel %vm481, %v1837, %v2046
  %v3060 = vsel %vm481, %v1838, %v2048
  %v3061 = vsel %vm481, %v1839, %v2050
  %v3062 = vsel %vm481, %v1840, %v2052
  %vm3063 = vcmask 130048
  %v3064 = vsel %vm3063, %v3023, %v2134
  %v3065 = vsel %vm3063, %v3024, %v2136
  %v3066 = vsel %vm3063, %v3025, %v2138
  %v3067 = vsel %vm3063, %v3026, %v2140
  %v3068 = vsel %vm3063, %v3027, %v2142
  %v3069 = vsel %vm3063, %v3028, %v2144
  %v3070 = vsel %vm3063, %v3029, %v2146
  %v3071 = vsel %vm3063, %v3030, %v2148
  %v3072 = vsel %vm3063, %v3031, %v2150
  %v3073 = vsel %vm3063, %v3032, %v2152
  %v3074 = vsel %vm3063, %v3033, %v2154
  %v3075 = vsel %vm3063, %v3034, %v2156
  %v3076 = vsel %vm3063, %v3035, %v2158
  %v3077 = vsel %vm3063, %v3036, %v2160
  %v3078 = vsel %vm3063, %v3037, %v2162
  %v3079 = vsel %vm3063, %v3038, %v2164
  %v3080 = vsel %vm3063, %v3039, %v2166
  %v3081 = vsel %vm3063, %v3040, %v2168
  %v3082 = vsel %vm3063, %v3041, %v2170
  %v3083 = vsel %vm3063, %v3042, %v2172
  %v3084 = vsel %vm3063, %v3043, %v2174
  %v3085 = vsel %vm3063, %v3044, %v2176
  %v3086 = vsel %vm3063, %v3045, %v2178
  %v3087 = vsel %vm3063, %v3046, %v2180
  %v3088 = vsel %vm3063, %v3047, %v2182
  %v3089 = vsel %vm3063, %v3048, %v2184
  %v3090 = vsel %vm3063, %v3049, %v2186
  %v3091 = vsel %vm3063, %v3050, %v2188
  %v3092 = vsel %vm3063, %v3051, %v2190
  %v3093 = vsel %vm3063, %v3052, %v2192
  %v3094 = vsel %vm3063, %v3053, %v2194
  %v3095 = vsel %vm3063, %v3054, %v2196
  %v3096 = vsel %vm3063, %v3055, %v2198
  %v3097 = vsel %vm3063, %v3056, %v2200
  %v3098 = vsel %vm3063, %v3057, %v2202
  %v3099 = vsel %vm3063, %v3058, %v2204
  %v3100 = vsel %vm3063, %v3059, %v2206
  %v3101 = vsel %vm3063, %v3060, %v2208
  %v3102 = vsel %vm3063, %v3061, %v2210
  %v3103 = vsel %vm3063, %v3062, %v2212
  %vm3104 = vcmask 195584
  %v3105 = vsel %vm3104, %v3064, %v2294
  %v3106 = vsel %vm3104, %v3065, %v2296
  %v3107 = vsel %vm3104, %v3066, %v2298
  %v3108 = vsel %vm3104, %v3067, %v2300
  %v3109 = vsel %vm3104, %v3068, %v2302
  %v3110 = vsel %vm3104, %v3069, %v2304
  %v3111 = vsel %vm3104, %v3070, %v2306
  %v3112 = vsel %vm3104, %v3071, %v2308
  %v3113 = vsel %vm3104, %v3072, %v2310
  %v3114 = vsel %vm3104, %v3073, %v2312
  %v3115 = vsel %vm3104, %v3074, %v2314
  %v3116 = vsel %vm3104, %v3075, %v2316
  %v3117 = vsel %vm3104, %v3076, %v2318
  %v3118 = vsel %vm3104, %v3077, %v2320
  %v3119 = vsel %vm3104, %v3078, %v2322
  %v3120 = vsel %vm3104, %v3079, %v2324
  %v3121 = vsel %vm3104, %v3080, %v2326
  %v3122 = vsel %vm3104, %v3081, %v2328
  %v3123 = vsel %vm3104, %v3082, %v2330
  %v3124 = vsel %vm3104, %v3083, %v2332
  %v3125 = vsel %vm3104, %v3084, %v2334
  %v3126 = vsel %vm3104, %v3085, %v2336
  %v3127 = vsel %vm3104, %v3086, %v2338
  %v3128 = vsel %vm3104, %v3087, %v2340
  %v3129 = vsel %vm3104, %v3088, %v2342
  %v3130 = vsel %vm3104, %v3089, %v2344
  %v3131 = vsel %vm3104, %v3090, %v2346
  %v3132 = vsel %vm3104, %v3091, %v2348
  %v3133 = vsel %vm3104, %v3092, %v2350
  %v3134 = vsel %vm3104, %v3093, %v2352
  %v3135 = vsel %vm3104, %v3094, %v2354
  %v3136 = vsel %vm3104, %v3095, %v2356
  %v3137 = vsel %vm3104, %v3096, %v2358
  %v3138 = vsel %vm3104, %v3097, %v2360
  %v3139 = vsel %vm3104, %v3098, %v2362
  %v3140 = vsel %vm3104, %v3099, %v2364
  %v3141 = vsel %vm3104, %v3100, %v2366
  %v3142 = vsel %vm3104, %v3101, %v2368
  %v3143 = vsel %vm3104, %v3102, %v2370
  %v3144 = vsel %vm3104, %v3103, %v2372
  %vm3145 = vcmask 261120
  %v3146 = vsel %vm3145, %v3105, %v2416
  %v3147 = vsel %vm3145, %v3106, %v2418
  %v3148 = vsel %vm3145, %v3107, %v2420
  %v3149 = vsel %vm3145, %v3108, %v2422
  %v3150 = vsel %vm3145, %v3109, %v2424
  %v3151 = vsel %vm3145, %v3110, %v2426
  %v3152 = vsel %vm3145, %v3111, %v2428
  %v3153 = vsel %vm3145, %v3112, %v2430
  %v3154 = vsel %vm3145, %v3113, %v2432
  %v3155 = vsel %vm3145, %v3114, %v2434
  %v3156 = vsel %vm3145, %v3115, %v2436
  %v3157 = vsel %vm3145, %v3116, %v2438
  %v3158 = vsel %vm3145, %v3117, %v2440
  %v3159 = vsel %vm3145, %v3118, %v2442
  %v3160 = vsel %vm3145, %v3119, %v2444
  %v3161 = vsel %vm3145, %v3120, %v2446
  %v3162 = vsel %vm3145, %v3121, %v2448
  %v3163 = vsel %vm3145, %v3122, %v2450
  %v3164 = vsel %vm3145, %v3123, %v2452
  %v3165 = vsel %vm3145, %v3124, %v2454
  %v3166 = vsel %vm3145, %v3125, %v2456
  %v3167 = vsel %vm3145, %v3126, %v2458
  %v3168 = vsel %vm3145, %v3127, %v2460
  %v3169 = vsel %vm3145, %v3128, %v2462
  %v3170 = vsel %vm3145, %v3129, %v2464
  %v3171 = vsel %vm3145, %v3130, %v2466
  %v3172 = vsel %vm3145, %v3131, %v2468
  %v3173 = vsel %vm3145, %v3132, %v2470
  %v3174 = vsel %vm3145, %v3133, %v2472
  %v3175 = vsel %vm3145, %v3134, %v2474
  %v3176 = vsel %vm3145, %v3135, %v2476
  %v3177 = vsel %vm3145, %v3136, %v2478
  %v3178 = vsel %vm3145, %v3137, %v2480
  %v3179 = vsel %vm3145, %v3138, %v2482
  %v3180 = vsel %vm3145, %v3139, %v2484
  %v3181 = vsel %vm3145, %v3140, %v2486
  %v3182 = vsel %vm3145, %v3141, %v2488
  %v3183 = vsel %vm3145, %v3142, %v2490
  %v3184 = vsel %vm3145, %v3143, %v2492
  %v3185 = vsel %vm3145, %v3144, %v2494
  %vm3186 = vcmask 326656
  %v3187 = vsel %vm3186, %v3146, %v2538
  %v3188 = vsel %vm3186, %v3147, %v2540
  %v3189 = vsel %vm3186, %v3148, %v2542
  %v3190 = vsel %vm3186, %v3149, %v2544
  %v3191 = vsel %vm3186, %v3150, %v2546
  %v3192 = vsel %vm3186, %v3151, %v2548
  %v3193 = vsel %vm3186, %v3152, %v2550
  %v3194 = vsel %vm3186, %v3153, %v2552
  %v3195 = vsel %vm3186, %v3154, %v2554
  %v3196 = vsel %vm3186, %v3155, %v2556
  %v3197 = vsel %vm3186, %v3156, %v2558
  %v3198 = vsel %vm3186, %v3157, %v2560
  %v3199 = vsel %vm3186, %v3158, %v2562
  %v3200 = vsel %vm3186, %v3159, %v2564
  %v3201 = vsel %vm3186, %v3160, %v2566
  %v3202 = vsel %vm3186, %v3161, %v2568
  %v3203 = vsel %vm3186, %v3162, %v2570
  %v3204 = vsel %vm3186, %v3163, %v2572
  %v3205 = vsel %vm3186, %v3164, %v2574
  %v3206 = vsel %vm3186, %v3165, %v2576
  %v3207 = vsel %vm3186, %v3166, %v2578
  %v3208 = vsel %vm3186, %v3167, %v2580
  %v3209 = vsel %vm3186, %v3168, %v2582
  %v3210 = vsel %vm3186, %v3169, %v2584
  %v3211 = vsel %vm3186, %v3170, %v2586
  %v3212 = vsel %vm3186, %v3171, %v2588
  %v3213 = vsel %vm3186, %v3172, %v2590
  %v3214 = vsel %vm3186, %v3173, %v2592
  %v3215 = vsel %vm3186, %v3174, %v2594
  %v3216 = vsel %vm3186, %v3175, %v2596
  %v3217 = vsel %vm3186, %v3176, %v2598
  %v3218 = vsel %vm3186, %v3177, %v2600
  %v3219 = vsel %vm3186, %v3178, %v2602
  %v3220 = vsel %vm3186, %v3179, %v2604
  %v3221 = vsel %vm3186, %v3180, %v2606
  %v3222 = vsel %vm3186, %v3181, %v2608
  %v3223 = vsel %vm3186, %v3182, %v2610
  %v3224 = vsel %vm3186, %v3183, %v2612
  %v3225 = vsel %vm3186, %v3184, %v2614
  %v3226 = vsel %vm3186, %v3185, %v2616
  %vm3227 = vcmask 392192
  %v3228 = vsel %vm3227, %v3187, %v2660
  %v3229 = vsel %vm3227, %v3188, %v2662
  %v3230 = vsel %vm3227, %v3189, %v2664
  %v3231 = vsel %vm3227, %v3190, %v2666
  %v3232 = vsel %vm3227, %v3191, %v2668
  %v3233 = vsel %vm3227, %v3192, %v2670
  %v3234 = vsel %vm3227, %v3193, %v2672
  %v3235 = vsel %vm3227, %v3194, %v2674
  %v3236 = vsel %vm3227, %v3195, %v2676
  %v3237 = vsel %vm3227, %v3196, %v2678
  %v3238 = vsel %vm3227, %v3197, %v2680
  %v3239 = vsel %vm3227, %v3198, %v2682
  %v3240 = vsel %vm3227, %v3199, %v2684
  %v3241 = vsel %vm3227, %v3200, %v2686
  %v3242 = vsel %vm3227, %v3201, %v2688
  %v3243 = vsel %vm3227, %v3202, %v2690
  %v3244 = vsel %vm3227, %v3203, %v2692
  %v3245 = vsel %vm3227, %v3204, %v2694
  %v3246 = vsel %vm3227, %v3205, %v2696
  %v3247 = vsel %vm3227, %v3206, %v2698
  %v3248 = vsel %vm3227, %v3207, %v2700
  %v3249 = vsel %vm3227, %v3208, %v2702
  %v3250 = vsel %vm3227, %v3209, %v2704
  %v3251 = vsel %vm3227, %v3210, %v2706
  %v3252 = vsel %vm3227, %v3211, %v2708
  %v3253 = vsel %vm3227, %v3212, %v2710
  %v3254 = vsel %vm3227, %v3213, %v2712
  %v3255 = vsel %vm3227, %v3214, %v2714
  %v3256 = vsel %vm3227, %v3215, %v2716
  %v3257 = vsel %vm3227, %v3216, %v2718
  %v3258 = vsel %vm3227, %v3217, %v2720
  %v3259 = vsel %vm3227, %v3218, %v2722
  %v3260 = vsel %vm3227, %v3219, %v2724
  %v3261 = vsel %vm3227, %v3220, %v2726
  %v3262 = vsel %vm3227, %v3221, %v2728
  %v3263 = vsel %vm3227, %v3222, %v2730
  %v3264 = vsel %vm3227, %v3223, %v2732
  %v3265 = vsel %vm3227, %v3224, %v2734
  %v3266 = vsel %vm3227, %v3225, %v2736
  %v3267 = vsel %vm3227, %v3226, %v2738
  %vm3268 = vcmask 457728
  %v3269 = vsel %vm3268, %v3228, %v2782
  %v3270 = vsel %vm3268, %v3229, %v2784
  %v3271 = vsel %vm3268, %v3230, %v2786
  %v3272 = vsel %vm3268, %v3231, %v2788
  %v3273 = vsel %vm3268, %v3232, %v2790
  %v3274 = vsel %vm3268, %v3233, %v2792
  %v3275 = vsel %vm3268, %v3234, %v2794
  %v3276 = vsel %vm3268, %v3235, %v2796
  %v3277 = vsel %vm3268, %v3236, %v2798
  %v3278 = vsel %vm3268, %v3237, %v2800
  %v3279 = vsel %vm3268, %v3238, %v2802
  %v3280 = vsel %vm3268, %v3239, %v2804
  %v3281 = vsel %vm3268, %v3240, %v2806
  %v3282 = vsel %vm3268, %v3241, %v2808
  %v3283 = vsel %vm3268, %v3242, %v2810
  %v3284 = vsel %vm3268, %v3243, %v2812
  %v3285 = vsel %vm3268, %v3244, %v2814
  %v3286 = vsel %vm3268, %v3245, %v2816
  %v3287 = vsel %vm3268, %v3246, %v2818
  %v3288 = vsel %vm3268, %v3247, %v2820
  %v3289 = vsel %vm3268, %v3248, %v2822
  %v3290 = vsel %vm3268, %v3249, %v2824
  %v3291 = vsel %vm3268, %v3250, %v2826
  %v3292 = vsel %vm3268, %v3251, %v2828
  %v3293 = vsel %vm3268, %v3252, %v2830
  %v3294 = vsel %vm3268, %v3253, %v2832
  %v3295 = vsel %vm3268, %v3254, %v2834
  %v3296 = vsel %vm3268, %v3255, %v2836
  %v3297 = vsel %vm3268, %v3256, %v2838
  %v3298 = vsel %vm3268, %v3257, %v2840
  %v3299 = vsel %vm3268, %v3258, %v2842
  %v3300 = vsel %vm3268, %v3259, %v2844
  %v3301 = vsel %vm3268, %v3260, %v2846
  %v3302 = vsel %vm3268, %v3261, %v2848
  %v3303 = vsel %vm3268, %v3262, %v2850
  %v3304 = vsel %vm3268, %v3263, %v2852
  %v3305 = vsel %vm3268, %v3264, %v2854
  %v3306 = vsel %vm3268, %v3265, %v2856
  %v3307 = vsel %vm3268, %v3266, %v2858
  %v3308 = vsel %vm3268, %v3267, %v2860
  %vm3309 = vcmask 523264
  %v3310 = vsel %vm3309, %v3269, %v2904
  %v3311 = vsel %vm3309, %v3270, %v2906
  %v3312 = vsel %vm3309, %v3271, %v2908
  %v3313 = vsel %vm3309, %v3272, %v2910
  %v3314 = vsel %vm3309, %v3273, %v2912
  %v3315 = vsel %vm3309, %v3274, %v2914
  %v3316 = vsel %vm3309, %v3275, %v2916
  %v3317 = vsel %vm3309, %v3276, %v2918
  %v3318 = vsel %vm3309, %v3277, %v2920
  %v3319 = vsel %vm3309, %v3278, %v2922
  %v3320 = vsel %vm3309, %v3279, %v2924
  %v3321 = vsel %vm3309, %v3280, %v2926
  %v3322 = vsel %vm3309, %v3281, %v2928
  %v3323 = vsel %vm3309, %v3282, %v2930
  %v3324 = vsel %vm3309, %v3283, %v2932
  %v3325 = vsel %vm3309, %v3284, %v2934
  %v3326 = vsel %vm3309, %v3285, %v2936
  %v3327 = vsel %vm3309, %v3286, %v2938
  %v3328 = vsel %vm3309, %v3287, %v2940
  %v3329 = vsel %vm3309, %v3288, %v2942
  %v3330 = vsel %vm3309, %v3289, %v2944
  %v3331 = vsel %vm3309, %v3290, %v2946
  %v3332 = vsel %vm3309, %v3291, %v2948
  %v3333 = vsel %vm3309, %v3292, %v2950
  %v3334 = vsel %vm3309, %v3293, %v2952
  %v3335 = vsel %vm3309, %v3294, %v2954
  %v3336 = vsel %vm3309, %v3295, %v2956
  %v3337 = vsel %vm3309, %v3296, %v2958
  %v3338 = vsel %vm3309, %v3297, %v2960
  %v3339 = vsel %vm3309, %v3298, %v2962
  %v3340 = vsel %vm3309, %v3299, %v2964
  %v3341 = vsel %vm3309, %v3300, %v2966
  %v3342 = vsel %vm3309, %v3301, %v2968
  %v3343 = vsel %vm3309, %v3302, %v2970
  %v3344 = vsel %vm3309, %v3303, %v2972
  %v3345 = vsel %vm3309, %v3304, %v2974
  %v3346 = vsel %vm3309, %v3305, %v2976
  %v3347 = vsel %vm3309, %v3306, %v2978
  %v3348 = vsel %vm3309, %v3307, %v2980
  %v3349 = vsel %vm3309, %v3308, %v2982
  %v3350 = vpack.c.bf16 %v3311, %v3310
  %v3351 = vpack.c.bf16 %v3313, %v3312
  %v3352 = vpack.c.bf16 %v3315, %v3314
  %v3353 = vpack.c.bf16 %v3317, %v3316
  %v3354 = vpack.c.bf16 %v3319, %v3318
  %v3355 = vpack.c.bf16 %v3321, %v3320
  %v3356 = vpack.c.bf16 %v3323, %v3322
  %v3357 = vpack.c.bf16 %v3325, %v3324
  %v3358 = vpack.c.bf16 %v3327, %v3326
  %v3359 = vpack.c.bf16 %v3329, %v3328
  %v3360 = vpack.c.bf16 %v3331, %v3330
  %v3361 = vpack.c.bf16 %v3333, %v3332
  %v3362 = vpack.c.bf16 %v3335, %v3334
  %v3363 = vpack.c.bf16 %v3337, %v3336
  %v3364 = vpack.c.bf16 %v3339, %v3338
  %v3365 = vpack.c.bf16 %v3341, %v3340
  %v3366 = vpack.c.bf16 %v3343, %v3342
  %v3367 = vpack.c.bf16 %v3345, %v3344
  %v3368 = vpack.c.bf16 %v3347, %v3346
  %v3369 = vpack.c.bf16 %v3349, %v3348
  %v3370 = vld [vmem:[%s3] sm:$0xf]
  %v3371 = vld [vmem:[%s3 + $0x4] sm:$0xf]
  %v3372 = vld [vmem:[%s3 + $0x8] sm:$0xf]
  %v3373 = vld [vmem:[%s3 + $0xc] sm:$0xf]
  %v3374 = vld [vmem:[%s3 + $0x10] sm:$0xf]
  %v3375 = vld [vmem:[%s3 + $0x14] sm:$0xf]
  %v3376 = vld [vmem:[%s3 + $0x18] sm:$0xf]
  %v3377 = vld [vmem:[%s3 + $0x1c] sm:$0xf]
  %v3378 = vld [vmem:[%s3 + $0x20] sm:$0xf]
  %v3388 = vunpack.c.l.b16 %v3370
  %v3389 = vunpack.c.l.b16 %v3371
  %v3390 = vunpack.c.l.b16 %v3372
  %v3391 = vunpack.c.l.b16 %v3373
  %v3392 = vunpack.c.l.b16 %v3374
  %v3393 = vunpack.c.l.b16 %v3375
  %v3394 = vunpack.c.l.b16 %v3376
  %v3395 = vunpack.c.l.b16 %v3377
  %v3396 = vunpack.c.l.b16 %v3378
  %v3397 = vpack.c.b16 %v3389, %v3388
  %v3398 = vpack.c.b16 %v3391, %v3390
  %v3399 = vpack.c.b16 %v3393, %v3392
  %v3400 = vpack.c.b16 %v3395, %v3394
  %v3401 = vpack.c.b16 %v3396, %v3396
  %vm3406 = vcmask 588800
  %v3408 = vsel %vm3406, %v3350, 0
  %v3411 = vsel %vm3406, %v3351, 0
  %v3414 = vsel %vm3406, %v3352, 0
  %v3417 = vsel %vm3406, %v3353, 0
  %v3420 = vsel %vm3406, %v3354, 0
  %v3423 = vsel %vm3406, %v3355, 0
  %v3426 = vsel %vm3406, %v3356, 0
  %v3429 = vsel %vm3406, %v3357, 0
  %v3432 = vsel %vm3406, %v3358, 0
  %v3435 = vsel %vm3406, %v3359, 0
  %v3438 = vsel %vm3406, %v3360, 0
  %v3441 = vsel %vm3406, %v3361, 0
  %v3444 = vsel %vm3406, %v3362, 0
  %v3447 = vsel %vm3406, %v3363, 0
  %v3450 = vsel %vm3406, %v3364, 0
  %v3453 = vsel %vm3406, %v3365, 0
  %v3456 = vsel %vm3406, %v3366, 0
  %v3459 = vsel %vm3406, %v3367, 0
  %v3462 = vsel %vm3406, %v3368, 0
  %v3465 = vsel %vm3406, %v3369, 0
  %vm3467 = vcmask 1043456
  %v3469 = vsel %vm3467, %v3401, 0
  %3471 = vmatprep.subr.bf16.mxu0 0
  %3472 = vmatpush1.bf16.msra.mxu0 0
  %3473 = vmatprep.subr.bf16.mxu0 0
  %3474 = vmatpush1.bf16.msra.mxu0 0
  %3475 = vmatprep.subr.bf16.mxu0 0
  %3476 = vmatpush1.bf16.msra.mxu0 0
  %3477 = vmatprep.subr.bf16.mxu0 0
  %3478 = vmatpush1.bf16.msra.mxu0 %v3469
  %3479 = vmatprep.subr.bf16.mxu0 0
  %3480 = vmatpush1.bf16.msra.mxu0 %v3400
  %3481 = vmatprep.subr.bf16.mxu0 0
  %3482 = vmatpush1.bf16.msra.mxu0 %v3399
  %3483 = vmatprep.subr.bf16.mxu0 0
  %3484 = vmatpush1.bf16.msra.mxu0 %v3398
  %3485 = vmatprep.subr.bf16.mxu0 0
  %3486 = vmatpush1.bf16.msra.mxu0 %v3397
  %3487 = vmatprep.subr.bf16.mxu0 0
  %3488 = vmatpush2.bf16.msra.mxu0 0
  %3489 = vmatprep.subr.bf16.mxu0 0
  %3490 = vmatpush2.bf16.msra.mxu0 0
  %3491 = vmatprep.subr.bf16.mxu0 0
  %3492 = vmatpush2.bf16.msra.mxu0 0
  %3493 = vmatprep.subr.bf16.mxu0 0
  %3494 = vmatpush2.bf16.msra.mxu0 0
  %3495 = vmatprep.subr.bf16.mxu0 0
  %3496 = vmatpush2.bf16.msra.mxu0 0
  %3497 = vmatprep.subr.bf16.mxu0 0
  %3498 = vmatpush2.bf16.msra.mxu0 0
  %3499 = vmatprep.subr.bf16.mxu0 0
  %3500 = vmatpush2.bf16.msra.mxu0 0
  %3501 = vmatprep.subr.bf16.mxu0 0
  %3502 = vmatpush2.bf16.msra.mxu0 0
  %3503 = vmatprep.mubr.bf16.mxu0 0
  %3504 = vmatmul.mubr.bf16.gmra.mxu0 %v3408
  %v3505 = vpop.f32.mrf.mxu0
  %v3506 = vadd.f32 0.0, %v3505
  %v3507 = vpop.f32.mrf.mxu0
  %v3508 = vpop.f32.mrf.mxu0
  %v3509 = vadd.f32 0.0, %v3508
  %v3510 = vpop.f32.mrf.mxu0
  %3511 = vmatprep.mubr.bf16.mxu0 0
  %3512 = vmatmul.mubr.bf16.gmra.mxu0 %v3411
  %v3513 = vpop.f32.mrf.mxu0
  %v3514 = vadd.f32 0.0, %v3513
  %v3515 = vpop.f32.mrf.mxu0
  %v3516 = vpop.f32.mrf.mxu0
  %v3517 = vadd.f32 0.0, %v3516
  %v3518 = vpop.f32.mrf.mxu0
  %3519 = vmatprep.mubr.bf16.mxu0 0
  %3520 = vmatmul.mubr.bf16.gmra.mxu0 %v3414
  %v3521 = vpop.f32.mrf.mxu0
  %v3522 = vadd.f32 0.0, %v3521
  %v3523 = vpop.f32.mrf.mxu0
  %v3524 = vpop.f32.mrf.mxu0
  %v3525 = vadd.f32 0.0, %v3524
  %v3526 = vpop.f32.mrf.mxu0
  %3527 = vmatprep.mubr.bf16.mxu0 0
  %3528 = vmatmul.mubr.bf16.gmra.mxu0 %v3417
  %v3529 = vpop.f32.mrf.mxu0
  %v3530 = vadd.f32 0.0, %v3529
  %v3531 = vpop.f32.mrf.mxu0
  %v3532 = vpop.f32.mrf.mxu0
  %v3533 = vadd.f32 0.0, %v3532
  %v3534 = vpop.f32.mrf.mxu0
  %3535 = vmatprep.mubr.bf16.mxu0 0
  %3536 = vmatmul.mubr.bf16.gmra.mxu0 %v3420
  %v3537 = vpop.f32.mrf.mxu0
  %v3538 = vadd.f32 0.0, %v3537
  %v3539 = vpop.f32.mrf.mxu0
  %v3540 = vpop.f32.mrf.mxu0
  %v3541 = vadd.f32 0.0, %v3540
  %v3542 = vpop.f32.mrf.mxu0
  %3543 = vmatprep.mubr.bf16.mxu0 0
  %3544 = vmatmul.mubr.bf16.gmra.mxu0 %v3423
  %v3545 = vpop.f32.mrf.mxu0
  %v3546 = vadd.f32 0.0, %v3545
  %v3547 = vpop.f32.mrf.mxu0
  %v3548 = vpop.f32.mrf.mxu0
  %v3549 = vadd.f32 0.0, %v3548
  %v3550 = vpop.f32.mrf.mxu0
  %3551 = vmatprep.mubr.bf16.mxu0 0
  %3552 = vmatmul.mubr.bf16.gmra.mxu0 %v3426
  %v3553 = vpop.f32.mrf.mxu0
  %v3554 = vadd.f32 0.0, %v3553
  %v3555 = vpop.f32.mrf.mxu0
  %v3556 = vpop.f32.mrf.mxu0
  %v3557 = vadd.f32 0.0, %v3556
  %v3558 = vpop.f32.mrf.mxu0
  %3559 = vmatprep.mubr.bf16.mxu0 0
  %3560 = vmatmul.mubr.bf16.gmra.mxu0 %v3429
  %v3561 = vpop.f32.mrf.mxu0
  %v3562 = vadd.f32 0.0, %v3561
  %v3563 = vpop.f32.mrf.mxu0
  %v3564 = vpop.f32.mrf.mxu0
  %v3565 = vadd.f32 0.0, %v3564
  %v3566 = vpop.f32.mrf.mxu0
  %3567 = vmatprep.mubr.bf16.mxu0 0
  %3568 = vmatmul.mubr.bf16.gmra.mxu0 %v3432
  %v3569 = vpop.f32.mrf.mxu0
  %v3570 = vadd.f32 0.0, %v3569
  %v3571 = vpop.f32.mrf.mxu0
  %v3572 = vpop.f32.mrf.mxu0
  %v3573 = vadd.f32 0.0, %v3572
  %v3574 = vpop.f32.mrf.mxu0
  %3575 = vmatprep.mubr.bf16.mxu0 0
  %3576 = vmatmul.mubr.bf16.gmra.mxu0 %v3435
  %v3577 = vpop.f32.mrf.mxu0
  %v3578 = vadd.f32 0.0, %v3577
  %v3579 = vpop.f32.mrf.mxu0
  %v3580 = vpop.f32.mrf.mxu0
  %v3581 = vadd.f32 0.0, %v3580
  %v3582 = vpop.f32.mrf.mxu0
  %3583 = vmatprep.mubr.bf16.mxu0 0
  %3584 = vmatmul.mubr.bf16.gmra.mxu0 %v3438
  %v3585 = vpop.f32.mrf.mxu0
  %v3586 = vadd.f32 0.0, %v3585
  %v3587 = vpop.f32.mrf.mxu0
  %v3588 = vpop.f32.mrf.mxu0
  %v3589 = vadd.f32 0.0, %v3588
  %v3590 = vpop.f32.mrf.mxu0
  %3591 = vmatprep.mubr.bf16.mxu0 0
  %3592 = vmatmul.mubr.bf16.gmra.mxu0 %v3441
  %v3593 = vpop.f32.mrf.mxu0
  %v3594 = vadd.f32 0.0, %v3593
  %v3595 = vpop.f32.mrf.mxu0
  %v3596 = vpop.f32.mrf.mxu0
  %v3597 = vadd.f32 0.0, %v3596
  %v3598 = vpop.f32.mrf.mxu0
  %3599 = vmatprep.mubr.bf16.mxu0 0
  %3600 = vmatmul.mubr.bf16.gmra.mxu0 %v3444
  %v3601 = vpop.f32.mrf.mxu0
  %v3602 = vadd.f32 0.0, %v3601
  %v3603 = vpop.f32.mrf.mxu0
  %v3604 = vpop.f32.mrf.mxu0
  %v3605 = vadd.f32 0.0, %v3604
  %v3606 = vpop.f32.mrf.mxu0
  %3607 = vmatprep.mubr.bf16.mxu0 0
  %3608 = vmatmul.mubr.bf16.gmra.mxu0 %v3447
  %v3609 = vpop.f32.mrf.mxu0
  %v3610 = vadd.f32 0.0, %v3609
  %v3611 = vpop.f32.mrf.mxu0
  %v3612 = vpop.f32.mrf.mxu0
  %v3613 = vadd.f32 0.0, %v3612
  %v3614 = vpop.f32.mrf.mxu0
  %3615 = vmatprep.mubr.bf16.mxu0 0
  %3616 = vmatmul.mubr.bf16.gmra.mxu0 %v3450
  %v3617 = vpop.f32.mrf.mxu0
  %v3618 = vadd.f32 0.0, %v3617
  %v3619 = vpop.f32.mrf.mxu0
  %v3620 = vpop.f32.mrf.mxu0
  %v3621 = vadd.f32 0.0, %v3620
  %v3622 = vpop.f32.mrf.mxu0
  %3623 = vmatprep.mubr.bf16.mxu0 0
  %3624 = vmatmul.mubr.bf16.gmra.mxu0 %v3453
  %v3625 = vpop.f32.mrf.mxu0
  %v3626 = vadd.f32 0.0, %v3625
  %v3627 = vpop.f32.mrf.mxu0
  %v3628 = vpop.f32.mrf.mxu0
  %v3629 = vadd.f32 0.0, %v3628
  %v3630 = vpop.f32.mrf.mxu0
  %3631 = vmatprep.mubr.bf16.mxu0 0
  %3632 = vmatmul.mubr.bf16.gmra.mxu0 %v3456
  %v3633 = vpop.f32.mrf.mxu0
  %v3634 = vadd.f32 0.0, %v3633
  %v3635 = vpop.f32.mrf.mxu0
  %v3636 = vpop.f32.mrf.mxu0
  %v3637 = vadd.f32 0.0, %v3636
  %v3638 = vpop.f32.mrf.mxu0
  %3639 = vmatprep.mubr.bf16.mxu0 0
  %3640 = vmatmul.mubr.bf16.gmra.mxu0 %v3459
  %v3641 = vpop.f32.mrf.mxu0
  %v3642 = vadd.f32 0.0, %v3641
  %v3643 = vpop.f32.mrf.mxu0
  %v3644 = vpop.f32.mrf.mxu0
  %v3645 = vadd.f32 0.0, %v3644
  %v3646 = vpop.f32.mrf.mxu0
  %3647 = vmatprep.mubr.bf16.mxu0 0
  %3648 = vmatmul.mubr.bf16.gmra.mxu0 %v3462
  %v3649 = vpop.f32.mrf.mxu0
  %v3650 = vadd.f32 0.0, %v3649
  %v3651 = vpop.f32.mrf.mxu0
  %v3652 = vpop.f32.mrf.mxu0
  %v3653 = vadd.f32 0.0, %v3652
  %v3654 = vpop.f32.mrf.mxu0
  %3655 = vmatprep.mubr.bf16.mxu0 0
  %3656 = vmatmul.mubr.bf16.gmra.mxu0 %v3465
  %v3657 = vpop.f32.mrf.mxu0
  %v3658 = vadd.f32 0.0, %v3657
  %v3659 = vpop.f32.mrf.mxu0
  %v3660 = vpop.f32.mrf.mxu0
  %v3661 = vadd.f32 0.0, %v3660
  %v3662 = vpop.f32.mrf.mxu0
  %3663 = vdwg.mxu0
  %v3664 = vld [vmem:[%s4 + $0x2] sm:$0x1]
  %v3665 = vld [vmem:[%s4 + $0x3] sm:$0x1]
  %v3666 = vmul.f32 %v3506, %v611
  %v3667 = vmul.f32 %v3509, %v616
  %v3668 = vmul.f32 %v3514, %v621
  %v3669 = vmul.f32 %v3517, %v626
  %v3670 = vmul.f32 %v3522, %v631
  %v3671 = vmul.f32 %v3525, %v636
  %v3672 = vmul.f32 %v3530, %v641
  %v3673 = vmul.f32 %v3533, %v646
  %v3674 = vmul.f32 %v3538, %v651
  %v3675 = vmul.f32 %v3541, %v656
  %v3676 = vmul.f32 %v3546, %v661
  %v3677 = vmul.f32 %v3549, %v666
  %v3678 = vmul.f32 %v3554, %v671
  %v3679 = vmul.f32 %v3557, %v676
  %v3680 = vmul.f32 %v3562, %v681
  %v3681 = vmul.f32 %v3565, %v686
  %v3682 = vmul.f32 %v3570, %v691
  %v3683 = vmul.f32 %v3573, %v696
  %v3684 = vmul.f32 %v3578, %v701
  %v3685 = vmul.f32 %v3581, %v706
  %v3686 = vmul.f32 %v3586, %v711
  %v3687 = vmul.f32 %v3589, %v716
  %v3688 = vmul.f32 %v3594, %v721
  %v3689 = vmul.f32 %v3597, %v726
  %v3690 = vmul.f32 %v3602, %v731
  %v3691 = vmul.f32 %v3605, %v736
  %v3692 = vmul.f32 %v3610, %v741
  %v3693 = vmul.f32 %v3613, %v746
  %v3694 = vmul.f32 %v3618, %v751
  %v3695 = vmul.f32 %v3621, %v756
  %v3696 = vmul.f32 %v3626, %v761
  %v3697 = vmul.f32 %v3629, %v766
  %v3698 = vmul.f32 %v3634, %v771
  %v3699 = vmul.f32 %v3637, %v776
  %v3700 = vmul.f32 %v3642, %v781
  %v3701 = vmul.f32 %v3645, %v786
  %v3702 = vmul.f32 %v3650, %v791
  %v3703 = vmul.f32 %v3653, %v796
  %v3704 = vmul.f32 %v3658, %v801
  %v3705 = vmul.f32 %v3661, %v806
  %v3706 = vsel %vm481, %v3666, 0.0
  %v3707 = vsel %vm481, %v3667, 0.0
  %v3708 = vadd.f32 %v3706, %v3707
  %v3709 = vsel %vm481, %v3668, 0.0
  %v3710 = vadd.f32 %v3708, %v3709
  %v3711 = vsel %vm481, %v3669, 0.0
  %v3712 = vadd.f32 %v3710, %v3711
  %v3713 = vsel %vm481, %v3670, 0.0
  %v3714 = vadd.f32 %v3712, %v3713
  %v3715 = vsel %vm481, %v3671, 0.0
  %v3716 = vadd.f32 %v3714, %v3715
  %v3717 = vsel %vm481, %v3672, 0.0
  %v3718 = vadd.f32 %v3716, %v3717
  %v3719 = vsel %vm481, %v3673, 0.0
  %v3720 = vadd.f32 %v3718, %v3719
  %v3721 = vsel %vm481, %v3674, 0.0
  %v3722 = vadd.f32 %v3720, %v3721
  %v3723 = vsel %vm481, %v3675, 0.0
  %v3724 = vadd.f32 %v3722, %v3723
  %v3725 = vsel %vm481, %v3676, 0.0
  %v3726 = vadd.f32 %v3724, %v3725
  %v3727 = vsel %vm481, %v3677, 0.0
  %v3728 = vadd.f32 %v3726, %v3727
  %v3729 = vsel %vm481, %v3678, 0.0
  %v3730 = vadd.f32 %v3728, %v3729
  %v3731 = vsel %vm481, %v3679, 0.0
  %v3732 = vadd.f32 %v3730, %v3731
  %v3733 = vsel %vm481, %v3680, 0.0
  %v3734 = vadd.f32 %v3732, %v3733
  %v3735 = vsel %vm481, %v3681, 0.0
  %v3736 = vadd.f32 %v3734, %v3735
  %v3737 = vsel %vm481, %v3682, 0.0
  %v3738 = vadd.f32 %v3736, %v3737
  %v3739 = vsel %vm481, %v3683, 0.0
  %v3740 = vadd.f32 %v3738, %v3739
  %v3741 = vsel %vm481, %v3684, 0.0
  %v3742 = vadd.f32 %v3740, %v3741
  %v3743 = vsel %vm481, %v3685, 0.0
  %v3744 = vadd.f32 %v3742, %v3743
  %v3745 = vsel %vm481, %v3686, 0.0
  %v3746 = vadd.f32 %v3744, %v3745
  %v3747 = vsel %vm481, %v3687, 0.0
  %v3748 = vadd.f32 %v3746, %v3747
  %v3749 = vsel %vm481, %v3688, 0.0
  %v3750 = vadd.f32 %v3748, %v3749
  %v3751 = vsel %vm481, %v3689, 0.0
  %v3752 = vadd.f32 %v3750, %v3751
  %v3753 = vsel %vm481, %v3690, 0.0
  %v3754 = vadd.f32 %v3752, %v3753
  %v3755 = vsel %vm481, %v3691, 0.0
  %v3756 = vadd.f32 %v3754, %v3755
  %v3757 = vsel %vm481, %v3692, 0.0
  %v3758 = vadd.f32 %v3756, %v3757
  %v3759 = vsel %vm481, %v3693, 0.0
  %v3760 = vadd.f32 %v3758, %v3759
  %v3761 = vsel %vm481, %v3694, 0.0
  %v3762 = vadd.f32 %v3760, %v3761
  %v3763 = vsel %vm481, %v3695, 0.0
  %v3764 = vadd.f32 %v3762, %v3763
  %v3765 = vsel %vm481, %v3696, 0.0
  %v3766 = vadd.f32 %v3764, %v3765
  %v3767 = vsel %vm481, %v3697, 0.0
  %v3768 = vadd.f32 %v3766, %v3767
  %v3769 = vsel %vm481, %v3698, 0.0
  %v3770 = vadd.f32 %v3768, %v3769
  %v3771 = vsel %vm481, %v3699, 0.0
  %v3772 = vadd.f32 %v3770, %v3771
  %v3773 = vsel %vm481, %v3700, 0.0
  %v3774 = vadd.f32 %v3772, %v3773
  %v3775 = vsel %vm481, %v3701, 0.0
  %v3776 = vadd.f32 %v3774, %v3775
  %v3777 = vsel %vm481, %v3702, 0.0
  %v3778 = vadd.f32 %v3776, %v3777
  %v3779 = vsel %vm481, %v3703, 0.0
  %v3780 = vadd.f32 %v3778, %v3779
  %v3781 = vsel %vm481, %v3704, 0.0
  %v3782 = vadd.f32 %v3780, %v3781
  %v3783 = vsel %vm481, %v3705, 0.0
  %v3784 = vadd.f32 %v3782, %v3783
  %v3785 = vrot.slane %v3784, 4
  %v3786 = vadd.f32 %v3784, %v3785
  %v3787 = vrot.slane %v3786, 2
  %v3788 = vadd.f32 %v3786, %v3787
  %v3789 = vrot.slane %v3788, 1
  %v3790 = vadd.f32 %v3788, %v3789
  %v3791 = vmul.f32 %v3790, 0.0078125
  %v3792 = vsub.f32 %v3506, %v3791
  %v3793 = vsub.f32 %v3509, %v3791
  %v3794 = vsub.f32 %v3514, %v3791
  %v3795 = vsub.f32 %v3517, %v3791
  %v3796 = vsub.f32 %v3522, %v3791
  %v3797 = vsub.f32 %v3525, %v3791
  %v3798 = vsub.f32 %v3530, %v3791
  %v3799 = vsub.f32 %v3533, %v3791
  %v3800 = vsub.f32 %v3538, %v3791
  %v3801 = vsub.f32 %v3541, %v3791
  %v3802 = vsub.f32 %v3546, %v3791
  %v3803 = vsub.f32 %v3549, %v3791
  %v3804 = vsub.f32 %v3554, %v3791
  %v3805 = vsub.f32 %v3557, %v3791
  %v3806 = vsub.f32 %v3562, %v3791
  %v3807 = vsub.f32 %v3565, %v3791
  %v3808 = vsub.f32 %v3570, %v3791
  %v3809 = vsub.f32 %v3573, %v3791
  %v3810 = vsub.f32 %v3578, %v3791
  %v3811 = vsub.f32 %v3581, %v3791
  %v3812 = vsub.f32 %v3586, %v3791
  %v3813 = vsub.f32 %v3589, %v3791
  %v3814 = vsub.f32 %v3594, %v3791
  %v3815 = vsub.f32 %v3597, %v3791
  %v3816 = vsub.f32 %v3602, %v3791
  %v3817 = vsub.f32 %v3605, %v3791
  %v3818 = vsub.f32 %v3610, %v3791
  %v3819 = vsub.f32 %v3613, %v3791
  %v3820 = vsub.f32 %v3618, %v3791
  %v3821 = vsub.f32 %v3621, %v3791
  %v3822 = vsub.f32 %v3626, %v3791
  %v3823 = vsub.f32 %v3629, %v3791
  %v3824 = vsub.f32 %v3634, %v3791
  %v3825 = vsub.f32 %v3637, %v3791
  %v3826 = vsub.f32 %v3642, %v3791
  %v3827 = vsub.f32 %v3645, %v3791
  %v3828 = vsub.f32 %v3650, %v3791
  %v3829 = vsub.f32 %v3653, %v3791
  %v3830 = vsub.f32 %v3658, %v3791
  %v3831 = vsub.f32 %v3661, %v3791
  %v3832 = vmul.f32 %v3792, %v611
  %v3833 = vmul.f32 %v3793, %v616
  %v3834 = vmul.f32 %v3794, %v621
  %v3835 = vmul.f32 %v3795, %v626
  %v3836 = vmul.f32 %v3796, %v631
  %v3837 = vmul.f32 %v3797, %v636
  %v3838 = vmul.f32 %v3798, %v641
  %v3839 = vmul.f32 %v3799, %v646
  %v3840 = vmul.f32 %v3800, %v651
  %v3841 = vmul.f32 %v3801, %v656
  %v3842 = vmul.f32 %v3802, %v661
  %v3843 = vmul.f32 %v3803, %v666
  %v3844 = vmul.f32 %v3804, %v671
  %v3845 = vmul.f32 %v3805, %v676
  %v3846 = vmul.f32 %v3806, %v681
  %v3847 = vmul.f32 %v3807, %v686
  %v3848 = vmul.f32 %v3808, %v691
  %v3849 = vmul.f32 %v3809, %v696
  %v3850 = vmul.f32 %v3810, %v701
  %v3851 = vmul.f32 %v3811, %v706
  %v3852 = vmul.f32 %v3812, %v711
  %v3853 = vmul.f32 %v3813, %v716
  %v3854 = vmul.f32 %v3814, %v721
  %v3855 = vmul.f32 %v3815, %v726
  %v3856 = vmul.f32 %v3816, %v731
  %v3857 = vmul.f32 %v3817, %v736
  %v3858 = vmul.f32 %v3818, %v741
  %v3859 = vmul.f32 %v3819, %v746
  %v3860 = vmul.f32 %v3820, %v751
  %v3861 = vmul.f32 %v3821, %v756
  %v3862 = vmul.f32 %v3822, %v761
  %v3863 = vmul.f32 %v3823, %v766
  %v3864 = vmul.f32 %v3824, %v771
  %v3865 = vmul.f32 %v3825, %v776
  %v3866 = vmul.f32 %v3826, %v781
  %v3867 = vmul.f32 %v3827, %v786
  %v3868 = vmul.f32 %v3828, %v791
  %v3869 = vmul.f32 %v3829, %v796
  %v3870 = vmul.f32 %v3830, %v801
  %v3871 = vmul.f32 %v3831, %v806
  %v3872 = vmul.f32 %v3832, %v3832
  %v3873 = vmul.f32 %v3833, %v3833
  %v3874 = vmul.f32 %v3834, %v3834
  %v3875 = vmul.f32 %v3835, %v3835
  %v3876 = vmul.f32 %v3836, %v3836
  %v3877 = vmul.f32 %v3837, %v3837
  %v3878 = vmul.f32 %v3838, %v3838
  %v3879 = vmul.f32 %v3839, %v3839
  %v3880 = vmul.f32 %v3840, %v3840
  %v3881 = vmul.f32 %v3841, %v3841
  %v3882 = vmul.f32 %v3842, %v3842
  %v3883 = vmul.f32 %v3843, %v3843
  %v3884 = vmul.f32 %v3844, %v3844
  %v3885 = vmul.f32 %v3845, %v3845
  %v3886 = vmul.f32 %v3846, %v3846
  %v3887 = vmul.f32 %v3847, %v3847
  %v3888 = vmul.f32 %v3848, %v3848
  %v3889 = vmul.f32 %v3849, %v3849
  %v3890 = vmul.f32 %v3850, %v3850
  %v3891 = vmul.f32 %v3851, %v3851
  %v3892 = vmul.f32 %v3852, %v3852
  %v3893 = vmul.f32 %v3853, %v3853
  %v3894 = vmul.f32 %v3854, %v3854
  %v3895 = vmul.f32 %v3855, %v3855
  %v3896 = vmul.f32 %v3856, %v3856
  %v3897 = vmul.f32 %v3857, %v3857
  %v3898 = vmul.f32 %v3858, %v3858
  %v3899 = vmul.f32 %v3859, %v3859
  %v3900 = vmul.f32 %v3860, %v3860
  %v3901 = vmul.f32 %v3861, %v3861
  %v3902 = vmul.f32 %v3862, %v3862
  %v3903 = vmul.f32 %v3863, %v3863
  %v3904 = vmul.f32 %v3864, %v3864
  %v3905 = vmul.f32 %v3865, %v3865
  %v3906 = vmul.f32 %v3866, %v3866
  %v3907 = vmul.f32 %v3867, %v3867
  %v3908 = vmul.f32 %v3868, %v3868
  %v3909 = vmul.f32 %v3869, %v3869
  %v3910 = vmul.f32 %v3870, %v3870
  %v3911 = vmul.f32 %v3871, %v3871
  %v3912 = vsel %vm481, %v3872, 0.0
  %v3913 = vsel %vm481, %v3873, 0.0
  %v3914 = vadd.f32 %v3912, %v3913
  %v3915 = vsel %vm481, %v3874, 0.0
  %v3916 = vadd.f32 %v3914, %v3915
  %v3917 = vsel %vm481, %v3875, 0.0
  %v3918 = vadd.f32 %v3916, %v3917
  %v3919 = vsel %vm481, %v3876, 0.0
  %v3920 = vadd.f32 %v3918, %v3919
  %v3921 = vsel %vm481, %v3877, 0.0
  %v3922 = vadd.f32 %v3920, %v3921
  %v3923 = vsel %vm481, %v3878, 0.0
  %v3924 = vadd.f32 %v3922, %v3923
  %v3925 = vsel %vm481, %v3879, 0.0
  %v3926 = vadd.f32 %v3924, %v3925
  %v3927 = vsel %vm481, %v3880, 0.0
  %v3928 = vadd.f32 %v3926, %v3927
  %v3929 = vsel %vm481, %v3881, 0.0
  %v3930 = vadd.f32 %v3928, %v3929
  %v3931 = vsel %vm481, %v3882, 0.0
  %v3932 = vadd.f32 %v3930, %v3931
  %v3933 = vsel %vm481, %v3883, 0.0
  %v3934 = vadd.f32 %v3932, %v3933
  %v3935 = vsel %vm481, %v3884, 0.0
  %v3936 = vadd.f32 %v3934, %v3935
  %v3937 = vsel %vm481, %v3885, 0.0
  %v3938 = vadd.f32 %v3936, %v3937
  %v3939 = vsel %vm481, %v3886, 0.0
  %v3940 = vadd.f32 %v3938, %v3939
  %v3941 = vsel %vm481, %v3887, 0.0
  %v3942 = vadd.f32 %v3940, %v3941
  %v3943 = vsel %vm481, %v3888, 0.0
  %v3944 = vadd.f32 %v3942, %v3943
  %v3945 = vsel %vm481, %v3889, 0.0
  %v3946 = vadd.f32 %v3944, %v3945
  %v3947 = vsel %vm481, %v3890, 0.0
  %v3948 = vadd.f32 %v3946, %v3947
  %v3949 = vsel %vm481, %v3891, 0.0
  %v3950 = vadd.f32 %v3948, %v3949
  %v3951 = vsel %vm481, %v3892, 0.0
  %v3952 = vadd.f32 %v3950, %v3951
  %v3953 = vsel %vm481, %v3893, 0.0
  %v3954 = vadd.f32 %v3952, %v3953
  %v3955 = vsel %vm481, %v3894, 0.0
  %v3956 = vadd.f32 %v3954, %v3955
  %v3957 = vsel %vm481, %v3895, 0.0
  %v3958 = vadd.f32 %v3956, %v3957
  %v3959 = vsel %vm481, %v3896, 0.0
  %v3960 = vadd.f32 %v3958, %v3959
  %v3961 = vsel %vm481, %v3897, 0.0
  %v3962 = vadd.f32 %v3960, %v3961
  %v3963 = vsel %vm481, %v3898, 0.0
  %v3964 = vadd.f32 %v3962, %v3963
  %v3965 = vsel %vm481, %v3899, 0.0
  %v3966 = vadd.f32 %v3964, %v3965
  %v3967 = vsel %vm481, %v3900, 0.0
  %v3968 = vadd.f32 %v3966, %v3967
  %v3969 = vsel %vm481, %v3901, 0.0
  %v3970 = vadd.f32 %v3968, %v3969
  %v3971 = vsel %vm481, %v3902, 0.0
  %v3972 = vadd.f32 %v3970, %v3971
  %v3973 = vsel %vm481, %v3903, 0.0
  %v3974 = vadd.f32 %v3972, %v3973
  %v3975 = vsel %vm481, %v3904, 0.0
  %v3976 = vadd.f32 %v3974, %v3975
  %v3977 = vsel %vm481, %v3905, 0.0
  %v3978 = vadd.f32 %v3976, %v3977
  %v3979 = vsel %vm481, %v3906, 0.0
  %v3980 = vadd.f32 %v3978, %v3979
  %v3981 = vsel %vm481, %v3907, 0.0
  %v3982 = vadd.f32 %v3980, %v3981
  %v3983 = vsel %vm481, %v3908, 0.0
  %v3984 = vadd.f32 %v3982, %v3983
  %v3985 = vsel %vm481, %v3909, 0.0
  %v3986 = vadd.f32 %v3984, %v3985
  %v3987 = vsel %vm481, %v3910, 0.0
  %v3988 = vadd.f32 %v3986, %v3987
  %v3989 = vsel %vm481, %v3911, 0.0
  %v3990 = vadd.f32 %v3988, %v3989
  %v3991 = vrot.slane %v3990, 4
  %v3992 = vadd.f32 %v3990, %v3991
  %v3993 = vrot.slane %v3992, 2
  %v3994 = vadd.f32 %v3992, %v3993
  %v3995 = vrot.slane %v3994, 1
  %v3996 = vadd.f32 %v3994, %v3995
  %v3997 = vmul.f32 %v3996, 0.0078125
  %v3998 = vadd.f32 %v3997, 1e-05
  %v3999 = vrsqrt.pop %v3998
  %v4000 = vmul.f32 %v3664, %v3999
  %v4001 = vmul.f32 %v3791, %v4000
  %v4002 = vsub.f32 %v3665, %v4001
  %v4003 = vlaneseq
  %v4004 = vshrl.u32 %v4003, 7
  %v4005 = vsub.s32 0, %v4004
  %v4006 = vrot.slane %v4000, %v4005
  %v4007 = vmul.f32 %v3506, %v4006
  %v4008 = vmul.f32 %v3509, %v4006
  %v4009 = vmul.f32 %v3514, %v4006
  %v4010 = vmul.f32 %v3517, %v4006
  %v4011 = vmul.f32 %v3522, %v4006
  %v4012 = vmul.f32 %v3525, %v4006
  %v4013 = vmul.f32 %v3530, %v4006
  %v4014 = vmul.f32 %v3533, %v4006
  %v4015 = vmul.f32 %v3538, %v4006
  %v4016 = vmul.f32 %v3541, %v4006
  %v4017 = vmul.f32 %v3546, %v4006
  %v4018 = vmul.f32 %v3549, %v4006
  %v4019 = vmul.f32 %v3554, %v4006
  %v4020 = vmul.f32 %v3557, %v4006
  %v4021 = vmul.f32 %v3562, %v4006
  %v4022 = vmul.f32 %v3565, %v4006
  %v4023 = vmul.f32 %v3570, %v4006
  %v4024 = vmul.f32 %v3573, %v4006
  %v4025 = vmul.f32 %v3578, %v4006
  %v4026 = vmul.f32 %v3581, %v4006
  %v4027 = vmul.f32 %v3586, %v4006
  %v4028 = vmul.f32 %v3589, %v4006
  %v4029 = vmul.f32 %v3594, %v4006
  %v4030 = vmul.f32 %v3597, %v4006
  %v4031 = vmul.f32 %v3602, %v4006
  %v4032 = vmul.f32 %v3605, %v4006
  %v4033 = vmul.f32 %v3610, %v4006
  %v4034 = vmul.f32 %v3613, %v4006
  %v4035 = vmul.f32 %v3618, %v4006
  %v4036 = vmul.f32 %v3621, %v4006
  %v4037 = vmul.f32 %v3626, %v4006
  %v4038 = vmul.f32 %v3629, %v4006
  %v4039 = vmul.f32 %v3634, %v4006
  %v4040 = vmul.f32 %v3637, %v4006
  %v4041 = vmul.f32 %v3642, %v4006
  %v4042 = vmul.f32 %v3645, %v4006
  %v4043 = vmul.f32 %v3650, %v4006
  %v4044 = vmul.f32 %v3653, %v4006
  %v4045 = vmul.f32 %v3658, %v4006
  %v4046 = vmul.f32 %v3661, %v4006
  %v4047 = vlaneseq
  %v4048 = vshrl.u32 %v4047, 7
  %v4049 = vsub.s32 0, %v4048
  %v4050 = vrot.slane %v4002, %v4049
  %v4051 = vadd.f32 %v4007, %v4050
  %v4052 = vadd.f32 %v4008, %v4050
  %v4053 = vadd.f32 %v4009, %v4050
  %v4054 = vadd.f32 %v4010, %v4050
  %v4055 = vadd.f32 %v4011, %v4050
  %v4056 = vadd.f32 %v4012, %v4050
  %v4057 = vadd.f32 %v4013, %v4050
  %v4058 = vadd.f32 %v4014, %v4050
  %v4059 = vadd.f32 %v4015, %v4050
  %v4060 = vadd.f32 %v4016, %v4050
  %v4061 = vadd.f32 %v4017, %v4050
  %v4062 = vadd.f32 %v4018, %v4050
  %v4063 = vadd.f32 %v4019, %v4050
  %v4064 = vadd.f32 %v4020, %v4050
  %v4065 = vadd.f32 %v4021, %v4050
  %v4066 = vadd.f32 %v4022, %v4050
  %v4067 = vadd.f32 %v4023, %v4050
  %v4068 = vadd.f32 %v4024, %v4050
  %v4069 = vadd.f32 %v4025, %v4050
  %v4070 = vadd.f32 %v4026, %v4050
  %v4071 = vadd.f32 %v4027, %v4050
  %v4072 = vadd.f32 %v4028, %v4050
  %v4073 = vadd.f32 %v4029, %v4050
  %v4074 = vadd.f32 %v4030, %v4050
  %v4075 = vadd.f32 %v4031, %v4050
  %v4076 = vadd.f32 %v4032, %v4050
  %v4077 = vadd.f32 %v4033, %v4050
  %v4078 = vadd.f32 %v4034, %v4050
  %v4079 = vadd.f32 %v4035, %v4050
  %v4080 = vadd.f32 %v4036, %v4050
  %v4081 = vadd.f32 %v4037, %v4050
  %v4082 = vadd.f32 %v4038, %v4050
  %v4083 = vadd.f32 %v4039, %v4050
  %v4084 = vadd.f32 %v4040, %v4050
  %v4085 = vadd.f32 %v4041, %v4050
  %v4086 = vadd.f32 %v4042, %v4050
  %v4087 = vadd.f32 %v4043, %v4050
  %v4088 = vadd.f32 %v4044, %v4050
  %v4089 = vadd.f32 %v4045, %v4050
  %v4090 = vadd.f32 %v4046, %v4050
  %v4091 = vld [vmem:[#allocation3] sm:$0xff]
  %v4092 = vld [vmem:[#allocation3 + $0x8] sm:$0xff]
  %v4093 = vld [vmem:[#allocation3 + $0x10] sm:$0xff]
  %v4094 = vld [vmem:[#allocation3 + $0x18] sm:$0xff]
  %v4095 = vld [vmem:[#allocation3 + $0x20] sm:$0xff]
  %v4096 = vld [vmem:[#allocation3 + $0x28] sm:$0xff]
  %v4097 = vld [vmem:[#allocation3 + $0x30] sm:$0xff]
  %v4098 = vld [vmem:[#allocation3 + $0x38] sm:$0xff]
  %v4099 = vld [vmem:[#allocation3 + $0x40] sm:$0xff]
  %v4100 = vld [vmem:[#allocation3 + $0x48] sm:$0xff]
  %v4101 = vld [vmem:[#allocation3 + $0x50] sm:$0xff]
  %v4102 = vld [vmem:[#allocation3 + $0x58] sm:$0xff]
  %v4103 = vld [vmem:[#allocation3 + $0x60] sm:$0xff]
  %v4104 = vld [vmem:[#allocation3 + $0x68] sm:$0xff]
  %v4105 = vld [vmem:[#allocation3 + $0x70] sm:$0xff]
  %v4106 = vld [vmem:[#allocation3 + $0x78] sm:$0xff]
  %v4107 = vld [vmem:[#allocation3 + $0x80] sm:$0xff]
  %v4108 = vld [vmem:[#allocation3 + $0x88] sm:$0xff]
  %v4109 = vld [vmem:[#allocation3 + $0x90] sm:$0xff]
  %v4110 = vld [vmem:[#allocation3 + $0x98] sm:$0xff]
  %v4111 = vld [vmem:[#allocation3 + $0xa0] sm:$0xff]
  %v4112 = vld [vmem:[#allocation3 + $0xa8] sm:$0xff]
  %v4113 = vld [vmem:[#allocation3 + $0xb0] sm:$0xff]
  %v4114 = vld [vmem:[#allocation3 + $0xb8] sm:$0xff]
  %v4115 = vld [vmem:[#allocation3 + $0xc0] sm:$0xff]
  %v4116 = vld [vmem:[#allocation3 + $0xc8] sm:$0xff]
  %v4117 = vld [vmem:[#allocation3 + $0xd0] sm:$0xff]
  %v4118 = vld [vmem:[#allocation3 + $0xd8] sm:$0xff]
  %v4119 = vld [vmem:[#allocation3 + $0xe0] sm:$0xff]
  %v4120 = vld [vmem:[#allocation3 + $0xe8] sm:$0xff]
  %v4121 = vld [vmem:[#allocation3 + $0xf0] sm:$0xff]
  %v4122 = vld [vmem:[#allocation3 + $0xf8] sm:$0xff]
  %v4123 = vld [vmem:[#allocation3 + $0x100] sm:$0xff]
  %v4124 = vld [vmem:[#allocation3 + $0x108] sm:$0xff]
  %v4125 = vld [vmem:[#allocation3 + $0x110] sm:$0xff]
  %v4126 = vld [vmem:[#allocation3 + $0x118] sm:$0xff]
  %v4127 = vld [vmem:[#allocation3 + $0x120] sm:$0xff]
  %v4128 = vld [vmem:[#allocation3 + $0x128] sm:$0xff]
  %v4129 = vld [vmem:[#allocation3 + $0x130] sm:$0xff]
  %v4130 = vld [vmem:[#allocation3 + $0x138] sm:$0xff]
  %v4131 = vadd.f32 %v4051, %v4091
  %v4132 = vadd.f32 %v4052, %v4092
  %v4133 = vadd.f32 %v4053, %v4093
  %v4134 = vadd.f32 %v4054, %v4094
  %v4135 = vadd.f32 %v4055, %v4095
  %v4136 = vadd.f32 %v4056, %v4096
  %v4137 = vadd.f32 %v4057, %v4097
  %v4138 = vadd.f32 %v4058, %v4098
  %v4139 = vadd.f32 %v4059, %v4099
  %v4140 = vadd.f32 %v4060, %v4100
  %v4141 = vadd.f32 %v4061, %v4101
  %v4142 = vadd.f32 %v4062, %v4102
  %v4143 = vadd.f32 %v4063, %v4103
  %v4144 = vadd.f32 %v4064, %v4104
  %v4145 = vadd.f32 %v4065, %v4105
  %v4146 = vadd.f32 %v4066, %v4106
  %v4147 = vadd.f32 %v4067, %v4107
  %v4148 = vadd.f32 %v4068, %v4108
  %v4149 = vadd.f32 %v4069, %v4109
  %v4150 = vadd.f32 %v4070, %v4110
  %v4151 = vadd.f32 %v4071, %v4111
  %v4152 = vadd.f32 %v4072, %v4112
  %v4153 = vadd.f32 %v4073, %v4113
  %v4154 = vadd.f32 %v4074, %v4114
  %v4155 = vadd.f32 %v4075, %v4115
  %v4156 = vadd.f32 %v4076, %v4116
  %v4157 = vadd.f32 %v4077, %v4117
  %v4158 = vadd.f32 %v4078, %v4118
  %v4159 = vadd.f32 %v4079, %v4119
  %v4160 = vadd.f32 %v4080, %v4120
  %v4161 = vadd.f32 %v4081, %v4121
  %v4162 = vadd.f32 %v4082, %v4122
  %v4163 = vadd.f32 %v4083, %v4123
  %v4164 = vadd.f32 %v4084, %v4124
  %v4165 = vadd.f32 %v4085, %v4125
  %v4166 = vadd.f32 %v4086, %v4126
  %v4167 = vadd.f32 %v4087, %v4127
  %v4168 = vadd.f32 %v4088, %v4128
  %v4169 = vadd.f32 %v4089, %v4129
  %v4170 = vadd.f32 %v4090, %v4130
  %v4171 = vmax.f32 %v4131, 0.0
  %v4172 = vmax.f32 %v4132, 0.0
  %v4173 = vmax.f32 %v4133, 0.0
  %v4174 = vmax.f32 %v4134, 0.0
  %v4175 = vmax.f32 %v4135, 0.0
  %v4176 = vmax.f32 %v4136, 0.0
  %v4177 = vmax.f32 %v4137, 0.0
  %v4178 = vmax.f32 %v4138, 0.0
  %v4179 = vmax.f32 %v4139, 0.0
  %v4180 = vmax.f32 %v4140, 0.0
  %v4181 = vmax.f32 %v4141, 0.0
  %v4182 = vmax.f32 %v4142, 0.0
  %v4183 = vmax.f32 %v4143, 0.0
  %v4184 = vmax.f32 %v4144, 0.0
  %v4185 = vmax.f32 %v4145, 0.0
  %v4186 = vmax.f32 %v4146, 0.0
  %v4187 = vmax.f32 %v4147, 0.0
  %v4188 = vmax.f32 %v4148, 0.0
  %v4189 = vmax.f32 %v4149, 0.0
  %v4190 = vmax.f32 %v4150, 0.0
  %v4191 = vmax.f32 %v4151, 0.0
  %v4192 = vmax.f32 %v4152, 0.0
  %v4193 = vmax.f32 %v4153, 0.0
  %v4194 = vmax.f32 %v4154, 0.0
  %v4195 = vmax.f32 %v4155, 0.0
  %v4196 = vmax.f32 %v4156, 0.0
  %v4197 = vmax.f32 %v4157, 0.0
  %v4198 = vmax.f32 %v4158, 0.0
  %v4199 = vmax.f32 %v4159, 0.0
  %v4200 = vmax.f32 %v4160, 0.0
  %v4201 = vmax.f32 %v4161, 0.0
  %v4202 = vmax.f32 %v4162, 0.0
  %v4203 = vmax.f32 %v4163, 0.0
  %v4204 = vmax.f32 %v4164, 0.0
  %v4205 = vmax.f32 %v4165, 0.0
  %v4206 = vmax.f32 %v4166, 0.0
  %v4207 = vmax.f32 %v4167, 0.0
  %v4208 = vmax.f32 %v4168, 0.0
  %v4209 = vmax.f32 %v4169, 0.0
  %v4210 = vmax.f32 %v4170, 0.0
  %4211 = vst.msk [vmem:[%s5] sm:$0xff] %vm481, %v4171
  %4212 = vst.msk [vmem:[%s5 + $0x8] sm:$0xff] %vm481, %v4172
  %4213 = vst.msk [vmem:[%s5 + $0x10] sm:$0xff] %vm481, %v4173
  %4214 = vst.msk [vmem:[%s5 + $0x18] sm:$0xff] %vm481, %v4174
  %4215 = vst.msk [vmem:[%s5 + $0x20] sm:$0xff] %vm481, %v4175
  %4216 = vst.msk [vmem:[%s5 + $0x28] sm:$0xff] %vm481, %v4176
  %4217 = vst.msk [vmem:[%s5 + $0x30] sm:$0xff] %vm481, %v4177
  %4218 = vst.msk [vmem:[%s5 + $0x38] sm:$0xff] %vm481, %v4178
  %4219 = vst.msk [vmem:[%s5 + $0x40] sm:$0xff] %vm481, %v4179
  %4220 = vst.msk [vmem:[%s5 + $0x48] sm:$0xff] %vm481, %v4180
  %4221 = vst.msk [vmem:[%s5 + $0x50] sm:$0xff] %vm481, %v4181
  %4222 = vst.msk [vmem:[%s5 + $0x58] sm:$0xff] %vm481, %v4182
  %4223 = vst.msk [vmem:[%s5 + $0x60] sm:$0xff] %vm481, %v4183
  %4224 = vst.msk [vmem:[%s5 + $0x68] sm:$0xff] %vm481, %v4184
  %4225 = vst.msk [vmem:[%s5 + $0x70] sm:$0xff] %vm481, %v4185
  %4226 = vst.msk [vmem:[%s5 + $0x78] sm:$0xff] %vm481, %v4186
  %4227 = vst.msk [vmem:[%s5 + $0x80] sm:$0xff] %vm481, %v4187
  %4228 = vst.msk [vmem:[%s5 + $0x88] sm:$0xff] %vm481, %v4188
  %4229 = vst.msk [vmem:[%s5 + $0x90] sm:$0xff] %vm481, %v4189
  %4230 = vst.msk [vmem:[%s5 + $0x98] sm:$0xff] %vm481, %v4190
  %4231 = vst.msk [vmem:[%s5 + $0xa0] sm:$0xff] %vm481, %v4191
  %4232 = vst.msk [vmem:[%s5 + $0xa8] sm:$0xff] %vm481, %v4192
  %4233 = vst.msk [vmem:[%s5 + $0xb0] sm:$0xff] %vm481, %v4193
  %4234 = vst.msk [vmem:[%s5 + $0xb8] sm:$0xff] %vm481, %v4194
  %4235 = vst.msk [vmem:[%s5 + $0xc0] sm:$0xff] %vm481, %v4195
  %4236 = vst.msk [vmem:[%s5 + $0xc8] sm:$0xff] %vm481, %v4196
  %4237 = vst.msk [vmem:[%s5 + $0xd0] sm:$0xff] %vm481, %v4197
  %4238 = vst.msk [vmem:[%s5 + $0xd8] sm:$0xff] %vm481, %v4198
  %4239 = vst.msk [vmem:[%s5 + $0xe0] sm:$0xff] %vm481, %v4199
  %4240 = vst.msk [vmem:[%s5 + $0xe8] sm:$0xff] %vm481, %v4200
  %4241 = vst.msk [vmem:[%s5 + $0xf0] sm:$0xff] %vm481, %v4201
  %4242 = vst.msk [vmem:[%s5 + $0xf8] sm:$0xff] %vm481, %v4202
  %4243 = vst.msk [vmem:[%s5 + $0x100] sm:$0xff] %vm481, %v4203
  %4244 = vst.msk [vmem:[%s5 + $0x108] sm:$0xff] %vm481, %v4204
  %4245 = vst.msk [vmem:[%s5 + $0x110] sm:$0xff] %vm481, %v4205
  %4246 = vst.msk [vmem:[%s5 + $0x118] sm:$0xff] %vm481, %v4206
  %4247 = vst.msk [vmem:[%s5 + $0x120] sm:$0xff] %vm481, %v4207
  %4248 = vst.msk [vmem:[%s5 + $0x128] sm:$0xff] %vm481, %v4208
  %4249 = vst.msk [vmem:[%s5 + $0x130] sm:$0xff] %vm481, %v4209
  %4250 = vst.msk [vmem:[%s5 + $0x138] sm:$0xff] %vm481, %v4210
  // Predicated region
  $region22: #{resblock_forward_nhwc.1} parent=0 // pred_check
    _
  $region23: #{resblock_forward_nhwc.1} parent=0 // pred_check_branch
    %4252 = sbr.rel (0) target = $region25
  $region24: #{resblock_forward_nhwc.1} parent=0 // pred_region
    _
  $region25: #{resblock_forward_nhwc.1} parent=0 // pred_fallthru
    _
  // Predicated region
  $region26: #{resblock_forward_nhwc.1} parent=0 // pred_check
    _
  $region27: #{resblock_forward_nhwc.1} parent=0 // pred_check_branch
    %4254 = sbr.rel (0) target = $region29
  $region28: #{resblock_forward_nhwc.1} parent=0 // pred_region
    _
  $region29: #{resblock_forward_nhwc.1} parent=0 // pred_fallthru
    _

</llo_original>
